<compile_context>
chip_gen: v5e
topology: v5e:2x2
jax: 0.10.0
libtpu: 0.0.40
codegen_flags: <defaults>
</compile_context>

<pallas_src>
import math
import functools

import numpy as np
import jax
import jax.numpy as jnp
from jax import lax
from jax.experimental import pallas as pl
from jax.experimental.pallas import tpu as pltpu

# ---- hyperparameters (small but consistent with Decoder.__init__) ----
N_LAYERS = 2
D_K = 8
D_V = 8
D_MODEL = 32
D_FF = 64
N_HEADS = 4
MAX_SEQ_LEN = 16            # pos table has MAX_SEQ_LEN*10 + 1 rows (row 0 = pad)
TGT_VOCAB_SIZE = 50
LN_EPS = 1e-6               # Python literal -> inlined, no captured constant

_W_LANES = 128              # packed weight buffer lane width


# ----------------------- packed weight buffer layout --------------------------

def _build_weight_layout():
    """Static (row, col, shape) layout of the single (rows, 128) f32 buffer."""
    layout = {}
    r = 0
    for l in range(N_LAYERS):
        for blk in ("sa", "ea"):
            # [ w_qkv (32,96) | wo (32,32) ]  -> full 128-lane rows
            layout[(l, blk, "w_qkv")] = (r, 0, (D_MODEL, 3 * D_MODEL))
            layout[(l, blk, "wo")] = (r, 3 * D_MODEL, (N_HEADS * D_V, D_MODEL))
            r += D_MODEL
            layout[(l, blk, "b_qkv")] = (r, 0, (1, 3 * D_MODEL))
            layout[(l, blk, "bo")] = (r, 3 * D_MODEL, (1, D_MODEL))
            r += 1
            layout[(l, blk, "gamma")] = (r, 0, (1, D_MODEL))
            layout[(l, blk, "beta")] = (r, D_MODEL, (1, D_MODEL))
            r += 1
        # [ w2 (64,32) | w1 (32,64) padded | ... ]
        layout[(l, "ff", "w2")] = (r, 0, (D_FF, D_MODEL))
        layout[(l, "ff", "w1")] = (r, D_MODEL, (D_MODEL, D_FF))
        r += D_FF
        layout[(l, "ff", "b1")] = (r, 0, (1, D_FF))
        layout[(l, "ff", "b2")] = (r, D_FF, (1, D_MODEL))
        layout[(l, "ff", "gamma")] = (r, D_FF + D_MODEL, (1, D_MODEL))
        r += 1
        layout[(l, "ff", "beta")] = (r, 0, (1, D_MODEL))
        r += 1
    rows = ((r + 7) // 8) * 8
    return rows, layout


_W_ROWS, _W_LAYOUT = _build_weight_layout()


def _carve(w_ref, key):
    r0, c0, (rows, cols) = _W_LAYOUT[key]
    return w_ref[r0:r0 + rows, c0:c0 + cols]          # static slice -> direct load


def _carve_attn(w_ref, l, blk):
    return (_carve(w_ref, (l, blk, "w_qkv")), _carve(w_ref, (l, blk, "b_qkv")),
            _carve(w_ref, (l, blk, "wo")), _carve(w_ref, (l, blk, "bo")),
            _carve(w_ref, (l, blk, "gamma")), _carve(w_ref, (l, blk, "beta")))


def _carve_ffn(w_ref, l):
    return (_carve(w_ref, (l, "ff", "w1")), _carve(w_ref, (l, "ff", "b1")),
            _carve(w_ref, (l, "ff", "w2")), _carve(w_ref, (l, "ff", "b2")),
            _carve(w_ref, (l, "ff", "gamma")), _carve(w_ref, (l, "ff", "beta")))


# ----------------------------- in-kernel helpers ------------------------------

def _layer_norm(z, gamma, beta):
    # matches reference LayerNormalization: (z - mean) / (unbiased std + eps)
    mean = jnp.mean(z, axis=-1, keepdims=True)
    var = jnp.sum((z - mean) ** 2, axis=-1, keepdims=True) / (z.shape[-1] - 1)
    inv = pl.reciprocal(jnp.sqrt(var) + LN_EPS, approx=True)   # EUP, not VPU divide
    return (z - mean) * inv * gamma + beta


def _attention(x, kv, w_qkv, b_qkv, wo, bo, gamma, beta, mask, self_attn):
    """Multi-head attention + residual + post-LayerNorm for one batch element.

    x: (Lq, D), kv: (Lk, D)
    w_qkv: (D, 3D) = [wq | wk | wv] with 1/sqrt(d_k) folded into the q columns.
    b_qkv: (1, 3D); wo: (H*dv, D); bo/gamma/beta: (1, D).
    """
    lq = x.shape[0]
    if self_attn:
        qkv = jnp.dot(x, w_qkv, preferred_element_type=jnp.float32) + b_qkv   # (L, 96)
        q, k, v = qkv[:, :D_MODEL], qkv[:, D_MODEL:2 * D_MODEL], qkv[:, 2 * D_MODEL:]
    else:
        q = jnp.dot(x, w_qkv[:, :D_MODEL],
                    preferred_element_type=jnp.float32) + b_qkv[:, :D_MODEL]
        kvp = jnp.dot(kv, w_qkv[:, D_MODEL:],
                      preferred_element_type=jnp.float32) + b_qkv[:, D_MODEL:]
        k, v = kvp[:, :D_MODEL], kvp[:, D_MODEL:]

    # split heads by static lane slices (no lane-splitting reshape needed)
    qh = jnp.stack([q[:, h * D_K:(h + 1) * D_K] for h in range(N_HEADS)], axis=0)
    kh = jnp.stack([k[:, h * D_K:(h + 1) * D_K] for h in range(N_HEADS)], axis=0)
    vh = jnp.stack([v[:, h * D_V:(h + 1) * D_V] for h in range(N_HEADS)], axis=0)

    # head-batched scores (H, Lq, Lk); scale already folded into q projection
    s = lax.dot_general(qh, kh, (((2,), (2,)), ((0,), (0,))),
                        preferred_element_type=jnp.float32)
    if mask is not None:
        s = jnp.where(mask[None], -1e30, s)
    s = s - jnp.max(s, axis=-1, keepdims=True)         # stable softmax
    p = jnp.exp(s)
    p = p * pl.reciprocal(jnp.sum(p, axis=-1, keepdims=True), approx=True)

    # head-batched context (H, Lq, dv)
    ctx = lax.dot_general(p, vh, (((2,), (1,)), ((0,), (0,))),
                          preferred_element_type=jnp.float32)
    # concat heads -> single lane-dense (Lq, H*dv) @ (H*dv, D) output projection
    ctx_flat = jnp.concatenate([ctx[h] for h in range(N_HEADS)], axis=-1)
    o = jnp.dot(ctx_flat, wo, preferred_element_type=jnp.float32) + bo
    return _layer_norm(x + o, gamma, beta)


def _ffn(x, w1, b1, w2, b2, gamma, beta):
    """Position-wise FFN (Conv1d k=1 == Linear) + residual + LayerNorm."""
    h = jnp.maximum(jnp.dot(x, w1, preferred_element_type=jnp.float32) + b1, 0.0)
    y = jnp.dot(h, w2, preferred_element_type=jnp.float32) + b2
    return _layer_norm(x + y, gamma, beta)


# ----------------------------- fused decoder kernel ---------------------------

def decoder_kernel(len_ref, tokr_ref, tokc_ref, emb_ref, pos_ref, enc_ref, w_ref,
                   out_ref):
    # One batch element per grid step (grid=(B,), "parallel" -> 2 TCs on v7x).
    b = pl.program_id(0)
    seq = out_ref.shape[1]
    v_pad = emb_ref.shape[0]

    tok_row = tokr_ref[0]                                   # (1, L) int32
    tok_col = tokc_ref[0]                                   # (L, 1) int32

    # fused target-embedding gather (one-hot matmul) + positional encoding
    onehot = (lax.broadcasted_iota(jnp.int32, (seq, v_pad), 1)
              == tok_col).astype(jnp.float32)               # (L, Vp)
    x = jnp.dot(onehot, emb_ref[...], preferred_element_type=jnp.float32)  # (L, D)
    pos_idx = lax.broadcasted_iota(jnp.int32, (seq, 1), 0) + 1
    x = x + jnp.where(pos_idx <= len_ref[b], pos_ref[...], 0.0)
    # dropout_emb: identity at inference

    # self-attention mask built in-register: strictly-upper-triangular OR key-is-pad
    row = lax.broadcasted_iota(jnp.int32, (seq, seq), 0)
    col = lax.broadcasted_iota(jnp.int32, (seq, seq), 1)
    mask = jnp.logical_or(col > row, tok_row == 0)          # (L, L) bool

    enc = enc_ref[0]                                        # (L_enc, D)

    for l in range(N_LAYERS):                               # static unroll (N_LAYERS=2)
        x = _attention(x, x, *_carve_attn(w_ref, l, "sa"), mask=mask, self_attn=True)
        # enc-dec attention has NO mask (reference passes enc_attn_mask=None)
        x = _attention(x, enc, *_carve_attn(w_ref, l, "ea"), mask=None, self_attn=False)
        x = _ffn(x, *_carve_ffn(w_ref, l))

    # TODO(synk): output last dim is 32 (<128 lanes); a (B, L*D) lane-dense slab
    # store would avoid masked partial stores, but at 2 tiles the win is noise.
    out_ref[0] = x


# ----------------------------- weight packing ----------------------------------

def pack_decoder_weights(params):
    """Pack all layer weights into one lane-dense (_W_ROWS, 128) f32 buffer."""
    buf = jnp.zeros((_W_ROWS, _W_LANES), jnp.float32)
    q_scale = float(1.0 / math.sqrt(D_K))      # fold score scale into q proj only

    def put(b, key, val):
        r0, c0, shape = _W_LAYOUT[key]
        return b.at[r0:r0 + shape[0], c0:c0 + shape[1]].set(
            jnp.asarray(val, jnp.float32).reshape(shape))

    for l, lp in enumerate(params["layers"]):
        for blk, name in (("sa", "self_attn"), ("ea", "enc_attn")):
            p = lp[name]
            w_qkv = jnp.concatenate([p["wq"] * q_scale, p["wk"], p["wv"]], axis=1)
            b_qkv = jnp.concatenate([p["bq"] * q_scale, p["bk"], p["bv"]], axis=1)
            buf = put(buf, (l, blk, "w_qkv"), w_qkv)
            buf = put(buf, (l, blk, "b_qkv"), b_qkv)
            buf = put(buf, (l, blk, "wo"), p["wo"])
            buf = put(buf, (l, blk, "bo"), p["bo"])
            buf = put(buf, (l, blk, "gamma"), p["gamma"])
            buf = put(buf, (l, blk, "beta"), p["beta"])
        p = lp["ffn"]
        for nm in ("w1", "b1", "w2", "b2", "gamma", "beta"):
            buf = put(buf, (l, "ff", nm), p[nm])
    return buf


# ----------------------------- forward (single pallas_call) --------------------

@functools.partial(jax.jit, static_argnames=("return_attn",))
def decoder_forward(params, dec_inputs, dec_inputs_len, enc_outputs,
                    return_attn=False):
    B, L = dec_inputs.shape
    L_enc = enc_outputs.shape[1]
    D = D_MODEL

    packed_w = pack_decoder_weights(params)

    emb = params["tgt_emb"].astype(jnp.float32)
    V = emb.shape[0]
    Vp = ((V + 7) // 8) * 8
    emb_p = jnp.zeros((Vp, D), jnp.float32).at[:V].set(emb)     # pad rows -> zeros
    pos_slab = params["pos_table"][1:L + 1].astype(jnp.float32)  # (L, D), row 0 = pad

    tok = dec_inputs.astype(jnp.int32)
    tok_row = tok.reshape(B, 1, L)          # key orientation (pad mask)
    tok_col = tok.reshape(B, L, 1)          # query/row orientation (one-hot gather)
    lens = dec_inputs_len.astype(jnp.int32)
    enc = enc_outputs.astype(jnp.float32)

    grid_spec = pltpu.PrefetchScalarGridSpec(
        num_scalar_prefetch=1,              # dec_inputs_len -> SMEM
        grid=(B,),
        in_specs=[
            pl.BlockSpec((1, 1, L), lambda b, _lens: (b, 0, 0)),          # tok_row
            pl.BlockSpec((1, L, 1), lambda b, _lens: (b, 0, 0)),          # tok_col
            pl.BlockSpec((Vp, D), lambda b, _lens: (0, 0)),               # emb table
            pl.BlockSpec((L, D), lambda b, _lens: (0, 0)),                # pos rows 1..L
            pl.BlockSpec((1, L_enc, D), lambda b, _lens: (b, 0, 0)),      # enc outputs
            pl.BlockSpec((_W_ROWS, _W_LANES), lambda b, _lens: (0, 0)),   # packed weights
        ],
        out_specs=pl.BlockSpec((1, L, D), lambda b, _lens: (b, 0, 0)),
    )

    dec_out = pl.pallas_call(
        decoder_kernel,
        out_shape=jax.ShapeDtypeStruct((B, L, D), jnp.float32),
        grid_spec=grid_spec,
        compiler_params=pltpu.CompilerParams(
            dimension_semantics=("parallel",)),   # batch -> both TCs on v7x
    )(lens, tok_row, tok_col, emb_p, pos_slab, enc, packed_w)

    # TODO(synk): per-layer attention-weight maps are not returned from the
    # fused kernel (only the default return_attn=False path is reproduced).
    return dec_out, [], []


# ----------------------------- init (plain JAX) --------------------------------

def build_pos_table(n_pos, d_model):
    pos = np.arange(n_pos, dtype=np.float64)[:, None]
    j = np.arange(d_model, dtype=np.float64)[None, :]
    angle = pos / np.power(10000.0, 2.0 * (j // 2) / d_model)
    table = np.zeros((n_pos, d_model), dtype=np.float64)
    table[:, 0::2] = np.sin(angle[:, 0::2])
    table[:, 1::2] = np.cos(angle[:, 1::2])
    pad = np.zeros((1, d_model))
    return jnp.asarray(np.concatenate([pad, table], axis=0), dtype=jnp.float32)


def _dense_init(key, shape, scale=0.1):
    return scale * jax.random.normal(key, shape, jnp.float32)


def init_attn_params(key):
    ks = jax.random.split(key, 4)
    return {
        "wq": _dense_init(ks[0], (D_MODEL, N_HEADS * D_K)),
        "bq": jnp.zeros((1, N_HEADS * D_K), jnp.float32),
        "wk": _dense_init(ks[1], (D_MODEL, N_HEADS * D_K)),
        "bk": jnp.zeros((1, N_HEADS * D_K), jnp.float32),
        "wv": _dense_init(ks[2], (D_MODEL, N_HEADS * D_V)),
        "bv": jnp.zeros((1, N_HEADS * D_V), jnp.float32),
        "wo": _dense_init(ks[3], (N_HEADS * D_V, D_MODEL)),
        "bo": jnp.zeros((1, D_MODEL), jnp.float32),
        "gamma": jnp.ones((1, D_MODEL), jnp.float32),
        "beta": jnp.zeros((1, D_MODEL), jnp.float32),
    }


def init_ffn_params(key):
    ks = jax.random.split(key, 2)
    return {
        "w1": _dense_init(ks[0], (D_MODEL, D_FF)),
        "b1": jnp.zeros((1, D_FF), jnp.float32),
        "w2": _dense_init(ks[1], (D_FF, D_MODEL)),
        "b2": jnp.zeros((1, D_MODEL), jnp.float32),
        "gamma": jnp.ones((1, D_MODEL), jnp.float32),
        "beta": jnp.zeros((1, D_MODEL), jnp.float32),
    }


def init_params(key):
    keys = jax.random.split(key, 1 + N_LAYERS)
    emb = 0.02 * jax.random.normal(keys[0], (TGT_VOCAB_SIZE, D_MODEL), jnp.float32)
    emb = emb.at[0].set(0.0)                 # padding_idx=0 -> zero row
    layers = []
    for i in range(N_LAYERS):
        lk = jax.random.split(keys[1 + i], 3)
        layers.append({
            "self_attn": init_attn_params(lk[0]),
            "enc_attn": init_attn_params(lk[1]),
            "ffn": init_ffn_params(lk[2]),
        })
    return {
        "tgt_emb": emb,
        "pos_table": build_pos_table(MAX_SEQ_LEN * 10, D_MODEL),
        "layers": layers,
    }


# ----------------------------------- main ---------------------------------------

if __name__ == "__main__":
    key = jax.random.PRNGKey(0)
    k_param, k_tok, k_enc = jax.random.split(key, 3)
    params = init_params(k_param)

    B, L, L_ENC = 2, 8, 8
    dec_inputs = jax.random.randint(k_tok, (B, L), 1, TGT_VOCAB_SIZE, dtype=jnp.int32)
    dec_inputs_len = jnp.array([L, 5], dtype=jnp.int32)          # max length == L
    pos = jnp.arange(L, dtype=jnp.int32)[None, :]
    dec_inputs = jnp.where(pos < dec_inputs_len[:, None], dec_inputs, 0)  # pad w/ 0
    enc_outputs = 0.1 * jax.random.normal(k_enc, (B, L_ENC, D_MODEL), jnp.float32)

    dec_out, _, _ = decoder_forward(params, dec_inputs, dec_inputs_len, enc_outputs)
    dec_out = jax.block_until_ready(dec_out)

    assert dec_out.shape == (B, L, D_MODEL)
    assert bool(jnp.all(jnp.isfinite(dec_out)))
    print("KERNEL_OK")
</pallas_src>

<mosaic_0001>
module attributes {stable_mosaic.version = 11 : i64} {
  func.func @decoder_kernel(%arg0: i32, %arg1: memref<2xi32, #tpu.memory_space<smem>>, %arg2: memref<1x1x8xi32, #tpu.memory_space<vmem>>, %arg3: memref<1x8x1xi32, #tpu.memory_space<vmem>>, %arg4: memref<56x32xf32, #tpu.memory_space<vmem>>, %arg5: memref<8x32xf32, #tpu.memory_space<vmem>>, %arg6: memref<1x8x32xf32, #tpu.memory_space<vmem>>, %arg7: memref<272x128xf32, #tpu.memory_space<vmem>>, %arg8: memref<1x8x32xf32, #tpu.memory_space<vmem>>) attributes {dimension_semantics = [#tpu.dimension_semantics<parallel>], iteration_bounds = array<i64: 2>, scalar_prefetch = 1 : i64, scratch_operands = 0 : i64, tpu.core_type = #tpu.core_type<tc>, window_params = [{transform_indices = @transform_0, window_bounds = array<i64: 1, 1, 8>}, {transform_indices = @transform_1, window_bounds = array<i64: 1, 8, 1>}, {pipeline_mode = #tpu.pipeline_mode<synchronous>, transform_indices = @transform_2, window_bounds = array<i64: 56, 32>}, {pipeline_mode = #tpu.pipeline_mode<synchronous>, transform_indices = @transform_3, window_bounds = array<i64: 8, 32>}, {transform_indices = @transform_4, window_bounds = array<i64: 1, 8, 32>}, {pipeline_mode = #tpu.pipeline_mode<synchronous>, transform_indices = @transform_5, window_bounds = array<i64: 272, 128>}, {transform_indices = @transform_6, window_bounds = array<i64: 1, 8, 32>}]} {
    %c0 = arith.constant 0 : index
    %c0_0 = arith.constant 0 : index
    %c0_1 = arith.constant 0 : index
    %0 = vector.load %arg2[%c0, %c0_0, %c0_1] : memref<1x1x8xi32, #tpu.memory_space<vmem>>, vector<1x1x8xi32>
    %1 = vector.shape_cast %0 : vector<1x1x8xi32> to vector<1x8xi32>
    %c0_2 = arith.constant 0 : index
    %c0_3 = arith.constant 0 : index
    %c0_4 = arith.constant 0 : index
    %2 = vector.load %arg3[%c0_2, %c0_3, %c0_4] : memref<1x8x1xi32, #tpu.memory_space<vmem>>, vector<1x8x1xi32>
    %3 = vector.shape_cast %2 : vector<1x8x1xi32> to vector<8x1xi32>
    %4 = tpu.iota {dimensions = array<i32: 1>} : vector<8x56xi32>
    %5 = vector.broadcast %3 : vector<8x1xi32> to vector<8x56xi32>
    %6 = arith.cmpi eq, %4, %5 : vector<8x56xi32>
    %7 = arith.extui %6 : vector<8x56xi1> to vector<8x56xi32>
    %8 = arith.sitofp %7 : vector<8x56xi32> to vector<8x56xf32>
    %c0_5 = arith.constant 0 : index
    %c0_6 = arith.constant 0 : index
    %9 = vector.load %arg4[%c0_5, %c0_6] : memref<56x32xf32, #tpu.memory_space<vmem>>, vector<56x32xf32>
    %cst = arith.constant dense<0.000000e+00> : vector<8x32xf32>
    %10 = tpu.matmul %8, %9, %cst {dimension_numbers = #tpu.dot_dimension_numbers<[1], [0], [0], [1], [0, 0, 1, 1], [], []>} : vector<8x56xf32>, vector<56x32xf32>, vector<8x32xf32> -> vector<8x32xf32>
    %11 = tpu.iota {dimensions = array<i32: 0>} : vector<8x1xi32>
    %c1_i32 = arith.constant 1 : i32
    %12 = vector.broadcast %c1_i32 : i32 to vector<8x1xi32>
    %13 = arith.addi %11, %12 : vector<8x1xi32>
    %14 = arith.index_cast %arg0 : i32 to index
    %15 = memref.load %arg1[%14] : memref<2xi32, #tpu.memory_space<smem>>
    %16 = vector.broadcast %15 : i32 to vector<8x1xi32>
    %17 = arith.cmpi sle, %13, %16 : vector<8x1xi32>
    %c0_7 = arith.constant 0 : index
    %c0_8 = arith.constant 0 : index
    %18 = vector.load %arg5[%c0_7, %c0_8] : memref<8x32xf32, #tpu.memory_space<vmem>>, vector<8x32xf32>
    %cst_9 = arith.constant 0.000000e+00 : f32
    %19 = vector.shape_cast %17 : vector<8x1xi1> to vector<8x1xi1>
    %20 = vector.broadcast %19 : vector<8x1xi1> to vector<8x32xi1>
    %21 = vector.broadcast %cst_9 : f32 to vector<8x32xf32>
    %22 = arith.select %20, %18, %21 : vector<8x32xi1>, vector<8x32xf32>
    %23 = arith.addf %10, %22 : vector<8x32xf32>
    %24 = tpu.iota {dimensions = array<i32: 0>} : vector<8x8xi32>
    %25 = tpu.iota {dimensions = array<i32: 1>} : vector<8x8xi32>
    %26 = arith.cmpi sgt, %25, %24 : vector<8x8xi32>
    %c0_i32 = arith.constant 0 : i32
    %27 = vector.broadcast %c0_i32 : i32 to vector<1x8xi32>
    %28 = arith.cmpi eq, %1, %27 : vector<1x8xi32>
    %29 = vector.broadcast %28 : vector<1x8xi1> to vector<8x8xi1>
    %30 = arith.ori %26, %29 : vector<8x8xi1>
    %c0_10 = arith.constant 0 : index
    %c0_11 = arith.constant 0 : index
    %c0_12 = arith.constant 0 : index
    %31 = vector.load %arg6[%c0_10, %c0_11, %c0_12] : memref<1x8x32xf32, #tpu.memory_space<vmem>>, vector<1x8x32xf32>
    %32 = vector.shape_cast %31 : vector<1x8x32xf32> to vector<8x32xf32>
    %c0_13 = arith.constant 0 : index
    %c0_14 = arith.constant 0 : index
    %33 = vector.load %arg7[%c0_13, %c0_14] : memref<272x128xf32, #tpu.memory_space<vmem>>, vector<32x96xf32>
    %c32 = arith.constant 32 : index
    %c0_15 = arith.constant 0 : index
    %34 = vector.load %arg7[%c32, %c0_15] : memref<272x128xf32, #tpu.memory_space<vmem>>, vector<1x96xf32>
    %c0_16 = arith.constant 0 : index
    %c96 = arith.constant 96 : index
    %35 = vector.load %arg7[%c0_16, %c96] : memref<272x128xf32, #tpu.memory_space<vmem>>, vector<32x32xf32>
    %c32_17 = arith.constant 32 : index
    %c96_18 = arith.constant 96 : index
    %36 = vector.load %arg7[%c32_17, %c96_18] : memref<272x128xf32, #tpu.memory_space<vmem>>, vector<1x32xf32>
    %c33 = arith.constant 33 : index
    %c0_19 = arith.constant 0 : index
    %37 = vector.load %arg7[%c33, %c0_19] : memref<272x128xf32, #tpu.memory_space<vmem>>, vector<1x32xf32>
    %c33_20 = arith.constant 33 : index
    %c32_21 = arith.constant 32 : index
    %38 = vector.load %arg7[%c33_20, %c32_21] : memref<272x128xf32, #tpu.memory_space<vmem>>, vector<1x32xf32>
    %cst_22 = arith.constant dense<0.000000e+00> : vector<8x96xf32>
    %39 = tpu.matmul %23, %33, %cst_22 {dimension_numbers = #tpu.dot_dimension_numbers<[1], [0], [0], [1], [0, 0, 1, 1], [], []>} : vector<8x32xf32>, vector<32x96xf32>, vector<8x96xf32> -> vector<8x96xf32>
    %40 = vector.broadcast %34 : vector<1x96xf32> to vector<8x96xf32>
    %41 = arith.addf %39, %40 : vector<8x96xf32>
    %42 = vector.extract_strided_slice %41 {offsets = [0, 0], sizes = [8, 32], strides = [1, 1]} : vector<8x96xf32> to vector<8x32xf32>
    %43 = vector.extract_strided_slice %41 {offsets = [0, 32], sizes = [8, 32], strides = [1, 1]} : vector<8x96xf32> to vector<8x32xf32>
    %44 = vector.extract_strided_slice %41 {offsets = [0, 64], sizes = [8, 32], strides = [1, 1]} : vector<8x96xf32> to vector<8x32xf32>
    %45 = vector.extract_strided_slice %42 {offsets = [0, 0], sizes = [8, 8], strides = [1, 1]} : vector<8x32xf32> to vector<8x8xf32>
    %46 = vector.extract_strided_slice %42 {offsets = [0, 8], sizes = [8, 8], strides = [1, 1]} : vector<8x32xf32> to vector<8x8xf32>
    %47 = vector.extract_strided_slice %42 {offsets = [0, 16], sizes = [8, 8], strides = [1, 1]} : vector<8x32xf32> to vector<8x8xf32>
    %48 = vector.extract_strided_slice %42 {offsets = [0, 24], sizes = [8, 8], strides = [1, 1]} : vector<8x32xf32> to vector<8x8xf32>
    %49 = vector.shape_cast %45 : vector<8x8xf32> to vector<1x8x8xf32>
    %50 = vector.shape_cast %46 : vector<8x8xf32> to vector<1x8x8xf32>
    %51 = vector.shape_cast %47 : vector<8x8xf32> to vector<1x8x8xf32>
    %52 = vector.shape_cast %48 : vector<8x8xf32> to vector<1x8x8xf32>
    %53 = tpu.concatenate %49, %50, %51, %52 in 0 : vector<1x8x8xf32>, vector<1x8x8xf32>, vector<1x8x8xf32>, vector<1x8x8xf32> -> vector<4x8x8xf32>
    %54 = vector.extract_strided_slice %43 {offsets = [0, 0], sizes = [8, 8], strides = [1, 1]} : vector<8x32xf32> to vector<8x8xf32>
    %55 = vector.extract_strided_slice %43 {offsets = [0, 8], sizes = [8, 8], strides = [1, 1]} : vector<8x32xf32> to vector<8x8xf32>
    %56 = vector.extract_strided_slice %43 {offsets = [0, 16], sizes = [8, 8], strides = [1, 1]} : vector<8x32xf32> to vector<8x8xf32>
    %57 = vector.extract_strided_slice %43 {offsets = [0, 24], sizes = [8, 8], strides = [1, 1]} : vector<8x32xf32> to vector<8x8xf32>
    %58 = vector.shape_cast %54 : vector<8x8xf32> to vector<1x8x8xf32>
    %59 = vector.shape_cast %55 : vector<8x8xf32> to vector<1x8x8xf32>
    %60 = vector.shape_cast %56 : vector<8x8xf32> to vector<1x8x8xf32>
    %61 = vector.shape_cast %57 : vector<8x8xf32> to vector<1x8x8xf32>
    %62 = tpu.concatenate %58, %59, %60, %61 in 0 : vector<1x8x8xf32>, vector<1x8x8xf32>, vector<1x8x8xf32>, vector<1x8x8xf32> -> vector<4x8x8xf32>
    %63 = vector.extract_strided_slice %44 {offsets = [0, 0], sizes = [8, 8], strides = [1, 1]} : vector<8x32xf32> to vector<8x8xf32>
    %64 = vector.extract_strided_slice %44 {offsets = [0, 8], sizes = [8, 8], strides = [1, 1]} : vector<8x32xf32> to vector<8x8xf32>
    %65 = vector.extract_strided_slice %44 {offsets = [0, 16], sizes = [8, 8], strides = [1, 1]} : vector<8x32xf32> to vector<8x8xf32>
    %66 = vector.extract_strided_slice %44 {offsets = [0, 24], sizes = [8, 8], strides = [1, 1]} : vector<8x32xf32> to vector<8x8xf32>
    %67 = vector.shape_cast %63 : vector<8x8xf32> to vector<1x8x8xf32>
    %68 = vector.shape_cast %64 : vector<8x8xf32> to vector<1x8x8xf32>
    %69 = vector.shape_cast %65 : vector<8x8xf32> to vector<1x8x8xf32>
    %70 = vector.shape_cast %66 : vector<8x8xf32> to vector<1x8x8xf32>
    %71 = tpu.concatenate %67, %68, %69, %70 in 0 : vector<1x8x8xf32>, vector<1x8x8xf32>, vector<1x8x8xf32>, vector<1x8x8xf32> -> vector<4x8x8xf32>
    %cst_23 = arith.constant dense<0.000000e+00> : vector<4x8x8xf32>
    %72 = tpu.matmul %53, %62, %cst_23 {dimension_numbers = #tpu.dot_dimension_numbers<[2], [2], [1], [1], [0, 0, 0, 1, 1, 1], [0], [0]>} : vector<4x8x8xf32>, vector<4x8x8xf32>, vector<4x8x8xf32> -> vector<4x8x8xf32>
    %73 = vector.shape_cast %30 : vector<8x8xi1> to vector<1x8x8xi1>
    %cst_24 = arith.constant -1.000000e+30 : f32
    %74 = vector.shape_cast %73 : vector<1x8x8xi1> to vector<1x8x8xi1>
    %75 = vector.broadcast %74 : vector<1x8x8xi1> to vector<4x8x8xi1>
    %76 = vector.broadcast %cst_24 : f32 to vector<4x8x8xf32>
    %77 = arith.select %75, %76, %72 : vector<4x8x8xi1>, vector<4x8x8xf32>
    %cst_25 = arith.constant dense<0xFF800000> : vector<4x8xf32>
    %78 = vector.multi_reduction <maximumf>, %77, %cst_25 [2] : vector<4x8x8xf32> to vector<4x8xf32>
    %79 = vector.shape_cast %78 : vector<4x8xf32> to vector<4x8x1xf32>
    %80 = vector.broadcast %79 : vector<4x8x1xf32> to vector<4x8x8xf32>
    %81 = arith.subf %77, %80 : vector<4x8x8xf32>
    %82 = math.exp %81 : vector<4x8x8xf32>
    %cst_26 = arith.constant dense<0.000000e+00> : vector<4x8xf32>
    %83 = vector.multi_reduction <add>, %82, %cst_26 [2] : vector<4x8x8xf32> to vector<4x8xf32>
    %84 = vector.shape_cast %83 : vector<4x8xf32> to vector<4x8x1xf32>
    %85 = tpu.reciprocal %84 {approx = true} : vector<4x8x1xf32> -> vector<4x8x1xf32>
    %86 = vector.broadcast %85 : vector<4x8x1xf32> to vector<4x8x8xf32>
    %87 = arith.mulf %82, %86 : vector<4x8x8xf32>
    %cst_27 = arith.constant dense<0.000000e+00> : vector<4x8x8xf32>
    %88 = tpu.matmul %87, %71, %cst_27 {dimension_numbers = #tpu.dot_dimension_numbers<[2], [1], [1], [2], [0, 0, 0, 1, 1, 2], [0], [0]>} : vector<4x8x8xf32>, vector<4x8x8xf32>, vector<4x8x8xf32> -> vector<4x8x8xf32>
    %89 = vector.extract_strided_slice %88 {offsets = [0, 0, 0], sizes = [1, 8, 8], strides = [1, 1, 1]} : vector<4x8x8xf32> to vector<1x8x8xf32>
    %90 = vector.shape_cast %89 : vector<1x8x8xf32> to vector<8x8xf32>
    %91 = vector.extract_strided_slice %88 {offsets = [1, 0, 0], sizes = [1, 8, 8], strides = [1, 1, 1]} : vector<4x8x8xf32> to vector<1x8x8xf32>
    %92 = vector.shape_cast %91 : vector<1x8x8xf32> to vector<8x8xf32>
    %93 = vector.extract_strided_slice %88 {offsets = [2, 0, 0], sizes = [1, 8, 8], strides = [1, 1, 1]} : vector<4x8x8xf32> to vector<1x8x8xf32>
    %94 = vector.shape_cast %93 : vector<1x8x8xf32> to vector<8x8xf32>
    %95 = vector.extract_strided_slice %88 {offsets = [3, 0, 0], sizes = [1, 8, 8], strides = [1, 1, 1]} : vector<4x8x8xf32> to vector<1x8x8xf32>
    %96 = vector.shape_cast %95 : vector<1x8x8xf32> to vector<8x8xf32>
    %97 = tpu.concatenate %90, %92, %94, %96 in 1 : vector<8x8xf32>, vector<8x8xf32>, vector<8x8xf32>, vector<8x8xf32> -> vector<8x32xf32>
    %cst_28 = arith.constant dense<0.000000e+00> : vector<8x32xf32>
    %98 = tpu.matmul %97, %35, %cst_28 {dimension_numbers = #tpu.dot_dimension_numbers<[1], [0], [0], [1], [0, 0, 1, 1], [], []>} : vector<8x32xf32>, vector<32x32xf32>, vector<8x32xf32> -> vector<8x32xf32>
    %99 = vector.broadcast %36 : vector<1x32xf32> to vector<8x32xf32>
    %100 = arith.addf %98, %99 : vector<8x32xf32>
    %101 = arith.addf %23, %100 : vector<8x32xf32>
    %cst_29 = arith.constant dense<0.000000e+00> : vector<8xf32>
    %102 = vector.multi_reduction <add>, %101, %cst_29 [1] : vector<8x32xf32> to vector<8xf32>
    %103 = vector.shape_cast %102 : vector<8xf32> to vector<8x1xf32>
    %cst_30 = arith.constant 3.200000e+01 : f32
    %104 = vector.broadcast %cst_30 : f32 to vector<8x1xf32>
    %105 = arith.divf %103, %104 : vector<8x1xf32>
    %106 = vector.broadcast %105 : vector<8x1xf32> to vector<8x32xf32>
    %107 = arith.subf %101, %106 : vector<8x32xf32>
    %108 = arith.mulf %107, %107 : vector<8x32xf32>
    %cst_31 = arith.constant dense<0.000000e+00> : vector<8xf32>
    %109 = vector.multi_reduction <add>, %108, %cst_31 [1] : vector<8x32xf32> to vector<8xf32>
    %110 = vector.shape_cast %109 : vector<8xf32> to vector<8x1xf32>
    %cst_32 = arith.constant 3.100000e+01 : f32
    %111 = vector.broadcast %cst_32 : f32 to vector<8x1xf32>
    %112 = arith.divf %110, %111 : vector<8x1xf32>
    %113 = math.sqrt %112 : vector<8x1xf32>
    %cst_33 = arith.constant 9.99999997E-7 : f32
    %114 = vector.broadcast %cst_33 : f32 to vector<8x1xf32>
    %115 = arith.addf %113, %114 : vector<8x1xf32>
    %116 = tpu.reciprocal %115 {approx = true} : vector<8x1xf32> -> vector<8x1xf32>
    %117 = vector.broadcast %105 : vector<8x1xf32> to vector<8x32xf32>
    %118 = arith.subf %101, %117 : vector<8x32xf32>
    %119 = vector.broadcast %116 : vector<8x1xf32> to vector<8x32xf32>
    %120 = arith.mulf %118, %119 : vector<8x32xf32>
    %121 = vector.broadcast %37 : vector<1x32xf32> to vector<8x32xf32>
    %122 = arith.mulf %120, %121 : vector<8x32xf32>
    %123 = vector.broadcast %38 : vector<1x32xf32> to vector<8x32xf32>
    %124 = arith.addf %122, %123 : vector<8x32xf32>
    %c34 = arith.constant 34 : index
    %c0_34 = arith.constant 0 : index
    %125 = vector.load %arg7[%c34, %c0_34] : memref<272x128xf32, #tpu.memory_space<vmem>>, vector<32x96xf32>
    %c66 = arith.constant 66 : index
    %c0_35 = arith.constant 0 : index
    %126 = vector.load %arg7[%c66, %c0_35] : memref<272x128xf32, #tpu.memory_space<vmem>>, vector<1x96xf32>
    %c34_36 = arith.constant 34 : index
    %c96_37 = arith.constant 96 : index
    %127 = vector.load %arg7[%c34_36, %c96_37] : memref<272x128xf32, #tpu.memory_space<vmem>>, vector<32x32xf32>
    %c66_38 = arith.constant 66 : index
    %c96_39 = arith.constant 96 : index
    %128 = vector.load %arg7[%c66_38, %c96_39] : memref<272x128xf32, #tpu.memory_space<vmem>>, vector<1x32xf32>
    %c67 = arith.constant 67 : index
    %c0_40 = arith.constant 0 : index
    %129 = vector.load %arg7[%c67, %c0_40] : memref<272x128xf32, #tpu.memory_space<vmem>>, vector<1x32xf32>
    %c67_41 = arith.constant 67 : index
    %c32_42 = arith.constant 32 : index
    %130 = vector.load %arg7[%c67_41, %c32_42] : memref<272x128xf32, #tpu.memory_space<vmem>>, vector<1x32xf32>
    %131 = vector.extract_strided_slice %125 {offsets = [0, 0], sizes = [32, 32], strides = [1, 1]} : vector<32x96xf32> to vector<32x32xf32>
    %cst_43 = arith.constant dense<0.000000e+00> : vector<8x32xf32>
    %132 = tpu.matmul %124, %131, %cst_43 {dimension_numbers = #tpu.dot_dimension_numbers<[1], [0], [0], [1], [0, 0, 1, 1], [], []>} : vector<8x32xf32>, vector<32x32xf32>, vector<8x32xf32> -> vector<8x32xf32>
    %133 = vector.extract_strided_slice %126 {offsets = [0, 0], sizes = [1, 32], strides = [1, 1]} : vector<1x96xf32> to vector<1x32xf32>
    %134 = vector.broadcast %133 : vector<1x32xf32> to vector<8x32xf32>
    %135 = arith.addf %132, %134 : vector<8x32xf32>
    %136 = vector.extract_strided_slice %125 {offsets = [0, 32], sizes = [32, 64], strides = [1, 1]} : vector<32x96xf32> to vector<32x64xf32>
    %cst_44 = arith.constant dense<0.000000e+00> : vector<8x64xf32>
    %137 = tpu.matmul %32, %136, %cst_44 {dimension_numbers = #tpu.dot_dimension_numbers<[1], [0], [0], [1], [0, 0, 1, 1], [], []>} : vector<8x32xf32>, vector<32x64xf32>, vector<8x64xf32> -> vector<8x64xf32>
    %138 = vector.extract_strided_slice %126 {offsets = [0, 32], sizes = [1, 64], strides = [1, 1]} : vector<1x96xf32> to vector<1x64xf32>
    %139 = vector.broadcast %138 : vector<1x64xf32> to vector<8x64xf32>
    %140 = arith.addf %137, %139 : vector<8x64xf32>
    %141 = vector.extract_strided_slice %140 {offsets = [0, 0], sizes = [8, 32], strides = [1, 1]} : vector<8x64xf32> to vector<8x32xf32>
    %142 = vector.extract_strided_slice %140 {offsets = [0, 32], sizes = [8, 32], strides = [1, 1]} : vector<8x64xf32> to vector<8x32xf32>
    %143 = vector.extract_strided_slice %135 {offsets = [0, 0], sizes = [8, 8], strides = [1, 1]} : vector<8x32xf32> to vector<8x8xf32>
    %144 = vector.extract_strided_slice %135 {offsets = [0, 8], sizes = [8, 8], strides = [1, 1]} : vector<8x32xf32> to vector<8x8xf32>
    %145 = vector.extract_strided_slice %135 {offsets = [0, 16], sizes = [8, 8], strides = [1, 1]} : vector<8x32xf32> to vector<8x8xf32>
    %146 = vector.extract_strided_slice %135 {offsets = [0, 24], sizes = [8, 8], strides = [1, 1]} : vector<8x32xf32> to vector<8x8xf32>
    %147 = vector.shape_cast %143 : vector<8x8xf32> to vector<1x8x8xf32>
    %148 = vector.shape_cast %144 : vector<8x8xf32> to vector<1x8x8xf32>
    %149 = vector.shape_cast %145 : vector<8x8xf32> to vector<1x8x8xf32>
    %150 = vector.shape_cast %146 : vector<8x8xf32> to vector<1x8x8xf32>
    %151 = tpu.concatenate %147, %148, %149, %150 in 0 : vector<1x8x8xf32>, vector<1x8x8xf32>, vector<1x8x8xf32>, vector<1x8x8xf32> -> vector<4x8x8xf32>
    %152 = vector.extract_strided_slice %141 {offsets = [0, 0], sizes = [8, 8], strides = [1, 1]} : vector<8x32xf32> to vector<8x8xf32>
    %153 = vector.extract_strided_slice %141 {offsets = [0, 8], sizes = [8, 8], strides = [1, 1]} : vector<8x32xf32> to vector<8x8xf32>
    %154 = vector.extract_strided_slice %141 {offsets = [0, 16], sizes = [8, 8], strides = [1, 1]} : vector<8x32xf32> to vector<8x8xf32>
    %155 = vector.extract_strided_slice %141 {offsets = [0, 24], sizes = [8, 8], strides = [1, 1]} : vector<8x32xf32> to vector<8x8xf32>
    %156 = vector.shape_cast %152 : vector<8x8xf32> to vector<1x8x8xf32>
    %157 = vector.shape_cast %153 : vector<8x8xf32> to vector<1x8x8xf32>
    %158 = vector.shape_cast %154 : vector<8x8xf32> to vector<1x8x8xf32>
    %159 = vector.shape_cast %155 : vector<8x8xf32> to vector<1x8x8xf32>
    %160 = tpu.concatenate %156, %157, %158, %159 in 0 : vector<1x8x8xf32>, vector<1x8x8xf32>, vector<1x8x8xf32>, vector<1x8x8xf32> -> vector<4x8x8xf32>
    %161 = vector.extract_strided_slice %142 {offsets = [0, 0], sizes = [8, 8], strides = [1, 1]} : vector<8x32xf32> to vector<8x8xf32>
    %162 = vector.extract_strided_slice %142 {offsets = [0, 8], sizes = [8, 8], strides = [1, 1]} : vector<8x32xf32> to vector<8x8xf32>
    %163 = vector.extract_strided_slice %142 {offsets = [0, 16], sizes = [8, 8], strides = [1, 1]} : vector<8x32xf32> to vector<8x8xf32>
    %164 = vector.extract_strided_slice %142 {offsets = [0, 24], sizes = [8, 8], strides = [1, 1]} : vector<8x32xf32> to vector<8x8xf32>
    %165 = vector.shape_cast %161 : vector<8x8xf32> to vector<1x8x8xf32>
    %166 = vector.shape_cast %162 : vector<8x8xf32> to vector<1x8x8xf32>
    %167 = vector.shape_cast %163 : vector<8x8xf32> to vector<1x8x8xf32>
    %168 = vector.shape_cast %164 : vector<8x8xf32> to vector<1x8x8xf32>
    %169 = tpu.concatenate %165, %166, %167, %168 in 0 : vector<1x8x8xf32>, vector<1x8x8xf32>, vector<1x8x8xf32>, vector<1x8x8xf32> -> vector<4x8x8xf32>
    %cst_45 = arith.constant dense<0.000000e+00> : vector<4x8x8xf32>
    %170 = tpu.matmul %151, %160, %cst_45 {dimension_numbers = #tpu.dot_dimension_numbers<[2], [2], [1], [1], [0, 0, 0, 1, 1, 1], [0], [0]>} : vector<4x8x8xf32>, vector<4x8x8xf32>, vector<4x8x8xf32> -> vector<4x8x8xf32>
    %cst_46 = arith.constant dense<0xFF800000> : vector<4x8xf32>
    %171 = vector.multi_reduction <maximumf>, %170, %cst_46 [2] : vector<4x8x8xf32> to vector<4x8xf32>
    %172 = vector.shape_cast %171 : vector<4x8xf32> to vector<4x8x1xf32>
    %173 = vector.broadcast %172 : vector<4x8x1xf32> to vector<4x8x8xf32>
    %174 = arith.subf %170, %173 : vector<4x8x8xf32>
    %175 = math.exp %174 : vector<4x8x8xf32>
    %cst_47 = arith.constant dense<0.000000e+00> : vector<4x8xf32>
    %176 = vector.multi_reduction <add>, %175, %cst_47 [2] : vector<4x8x8xf32> to vector<4x8xf32>
    %177 = vector.shape_cast %176 : vector<4x8xf32> to vector<4x8x1xf32>
    %178 = tpu.reciprocal %177 {approx = true} : vector<4x8x1xf32> -> vector<4x8x1xf32>
    %179 = vector.broadcast %178 : vector<4x8x1xf32> to vector<4x8x8xf32>
    %180 = arith.mulf %175, %179 : vector<4x8x8xf32>
    %cst_48 = arith.constant dense<0.000000e+00> : vector<4x8x8xf32>
    %181 = tpu.matmul %180, %169, %cst_48 {dimension_numbers = #tpu.dot_dimension_numbers<[2], [1], [1], [2], [0, 0, 0, 1, 1, 2], [0], [0]>} : vector<4x8x8xf32>, vector<4x8x8xf32>, vector<4x8x8xf32> -> vector<4x8x8xf32>
    %182 = vector.extract_strided_slice %181 {offsets = [0, 0, 0], sizes = [1, 8, 8], strides = [1, 1, 1]} : vector<4x8x8xf32> to vector<1x8x8xf32>
    %183 = vector.shape_cast %182 : vector<1x8x8xf32> to vector<8x8xf32>
    %184 = vector.extract_strided_slice %181 {offsets = [1, 0, 0], sizes = [1, 8, 8], strides = [1, 1, 1]} : vector<4x8x8xf32> to vector<1x8x8xf32>
    %185 = vector.shape_cast %184 : vector<1x8x8xf32> to vector<8x8xf32>
    %186 = vector.extract_strided_slice %181 {offsets = [2, 0, 0], sizes = [1, 8, 8], strides = [1, 1, 1]} : vector<4x8x8xf32> to vector<1x8x8xf32>
    %187 = vector.shape_cast %186 : vector<1x8x8xf32> to vector<8x8xf32>
    %188 = vector.extract_strided_slice %181 {offsets = [3, 0, 0], sizes = [1, 8, 8], strides = [1, 1, 1]} : vector<4x8x8xf32> to vector<1x8x8xf32>
    %189 = vector.shape_cast %188 : vector<1x8x8xf32> to vector<8x8xf32>
    %190 = tpu.concatenate %183, %185, %187, %189 in 1 : vector<8x8xf32>, vector<8x8xf32>, vector<8x8xf32>, vector<8x8xf32> -> vector<8x32xf32>
    %cst_49 = arith.constant dense<0.000000e+00> : vector<8x32xf32>
    %191 = tpu.matmul %190, %127, %cst_49 {dimension_numbers = #tpu.dot_dimension_numbers<[1], [0], [0], [1], [0, 0, 1, 1], [], []>} : vector<8x32xf32>, vector<32x32xf32>, vector<8x32xf32> -> vector<8x32xf32>
    %192 = vector.broadcast %128 : vector<1x32xf32> to vector<8x32xf32>
    %193 = arith.addf %191, %192 : vector<8x32xf32>
    %194 = arith.addf %124, %193 : vector<8x32xf32>
    %cst_50 = arith.constant dense<0.000000e+00> : vector<8xf32>
    %195 = vector.multi_reduction <add>, %194, %cst_50 [1] : vector<8x32xf32> to vector<8xf32>
    %196 = vector.shape_cast %195 : vector<8xf32> to vector<8x1xf32>
    %cst_51 = arith.constant 3.200000e+01 : f32
    %197 = vector.broadcast %cst_51 : f32 to vector<8x1xf32>
    %198 = arith.divf %196, %197 : vector<8x1xf32>
    %199 = vector.broadcast %198 : vector<8x1xf32> to vector<8x32xf32>
    %200 = arith.subf %194, %199 : vector<8x32xf32>
    %201 = arith.mulf %200, %200 : vector<8x32xf32>
    %cst_52 = arith.constant dense<0.000000e+00> : vector<8xf32>
    %202 = vector.multi_reduction <add>, %201, %cst_52 [1] : vector<8x32xf32> to vector<8xf32>
    %203 = vector.shape_cast %202 : vector<8xf32> to vector<8x1xf32>
    %cst_53 = arith.constant 3.100000e+01 : f32
    %204 = vector.broadcast %cst_53 : f32 to vector<8x1xf32>
    %205 = arith.divf %203, %204 : vector<8x1xf32>
    %206 = math.sqrt %205 : vector<8x1xf32>
    %cst_54 = arith.constant 9.99999997E-7 : f32
    %207 = vector.broadcast %cst_54 : f32 to vector<8x1xf32>
    %208 = arith.addf %206, %207 : vector<8x1xf32>
    %209 = tpu.reciprocal %208 {approx = true} : vector<8x1xf32> -> vector<8x1xf32>
    %210 = vector.broadcast %198 : vector<8x1xf32> to vector<8x32xf32>
    %211 = arith.subf %194, %210 : vector<8x32xf32>
    %212 = vector.broadcast %209 : vector<8x1xf32> to vector<8x32xf32>
    %213 = arith.mulf %211, %212 : vector<8x32xf32>
    %214 = vector.broadcast %129 : vector<1x32xf32> to vector<8x32xf32>
    %215 = arith.mulf %213, %214 : vector<8x32xf32>
    %216 = vector.broadcast %130 : vector<1x32xf32> to vector<8x32xf32>
    %217 = arith.addf %215, %216 : vector<8x32xf32>
    %c68 = arith.constant 68 : index
    %c32_55 = arith.constant 32 : index
    %218 = vector.load %arg7[%c68, %c32_55] : memref<272x128xf32, #tpu.memory_space<vmem>>, vector<32x64xf32>
    %c132 = arith.constant 132 : index
    %c0_56 = arith.constant 0 : index
    %219 = vector.load %arg7[%c132, %c0_56] : memref<272x128xf32, #tpu.memory_space<vmem>>, vector<1x64xf32>
    %c68_57 = arith.constant 68 : index
    %c0_58 = arith.constant 0 : index
    %220 = vector.load %arg7[%c68_57, %c0_58] : memref<272x128xf32, #tpu.memory_space<vmem>>, vector<64x32xf32>
    %c132_59 = arith.constant 132 : index
    %c64 = arith.constant 64 : index
    %221 = vector.load %arg7[%c132_59, %c64] : memref<272x128xf32, #tpu.memory_space<vmem>>, vector<1x32xf32>
    %c132_60 = arith.constant 132 : index
    %c96_61 = arith.constant 96 : index
    %222 = vector.load %arg7[%c132_60, %c96_61] : memref<272x128xf32, #tpu.memory_space<vmem>>, vector<1x32xf32>
    %c133 = arith.constant 133 : index
    %c0_62 = arith.constant 0 : index
    %223 = vector.load %arg7[%c133, %c0_62] : memref<272x128xf32, #tpu.memory_space<vmem>>, vector<1x32xf32>
    %cst_63 = arith.constant dense<0.000000e+00> : vector<8x64xf32>
    %224 = tpu.matmul %217, %218, %cst_63 {dimension_numbers = #tpu.dot_dimension_numbers<[1], [0], [0], [1], [0, 0, 1, 1], [], []>} : vector<8x32xf32>, vector<32x64xf32>, vector<8x64xf32> -> vector<8x64xf32>
    %225 = vector.broadcast %219 : vector<1x64xf32> to vector<8x64xf32>
    %226 = arith.addf %224, %225 : vector<8x64xf32>
    %cst_64 = arith.constant 0.000000e+00 : f32
    %227 = vector.broadcast %cst_64 : f32 to vector<8x64xf32>
    %228 = arith.maximumf %226, %227 : vector<8x64xf32>
    %cst_65 = arith.constant dense<0.000000e+00> : vector<8x32xf32>
    %229 = tpu.matmul %228, %220, %cst_65 {dimension_numbers = #tpu.dot_dimension_numbers<[1], [0], [0], [1], [0, 0, 1, 1], [], []>} : vector<8x64xf32>, vector<64x32xf32>, vector<8x32xf32> -> vector<8x32xf32>
    %230 = vector.broadcast %221 : vector<1x32xf32> to vector<8x32xf32>
    %231 = arith.addf %229, %230 : vector<8x32xf32>
    %232 = arith.addf %217, %231 : vector<8x32xf32>
    %cst_66 = arith.constant dense<0.000000e+00> : vector<8xf32>
    %233 = vector.multi_reduction <add>, %232, %cst_66 [1] : vector<8x32xf32> to vector<8xf32>
    %234 = vector.shape_cast %233 : vector<8xf32> to vector<8x1xf32>
    %cst_67 = arith.constant 3.200000e+01 : f32
    %235 = vector.broadcast %cst_67 : f32 to vector<8x1xf32>
    %236 = arith.divf %234, %235 : vector<8x1xf32>
    %237 = vector.broadcast %236 : vector<8x1xf32> to vector<8x32xf32>
    %238 = arith.subf %232, %237 : vector<8x32xf32>
    %239 = arith.mulf %238, %238 : vector<8x32xf32>
    %cst_68 = arith.constant dense<0.000000e+00> : vector<8xf32>
    %240 = vector.multi_reduction <add>, %239, %cst_68 [1] : vector<8x32xf32> to vector<8xf32>
    %241 = vector.shape_cast %240 : vector<8xf32> to vector<8x1xf32>
    %cst_69 = arith.constant 3.100000e+01 : f32
    %242 = vector.broadcast %cst_69 : f32 to vector<8x1xf32>
    %243 = arith.divf %241, %242 : vector<8x1xf32>
    %244 = math.sqrt %243 : vector<8x1xf32>
    %cst_70 = arith.constant 9.99999997E-7 : f32
    %245 = vector.broadcast %cst_70 : f32 to vector<8x1xf32>
    %246 = arith.addf %244, %245 : vector<8x1xf32>
    %247 = tpu.reciprocal %246 {approx = true} : vector<8x1xf32> -> vector<8x1xf32>
    %248 = vector.broadcast %236 : vector<8x1xf32> to vector<8x32xf32>
    %249 = arith.subf %232, %248 : vector<8x32xf32>
    %250 = vector.broadcast %247 : vector<8x1xf32> to vector<8x32xf32>
    %251 = arith.mulf %249, %250 : vector<8x32xf32>
    %252 = vector.broadcast %222 : vector<1x32xf32> to vector<8x32xf32>
    %253 = arith.mulf %251, %252 : vector<8x32xf32>
    %254 = vector.broadcast %223 : vector<1x32xf32> to vector<8x32xf32>
    %255 = arith.addf %253, %254 : vector<8x32xf32>
    %c134 = arith.constant 134 : index
    %c0_71 = arith.constant 0 : index
    %256 = vector.load %arg7[%c134, %c0_71] : memref<272x128xf32, #tpu.memory_space<vmem>>, vector<32x96xf32>
    %c166 = arith.constant 166 : index
    %c0_72 = arith.constant 0 : index
    %257 = vector.load %arg7[%c166, %c0_72] : memref<272x128xf32, #tpu.memory_space<vmem>>, vector<1x96xf32>
    %c134_73 = arith.constant 134 : index
    %c96_74 = arith.constant 96 : index
    %258 = vector.load %arg7[%c134_73, %c96_74] : memref<272x128xf32, #tpu.memory_space<vmem>>, vector<32x32xf32>
    %c166_75 = arith.constant 166 : index
    %c96_76 = arith.constant 96 : index
    %259 = vector.load %arg7[%c166_75, %c96_76] : memref<272x128xf32, #tpu.memory_space<vmem>>, vector<1x32xf32>
    %c167 = arith.constant 167 : index
    %c0_77 = arith.constant 0 : index
    %260 = vector.load %arg7[%c167, %c0_77] : memref<272x128xf32, #tpu.memory_space<vmem>>, vector<1x32xf32>
    %c167_78 = arith.constant 167 : index
    %c32_79 = arith.constant 32 : index
    %261 = vector.load %arg7[%c167_78, %c32_79] : memref<272x128xf32, #tpu.memory_space<vmem>>, vector<1x32xf32>
    %cst_80 = arith.constant dense<0.000000e+00> : vector<8x96xf32>
    %262 = tpu.matmul %255, %256, %cst_80 {dimension_numbers = #tpu.dot_dimension_numbers<[1], [0], [0], [1], [0, 0, 1, 1], [], []>} : vector<8x32xf32>, vector<32x96xf32>, vector<8x96xf32> -> vector<8x96xf32>
    %263 = vector.broadcast %257 : vector<1x96xf32> to vector<8x96xf32>
    %264 = arith.addf %262, %263 : vector<8x96xf32>
    %265 = vector.extract_strided_slice %264 {offsets = [0, 0], sizes = [8, 32], strides = [1, 1]} : vector<8x96xf32> to vector<8x32xf32>
    %266 = vector.extract_strided_slice %264 {offsets = [0, 32], sizes = [8, 32], strides = [1, 1]} : vector<8x96xf32> to vector<8x32xf32>
    %267 = vector.extract_strided_slice %264 {offsets = [0, 64], sizes = [8, 32], strides = [1, 1]} : vector<8x96xf32> to vector<8x32xf32>
    %268 = vector.extract_strided_slice %265 {offsets = [0, 0], sizes = [8, 8], strides = [1, 1]} : vector<8x32xf32> to vector<8x8xf32>
    %269 = vector.extract_strided_slice %265 {offsets = [0, 8], sizes = [8, 8], strides = [1, 1]} : vector<8x32xf32> to vector<8x8xf32>
    %270 = vector.extract_strided_slice %265 {offsets = [0, 16], sizes = [8, 8], strides = [1, 1]} : vector<8x32xf32> to vector<8x8xf32>
    %271 = vector.extract_strided_slice %265 {offsets = [0, 24], sizes = [8, 8], strides = [1, 1]} : vector<8x32xf32> to vector<8x8xf32>
    %272 = vector.shape_cast %268 : vector<8x8xf32> to vector<1x8x8xf32>
    %273 = vector.shape_cast %269 : vector<8x8xf32> to vector<1x8x8xf32>
    %274 = vector.shape_cast %270 : vector<8x8xf32> to vector<1x8x8xf32>
    %275 = vector.shape_cast %271 : vector<8x8xf32> to vector<1x8x8xf32>
    %276 = tpu.concatenate %272, %273, %274, %275 in 0 : vector<1x8x8xf32>, vector<1x8x8xf32>, vector<1x8x8xf32>, vector<1x8x8xf32> -> vector<4x8x8xf32>
    %277 = vector.extract_strided_slice %266 {offsets = [0, 0], sizes = [8, 8], strides = [1, 1]} : vector<8x32xf32> to vector<8x8xf32>
    %278 = vector.extract_strided_slice %266 {offsets = [0, 8], sizes = [8, 8], strides = [1, 1]} : vector<8x32xf32> to vector<8x8xf32>
    %279 = vector.extract_strided_slice %266 {offsets = [0, 16], sizes = [8, 8], strides = [1, 1]} : vector<8x32xf32> to vector<8x8xf32>
    %280 = vector.extract_strided_slice %266 {offsets = [0, 24], sizes = [8, 8], strides = [1, 1]} : vector<8x32xf32> to vector<8x8xf32>
    %281 = vector.shape_cast %277 : vector<8x8xf32> to vector<1x8x8xf32>
    %282 = vector.shape_cast %278 : vector<8x8xf32> to vector<1x8x8xf32>
    %283 = vector.shape_cast %279 : vector<8x8xf32> to vector<1x8x8xf32>
    %284 = vector.shape_cast %280 : vector<8x8xf32> to vector<1x8x8xf32>
    %285 = tpu.concatenate %281, %282, %283, %284 in 0 : vector<1x8x8xf32>, vector<1x8x8xf32>, vector<1x8x8xf32>, vector<1x8x8xf32> -> vector<4x8x8xf32>
    %286 = vector.extract_strided_slice %267 {offsets = [0, 0], sizes = [8, 8], strides = [1, 1]} : vector<8x32xf32> to vector<8x8xf32>
    %287 = vector.extract_strided_slice %267 {offsets = [0, 8], sizes = [8, 8], strides = [1, 1]} : vector<8x32xf32> to vector<8x8xf32>
    %288 = vector.extract_strided_slice %267 {offsets = [0, 16], sizes = [8, 8], strides = [1, 1]} : vector<8x32xf32> to vector<8x8xf32>
    %289 = vector.extract_strided_slice %267 {offsets = [0, 24], sizes = [8, 8], strides = [1, 1]} : vector<8x32xf32> to vector<8x8xf32>
    %290 = vector.shape_cast %286 : vector<8x8xf32> to vector<1x8x8xf32>
    %291 = vector.shape_cast %287 : vector<8x8xf32> to vector<1x8x8xf32>
    %292 = vector.shape_cast %288 : vector<8x8xf32> to vector<1x8x8xf32>
    %293 = vector.shape_cast %289 : vector<8x8xf32> to vector<1x8x8xf32>
    %294 = tpu.concatenate %290, %291, %292, %293 in 0 : vector<1x8x8xf32>, vector<1x8x8xf32>, vector<1x8x8xf32>, vector<1x8x8xf32> -> vector<4x8x8xf32>
    %cst_81 = arith.constant dense<0.000000e+00> : vector<4x8x8xf32>
    %295 = tpu.matmul %276, %285, %cst_81 {dimension_numbers = #tpu.dot_dimension_numbers<[2], [2], [1], [1], [0, 0, 0, 1, 1, 1], [0], [0]>} : vector<4x8x8xf32>, vector<4x8x8xf32>, vector<4x8x8xf32> -> vector<4x8x8xf32>
    %296 = vector.shape_cast %30 : vector<8x8xi1> to vector<1x8x8xi1>
    %cst_82 = arith.constant -1.000000e+30 : f32
    %297 = vector.shape_cast %296 : vector<1x8x8xi1> to vector<1x8x8xi1>
    %298 = vector.broadcast %297 : vector<1x8x8xi1> to vector<4x8x8xi1>
    %299 = vector.broadcast %cst_82 : f32 to vector<4x8x8xf32>
    %300 = arith.select %298, %299, %295 : vector<4x8x8xi1>, vector<4x8x8xf32>
    %cst_83 = arith.constant dense<0xFF800000> : vector<4x8xf32>
    %301 = vector.multi_reduction <maximumf>, %300, %cst_83 [2] : vector<4x8x8xf32> to vector<4x8xf32>
    %302 = vector.shape_cast %301 : vector<4x8xf32> to vector<4x8x1xf32>
    %303 = vector.broadcast %302 : vector<4x8x1xf32> to vector<4x8x8xf32>
    %304 = arith.subf %300, %303 : vector<4x8x8xf32>
    %305 = math.exp %304 : vector<4x8x8xf32>
    %cst_84 = arith.constant dense<0.000000e+00> : vector<4x8xf32>
    %306 = vector.multi_reduction <add>, %305, %cst_84 [2] : vector<4x8x8xf32> to vector<4x8xf32>
    %307 = vector.shape_cast %306 : vector<4x8xf32> to vector<4x8x1xf32>
    %308 = tpu.reciprocal %307 {approx = true} : vector<4x8x1xf32> -> vector<4x8x1xf32>
    %309 = vector.broadcast %308 : vector<4x8x1xf32> to vector<4x8x8xf32>
    %310 = arith.mulf %305, %309 : vector<4x8x8xf32>
    %cst_85 = arith.constant dense<0.000000e+00> : vector<4x8x8xf32>
    %311 = tpu.matmul %310, %294, %cst_85 {dimension_numbers = #tpu.dot_dimension_numbers<[2], [1], [1], [2], [0, 0, 0, 1, 1, 2], [0], [0]>} : vector<4x8x8xf32>, vector<4x8x8xf32>, vector<4x8x8xf32> -> vector<4x8x8xf32>
    %312 = vector.extract_strided_slice %311 {offsets = [0, 0, 0], sizes = [1, 8, 8], strides = [1, 1, 1]} : vector<4x8x8xf32> to vector<1x8x8xf32>
    %313 = vector.shape_cast %312 : vector<1x8x8xf32> to vector<8x8xf32>
    %314 = vector.extract_strided_slice %311 {offsets = [1, 0, 0], sizes = [1, 8, 8], strides = [1, 1, 1]} : vector<4x8x8xf32> to vector<1x8x8xf32>
    %315 = vector.shape_cast %314 : vector<1x8x8xf32> to vector<8x8xf32>
    %316 = vector.extract_strided_slice %311 {offsets = [2, 0, 0], sizes = [1, 8, 8], strides = [1, 1, 1]} : vector<4x8x8xf32> to vector<1x8x8xf32>
    %317 = vector.shape_cast %316 : vector<1x8x8xf32> to vector<8x8xf32>
    %318 = vector.extract_strided_slice %311 {offsets = [3, 0, 0], sizes = [1, 8, 8], strides = [1, 1, 1]} : vector<4x8x8xf32> to vector<1x8x8xf32>
    %319 = vector.shape_cast %318 : vector<1x8x8xf32> to vector<8x8xf32>
    %320 = tpu.concatenate %313, %315, %317, %319 in 1 : vector<8x8xf32>, vector<8x8xf32>, vector<8x8xf32>, vector<8x8xf32> -> vector<8x32xf32>
    %cst_86 = arith.constant dense<0.000000e+00> : vector<8x32xf32>
    %321 = tpu.matmul %320, %258, %cst_86 {dimension_numbers = #tpu.dot_dimension_numbers<[1], [0], [0], [1], [0, 0, 1, 1], [], []>} : vector<8x32xf32>, vector<32x32xf32>, vector<8x32xf32> -> vector<8x32xf32>
    %322 = vector.broadcast %259 : vector<1x32xf32> to vector<8x32xf32>
    %323 = arith.addf %321, %322 : vector<8x32xf32>
    %324 = arith.addf %255, %323 : vector<8x32xf32>
    %cst_87 = arith.constant dense<0.000000e+00> : vector<8xf32>
    %325 = vector.multi_reduction <add>, %324, %cst_87 [1] : vector<8x32xf32> to vector<8xf32>
    %326 = vector.shape_cast %325 : vector<8xf32> to vector<8x1xf32>
    %cst_88 = arith.constant 3.200000e+01 : f32
    %327 = vector.broadcast %cst_88 : f32 to vector<8x1xf32>
    %328 = arith.divf %326, %327 : vector<8x1xf32>
    %329 = vector.broadcast %328 : vector<8x1xf32> to vector<8x32xf32>
    %330 = arith.subf %324, %329 : vector<8x32xf32>
    %331 = arith.mulf %330, %330 : vector<8x32xf32>
    %cst_89 = arith.constant dense<0.000000e+00> : vector<8xf32>
    %332 = vector.multi_reduction <add>, %331, %cst_89 [1] : vector<8x32xf32> to vector<8xf32>
    %333 = vector.shape_cast %332 : vector<8xf32> to vector<8x1xf32>
    %cst_90 = arith.constant 3.100000e+01 : f32
    %334 = vector.broadcast %cst_90 : f32 to vector<8x1xf32>
    %335 = arith.divf %333, %334 : vector<8x1xf32>
    %336 = math.sqrt %335 : vector<8x1xf32>
    %cst_91 = arith.constant 9.99999997E-7 : f32
    %337 = vector.broadcast %cst_91 : f32 to vector<8x1xf32>
    %338 = arith.addf %336, %337 : vector<8x1xf32>
    %339 = tpu.reciprocal %338 {approx = true} : vector<8x1xf32> -> vector<8x1xf32>
    %340 = vector.broadcast %328 : vector<8x1xf32> to vector<8x32xf32>
    %341 = arith.subf %324, %340 : vector<8x32xf32>
    %342 = vector.broadcast %339 : vector<8x1xf32> to vector<8x32xf32>
    %343 = arith.mulf %341, %342 : vector<8x32xf32>
    %344 = vector.broadcast %260 : vector<1x32xf32> to vector<8x32xf32>
    %345 = arith.mulf %343, %344 : vector<8x32xf32>
    %346 = vector.broadcast %261 : vector<1x32xf32> to vector<8x32xf32>
    %347 = arith.addf %345, %346 : vector<8x32xf32>
    %c168 = arith.constant 168 : index
    %c0_92 = arith.constant 0 : index
    %348 = vector.load %arg7[%c168, %c0_92] : memref<272x128xf32, #tpu.memory_space<vmem>>, vector<32x96xf32>
    %c200 = arith.constant 200 : index
    %c0_93 = arith.constant 0 : index
    %349 = vector.load %arg7[%c200, %c0_93] : memref<272x128xf32, #tpu.memory_space<vmem>>, vector<1x96xf32>
    %c168_94 = arith.constant 168 : index
    %c96_95 = arith.constant 96 : index
    %350 = vector.load %arg7[%c168_94, %c96_95] : memref<272x128xf32, #tpu.memory_space<vmem>>, vector<32x32xf32>
    %c200_96 = arith.constant 200 : index
    %c96_97 = arith.constant 96 : index
    %351 = vector.load %arg7[%c200_96, %c96_97] : memref<272x128xf32, #tpu.memory_space<vmem>>, vector<1x32xf32>
    %c201 = arith.constant 201 : index
    %c0_98 = arith.constant 0 : index
    %352 = vector.load %arg7[%c201, %c0_98] : memref<272x128xf32, #tpu.memory_space<vmem>>, vector<1x32xf32>
    %c201_99 = arith.constant 201 : index
    %c32_100 = arith.constant 32 : index
    %353 = vector.load %arg7[%c201_99, %c32_100] : memref<272x128xf32, #tpu.memory_space<vmem>>, vector<1x32xf32>
    %354 = vector.extract_strided_slice %348 {offsets = [0, 0], sizes = [32, 32], strides = [1, 1]} : vector<32x96xf32> to vector<32x32xf32>
    %cst_101 = arith.constant dense<0.000000e+00> : vector<8x32xf32>
    %355 = tpu.matmul %347, %354, %cst_101 {dimension_numbers = #tpu.dot_dimension_numbers<[1], [0], [0], [1], [0, 0, 1, 1], [], []>} : vector<8x32xf32>, vector<32x32xf32>, vector<8x32xf32> -> vector<8x32xf32>
    %356 = vector.extract_strided_slice %349 {offsets = [0, 0], sizes = [1, 32], strides = [1, 1]} : vector<1x96xf32> to vector<1x32xf32>
    %357 = vector.broadcast %356 : vector<1x32xf32> to vector<8x32xf32>
    %358 = arith.addf %355, %357 : vector<8x32xf32>
    %359 = vector.extract_strided_slice %348 {offsets = [0, 32], sizes = [32, 64], strides = [1, 1]} : vector<32x96xf32> to vector<32x64xf32>
    %cst_102 = arith.constant dense<0.000000e+00> : vector<8x64xf32>
    %360 = tpu.matmul %32, %359, %cst_102 {dimension_numbers = #tpu.dot_dimension_numbers<[1], [0], [0], [1], [0, 0, 1, 1], [], []>} : vector<8x32xf32>, vector<32x64xf32>, vector<8x64xf32> -> vector<8x64xf32>
    %361 = vector.extract_strided_slice %349 {offsets = [0, 32], sizes = [1, 64], strides = [1, 1]} : vector<1x96xf32> to vector<1x64xf32>
    %362 = vector.broadcast %361 : vector<1x64xf32> to vector<8x64xf32>
    %363 = arith.addf %360, %362 : vector<8x64xf32>
    %364 = vector.extract_strided_slice %363 {offsets = [0, 0], sizes = [8, 32], strides = [1, 1]} : vector<8x64xf32> to vector<8x32xf32>
    %365 = vector.extract_strided_slice %363 {offsets = [0, 32], sizes = [8, 32], strides = [1, 1]} : vector<8x64xf32> to vector<8x32xf32>
    %366 = vector.extract_strided_slice %358 {offsets = [0, 0], sizes = [8, 8], strides = [1, 1]} : vector<8x32xf32> to vector<8x8xf32>
    %367 = vector.extract_strided_slice %358 {offsets = [0, 8], sizes = [8, 8], strides = [1, 1]} : vector<8x32xf32> to vector<8x8xf32>
    %368 = vector.extract_strided_slice %358 {offsets = [0, 16], sizes = [8, 8], strides = [1, 1]} : vector<8x32xf32> to vector<8x8xf32>
    %369 = vector.extract_strided_slice %358 {offsets = [0, 24], sizes = [8, 8], strides = [1, 1]} : vector<8x32xf32> to vector<8x8xf32>
    %370 = vector.shape_cast %366 : vector<8x8xf32> to vector<1x8x8xf32>
    %371 = vector.shape_cast %367 : vector<8x8xf32> to vector<1x8x8xf32>
    %372 = vector.shape_cast %368 : vector<8x8xf32> to vector<1x8x8xf32>
    %373 = vector.shape_cast %369 : vector<8x8xf32> to vector<1x8x8xf32>
    %374 = tpu.concatenate %370, %371, %372, %373 in 0 : vector<1x8x8xf32>, vector<1x8x8xf32>, vector<1x8x8xf32>, vector<1x8x8xf32> -> vector<4x8x8xf32>
    %375 = vector.extract_strided_slice %364 {offsets = [0, 0], sizes = [8, 8], strides = [1, 1]} : vector<8x32xf32> to vector<8x8xf32>
    %376 = vector.extract_strided_slice %364 {offsets = [0, 8], sizes = [8, 8], strides = [1, 1]} : vector<8x32xf32> to vector<8x8xf32>
    %377 = vector.extract_strided_slice %364 {offsets = [0, 16], sizes = [8, 8], strides = [1, 1]} : vector<8x32xf32> to vector<8x8xf32>
    %378 = vector.extract_strided_slice %364 {offsets = [0, 24], sizes = [8, 8], strides = [1, 1]} : vector<8x32xf32> to vector<8x8xf32>
    %379 = vector.shape_cast %375 : vector<8x8xf32> to vector<1x8x8xf32>
    %380 = vector.shape_cast %376 : vector<8x8xf32> to vector<1x8x8xf32>
    %381 = vector.shape_cast %377 : vector<8x8xf32> to vector<1x8x8xf32>
    %382 = vector.shape_cast %378 : vector<8x8xf32> to vector<1x8x8xf32>
    %383 = tpu.concatenate %379, %380, %381, %382 in 0 : vector<1x8x8xf32>, vector<1x8x8xf32>, vector<1x8x8xf32>, vector<1x8x8xf32> -> vector<4x8x8xf32>
    %384 = vector.extract_strided_slice %365 {offsets = [0, 0], sizes = [8, 8], strides = [1, 1]} : vector<8x32xf32> to vector<8x8xf32>
    %385 = vector.extract_strided_slice %365 {offsets = [0, 8], sizes = [8, 8], strides = [1, 1]} : vector<8x32xf32> to vector<8x8xf32>
    %386 = vector.extract_strided_slice %365 {offsets = [0, 16], sizes = [8, 8], strides = [1, 1]} : vector<8x32xf32> to vector<8x8xf32>
    %387 = vector.extract_strided_slice %365 {offsets = [0, 24], sizes = [8, 8], strides = [1, 1]} : vector<8x32xf32> to vector<8x8xf32>
    %388 = vector.shape_cast %384 : vector<8x8xf32> to vector<1x8x8xf32>
    %389 = vector.shape_cast %385 : vector<8x8xf32> to vector<1x8x8xf32>
    %390 = vector.shape_cast %386 : vector<8x8xf32> to vector<1x8x8xf32>
    %391 = vector.shape_cast %387 : vector<8x8xf32> to vector<1x8x8xf32>
    %392 = tpu.concatenate %388, %389, %390, %391 in 0 : vector<1x8x8xf32>, vector<1x8x8xf32>, vector<1x8x8xf32>, vector<1x8x8xf32> -> vector<4x8x8xf32>
    %cst_103 = arith.constant dense<0.000000e+00> : vector<4x8x8xf32>
    %393 = tpu.matmul %374, %383, %cst_103 {dimension_numbers = #tpu.dot_dimension_numbers<[2], [2], [1], [1], [0, 0, 0, 1, 1, 1], [0], [0]>} : vector<4x8x8xf32>, vector<4x8x8xf32>, vector<4x8x8xf32> -> vector<4x8x8xf32>
    %cst_104 = arith.constant dense<0xFF800000> : vector<4x8xf32>
    %394 = vector.multi_reduction <maximumf>, %393, %cst_104 [2] : vector<4x8x8xf32> to vector<4x8xf32>
    %395 = vector.shape_cast %394 : vector<4x8xf32> to vector<4x8x1xf32>
    %396 = vector.broadcast %395 : vector<4x8x1xf32> to vector<4x8x8xf32>
    %397 = arith.subf %393, %396 : vector<4x8x8xf32>
    %398 = math.exp %397 : vector<4x8x8xf32>
    %cst_105 = arith.constant dense<0.000000e+00> : vector<4x8xf32>
    %399 = vector.multi_reduction <add>, %398, %cst_105 [2] : vector<4x8x8xf32> to vector<4x8xf32>
    %400 = vector.shape_cast %399 : vector<4x8xf32> to vector<4x8x1xf32>
    %401 = tpu.reciprocal %400 {approx = true} : vector<4x8x1xf32> -> vector<4x8x1xf32>
    %402 = vector.broadcast %401 : vector<4x8x1xf32> to vector<4x8x8xf32>
    %403 = arith.mulf %398, %402 : vector<4x8x8xf32>
    %cst_106 = arith.constant dense<0.000000e+00> : vector<4x8x8xf32>
    %404 = tpu.matmul %403, %392, %cst_106 {dimension_numbers = #tpu.dot_dimension_numbers<[2], [1], [1], [2], [0, 0, 0, 1, 1, 2], [0], [0]>} : vector<4x8x8xf32>, vector<4x8x8xf32>, vector<4x8x8xf32> -> vector<4x8x8xf32>
    %405 = vector.extract_strided_slice %404 {offsets = [0, 0, 0], sizes = [1, 8, 8], strides = [1, 1, 1]} : vector<4x8x8xf32> to vector<1x8x8xf32>
    %406 = vector.shape_cast %405 : vector<1x8x8xf32> to vector<8x8xf32>
    %407 = vector.extract_strided_slice %404 {offsets = [1, 0, 0], sizes = [1, 8, 8], strides = [1, 1, 1]} : vector<4x8x8xf32> to vector<1x8x8xf32>
    %408 = vector.shape_cast %407 : vector<1x8x8xf32> to vector<8x8xf32>
    %409 = vector.extract_strided_slice %404 {offsets = [2, 0, 0], sizes = [1, 8, 8], strides = [1, 1, 1]} : vector<4x8x8xf32> to vector<1x8x8xf32>
    %410 = vector.shape_cast %409 : vector<1x8x8xf32> to vector<8x8xf32>
    %411 = vector.extract_strided_slice %404 {offsets = [3, 0, 0], sizes = [1, 8, 8], strides = [1, 1, 1]} : vector<4x8x8xf32> to vector<1x8x8xf32>
    %412 = vector.shape_cast %411 : vector<1x8x8xf32> to vector<8x8xf32>
    %413 = tpu.concatenate %406, %408, %410, %412 in 1 : vector<8x8xf32>, vector<8x8xf32>, vector<8x8xf32>, vector<8x8xf32> -> vector<8x32xf32>
    %cst_107 = arith.constant dense<0.000000e+00> : vector<8x32xf32>
    %414 = tpu.matmul %413, %350, %cst_107 {dimension_numbers = #tpu.dot_dimension_numbers<[1], [0], [0], [1], [0, 0, 1, 1], [], []>} : vector<8x32xf32>, vector<32x32xf32>, vector<8x32xf32> -> vector<8x32xf32>
    %415 = vector.broadcast %351 : vector<1x32xf32> to vector<8x32xf32>
    %416 = arith.addf %414, %415 : vector<8x32xf32>
    %417 = arith.addf %347, %416 : vector<8x32xf32>
    %cst_108 = arith.constant dense<0.000000e+00> : vector<8xf32>
    %418 = vector.multi_reduction <add>, %417, %cst_108 [1] : vector<8x32xf32> to vector<8xf32>
    %419 = vector.shape_cast %418 : vector<8xf32> to vector<8x1xf32>
    %cst_109 = arith.constant 3.200000e+01 : f32
    %420 = vector.broadcast %cst_109 : f32 to vector<8x1xf32>
    %421 = arith.divf %419, %420 : vector<8x1xf32>
    %422 = vector.broadcast %421 : vector<8x1xf32> to vector<8x32xf32>
    %423 = arith.subf %417, %422 : vector<8x32xf32>
    %424 = arith.mulf %423, %423 : vector<8x32xf32>
    %cst_110 = arith.constant dense<0.000000e+00> : vector<8xf32>
    %425 = vector.multi_reduction <add>, %424, %cst_110 [1] : vector<8x32xf32> to vector<8xf32>
    %426 = vector.shape_cast %425 : vector<8xf32> to vector<8x1xf32>
    %cst_111 = arith.constant 3.100000e+01 : f32
    %427 = vector.broadcast %cst_111 : f32 to vector<8x1xf32>
    %428 = arith.divf %426, %427 : vector<8x1xf32>
    %429 = math.sqrt %428 : vector<8x1xf32>
    %cst_112 = arith.constant 9.99999997E-7 : f32
    %430 = vector.broadcast %cst_112 : f32 to vector<8x1xf32>
    %431 = arith.addf %429, %430 : vector<8x1xf32>
    %432 = tpu.reciprocal %431 {approx = true} : vector<8x1xf32> -> vector<8x1xf32>
    %433 = vector.broadcast %421 : vector<8x1xf32> to vector<8x32xf32>
    %434 = arith.subf %417, %433 : vector<8x32xf32>
    %435 = vector.broadcast %432 : vector<8x1xf32> to vector<8x32xf32>
    %436 = arith.mulf %434, %435 : vector<8x32xf32>
    %437 = vector.broadcast %352 : vector<1x32xf32> to vector<8x32xf32>
    %438 = arith.mulf %436, %437 : vector<8x32xf32>
    %439 = vector.broadcast %353 : vector<1x32xf32> to vector<8x32xf32>
    %440 = arith.addf %438, %439 : vector<8x32xf32>
    %c202 = arith.constant 202 : index
    %c32_113 = arith.constant 32 : index
    %441 = vector.load %arg7[%c202, %c32_113] : memref<272x128xf32, #tpu.memory_space<vmem>>, vector<32x64xf32>
    %c266 = arith.constant 266 : index
    %c0_114 = arith.constant 0 : index
    %442 = vector.load %arg7[%c266, %c0_114] : memref<272x128xf32, #tpu.memory_space<vmem>>, vector<1x64xf32>
    %c202_115 = arith.constant 202 : index
    %c0_116 = arith.constant 0 : index
    %443 = vector.load %arg7[%c202_115, %c0_116] : memref<272x128xf32, #tpu.memory_space<vmem>>, vector<64x32xf32>
    %c266_117 = arith.constant 266 : index
    %c64_118 = arith.constant 64 : index
    %444 = vector.load %arg7[%c266_117, %c64_118] : memref<272x128xf32, #tpu.memory_space<vmem>>, vector<1x32xf32>
    %c266_119 = arith.constant 266 : index
    %c96_120 = arith.constant 96 : index
    %445 = vector.load %arg7[%c266_119, %c96_120] : memref<272x128xf32, #tpu.memory_space<vmem>>, vector<1x32xf32>
    %c267 = arith.constant 267 : index
    %c0_121 = arith.constant 0 : index
    %446 = vector.load %arg7[%c267, %c0_121] : memref<272x128xf32, #tpu.memory_space<vmem>>, vector<1x32xf32>
    %cst_122 = arith.constant dense<0.000000e+00> : vector<8x64xf32>
    %447 = tpu.matmul %440, %441, %cst_122 {dimension_numbers = #tpu.dot_dimension_numbers<[1], [0], [0], [1], [0, 0, 1, 1], [], []>} : vector<8x32xf32>, vector<32x64xf32>, vector<8x64xf32> -> vector<8x64xf32>
    %448 = vector.broadcast %442 : vector<1x64xf32> to vector<8x64xf32>
    %449 = arith.addf %447, %448 : vector<8x64xf32>
    %cst_123 = arith.constant 0.000000e+00 : f32
    %450 = vector.broadcast %cst_123 : f32 to vector<8x64xf32>
    %451 = arith.maximumf %449, %450 : vector<8x64xf32>
    %cst_124 = arith.constant dense<0.000000e+00> : vector<8x32xf32>
    %452 = tpu.matmul %451, %443, %cst_124 {dimension_numbers = #tpu.dot_dimension_numbers<[1], [0], [0], [1], [0, 0, 1, 1], [], []>} : vector<8x64xf32>, vector<64x32xf32>, vector<8x32xf32> -> vector<8x32xf32>
    %453 = vector.broadcast %444 : vector<1x32xf32> to vector<8x32xf32>
    %454 = arith.addf %452, %453 : vector<8x32xf32>
    %455 = arith.addf %440, %454 : vector<8x32xf32>
    %cst_125 = arith.constant dense<0.000000e+00> : vector<8xf32>
    %456 = vector.multi_reduction <add>, %455, %cst_125 [1] : vector<8x32xf32> to vector<8xf32>
    %457 = vector.shape_cast %456 : vector<8xf32> to vector<8x1xf32>
    %cst_126 = arith.constant 3.200000e+01 : f32
    %458 = vector.broadcast %cst_126 : f32 to vector<8x1xf32>
    %459 = arith.divf %457, %458 : vector<8x1xf32>
    %460 = vector.broadcast %459 : vector<8x1xf32> to vector<8x32xf32>
    %461 = arith.subf %455, %460 : vector<8x32xf32>
    %462 = arith.mulf %461, %461 : vector<8x32xf32>
    %cst_127 = arith.constant dense<0.000000e+00> : vector<8xf32>
    %463 = vector.multi_reduction <add>, %462, %cst_127 [1] : vector<8x32xf32> to vector<8xf32>
    %464 = vector.shape_cast %463 : vector<8xf32> to vector<8x1xf32>
    %cst_128 = arith.constant 3.100000e+01 : f32
    %465 = vector.broadcast %cst_128 : f32 to vector<8x1xf32>
    %466 = arith.divf %464, %465 : vector<8x1xf32>
    %467 = math.sqrt %466 : vector<8x1xf32>
    %cst_129 = arith.constant 9.99999997E-7 : f32
    %468 = vector.broadcast %cst_129 : f32 to vector<8x1xf32>
    %469 = arith.addf %467, %468 : vector<8x1xf32>
    %470 = tpu.reciprocal %469 {approx = true} : vector<8x1xf32> -> vector<8x1xf32>
    %471 = vector.broadcast %459 : vector<8x1xf32> to vector<8x32xf32>
    %472 = arith.subf %455, %471 : vector<8x32xf32>
    %473 = vector.broadcast %470 : vector<8x1xf32> to vector<8x32xf32>
    %474 = arith.mulf %472, %473 : vector<8x32xf32>
    %475 = vector.broadcast %445 : vector<1x32xf32> to vector<8x32xf32>
    %476 = arith.mulf %474, %475 : vector<8x32xf32>
    %477 = vector.broadcast %446 : vector<1x32xf32> to vector<8x32xf32>
    %478 = arith.addf %476, %477 : vector<8x32xf32>
    %c0_130 = arith.constant 0 : index
    %c0_131 = arith.constant 0 : index
    %c0_132 = arith.constant 0 : index
    %479 = vector.load %arg8[%c0_130, %c0_131, %c0_132] : memref<1x8x32xf32, #tpu.memory_space<vmem>>, vector<1x8x32xf32>
    %480 = vector.shape_cast %479 : vector<1x8x32xf32> to vector<8x32xf32>
    %481 = vector.shape_cast %478 : vector<8x32xf32> to vector<1x8x32xf32>
    tpu.vector_store %arg8[%c0_130, %c0_131, %c0_132], %481 {strides = array<i32>} : memref<1x8x32xf32, #tpu.memory_space<vmem>>, vector<1x8x32xf32>,
    return
  }
  func.func @transform_0(%arg0: i32, %arg1: memref<2xi32, #tpu.memory_space<smem>>) -> (i32, i32, i32) {
    %c0_i32 = arith.constant 0 : i32
    %c0_i32_0 = arith.constant 0 : i32
    %c0_i32_1 = arith.constant 0 : i32
    return %arg0, %c0_i32, %c0_i32_0 : i32, i32, i32
  }
  func.func @transform_1(%arg0: i32, %arg1: memref<2xi32, #tpu.memory_space<smem>>) -> (i32, i32, i32) {
    %c0_i32 = arith.constant 0 : i32
    %c0_i32_0 = arith.constant 0 : i32
    %c0_i32_1 = arith.constant 0 : i32
    return %arg0, %c0_i32, %c0_i32_0 : i32, i32, i32
  }
  func.func @transform_2(%arg0: i32, %arg1: memref<2xi32, #tpu.memory_space<smem>>) -> (i32, i32) {
    %c0_i32 = arith.constant 0 : i32
    %c0_i32_0 = arith.constant 0 : i32
    %c0_i32_1 = arith.constant 0 : i32
    return %c0_i32, %c0_i32_0 : i32, i32
  }
  func.func @transform_3(%arg0: i32, %arg1: memref<2xi32, #tpu.memory_space<smem>>) -> (i32, i32) {
    %c0_i32 = arith.constant 0 : i32
    %c0_i32_0 = arith.constant 0 : i32
    %c0_i32_1 = arith.constant 0 : i32
    return %c0_i32, %c0_i32_0 : i32, i32
  }
  func.func @transform_4(%arg0: i32, %arg1: memref<2xi32, #tpu.memory_space<smem>>) -> (i32, i32, i32) {
    %c0_i32 = arith.constant 0 : i32
    %c0_i32_0 = arith.constant 0 : i32
    %c0_i32_1 = arith.constant 0 : i32
    return %arg0, %c0_i32, %c0_i32_0 : i32, i32, i32
  }
  func.func @transform_5(%arg0: i32, %arg1: memref<2xi32, #tpu.memory_space<smem>>) -> (i32, i32) {
    %c0_i32 = arith.constant 0 : i32
    %c0_i32_0 = arith.constant 0 : i32
    %c0_i32_1 = arith.constant 0 : i32
    return %c0_i32, %c0_i32_0 : i32, i32
  }
  func.func @transform_6(%arg0: i32, %arg1: memref<2xi32, #tpu.memory_space<smem>>) -> (i32, i32, i32) {
    %c0_i32 = arith.constant 0 : i32
    %c0_i32_0 = arith.constant 0 : i32
    %c0_i32_1 = arith.constant 0 : i32
    return %arg0, %c0_i32, %c0_i32_0 : i32, i32, i32
  }
}

</mosaic_0001>

<llo_original>
// kernel: decoder_forward.1
$region0: #{decoder_forward.1}
  #allocation0 [shape = 'u32[]', space=smem, size = 0x4, offset = 0x4, fixed_abs, tag = 'smem constant byte address 0x4 - core index']
  #allocation1 [shape = 'u32[72,128]{1,0:T(1,128)}', space=vmem, size = 0x9000, scoped, tag = 'internal scratch']
  #allocation2 [shape = 's32[1]{0}', space=sflag, size = 0x4, scoped, tag = 'scoped memory for decoder_forward.1']
  #allocation3 [shape = 'u8[512]{0}', space=smem, size = 0x200, scoped, tag = 'prefetched SMEM operand 0']
  %s0 = inlined_call_operand.vmem [shape: s32[2], index: 0, kind: input, shape index: {}]
  %s1 = inlined_call_operand.vmem [shape: s32[2,1,8], index: 1, kind: input, shape index: {}]
  %s2 = inlined_call_operand.vmem [shape: s32[2,8,1], index: 2, kind: input, shape index: {}]
  %s3 = inlined_call_operand.vmem [shape: f32[56,32], index: 3, kind: input, shape index: {}]
  %s4 = inlined_call_operand.vmem [shape: f32[8,32], index: 4, kind: input, shape index: {}]
  %s5 = inlined_call_operand.vmem [shape: f32[2,8,32], index: 5, kind: input, shape index: {}]
  %s6 = inlined_call_operand.vmem [shape: f32[272,128], index: 6, kind: input, shape index: {}]
  %s7 = inlined_call_operand.hbm [shape: f32[2,8,32], index: 7, kind: output, shape index: {}]
  %s8 = sld [smem:[#allocation0]]
  $region57: #{decoder_forward.1} parent=0
    _
  %s10 = ssub.s32 1, %s8
  %s11 = scalar_select 0, %s10, %s8
  %s13 = sshll.u32 %s0, 4
  %s14 = int_to_ptr.vmem [resolvable:$true] %s13
  %16 = dma.vmem_to_smem %s14, 16, [#allocation3], [#allocation2]
  %18 = dma.done [#allocation2], 16
  %19 = sfence
  $region1: #{decoder_forward.1} parent=0
    #allocation4 [shape = 'u8[8192]{0}', space=vmem, size = 0x2000, scoped, tag = 'output window, operand 0']
    #allocation5 [shape = 's32[2]{0}', space=sflag, size = 0x8, scoped, tag = 'scoped memory for decoder_forward.1']
    %20 = vsyncpa [#allocation5], 0
    %s21 = scalar_lea.sflag [#allocation5], 1
    %22 = vsyncpa %s21, 0
    loop: start=0, step=1, limit=4
    $region2: #{decoder_forward.1} parent=1 // loop_pre_header
      _
    $region3: #{decoder_forward.1} parent=1 // loop_header
      %s24 = sphi 0, %s28
      %p25 = scmp.ge.s32.totalorder %s24, 4
      %s34 = sphi 0, %s36
      %s37 = sphi 0, %s34
      %s38 = sphi 0, %s37
      %s54 = sphi 0, %s38
      %s60 = sphi 0, %s62
      %s63 = sphi 0, %s60
      %s64 = sphi 0, %s63
      %s80 = sphi 0, %s64
      %s84 = sphi 0, %s84
      %s86 = sphi 0, %s84
      %s87 = sphi 0, %s86
      %s101 = sphi 0, %s87
      %s105 = sphi 0, %s105
      %s107 = sphi 0, %s105
      %s108 = sphi 0, %s107
      %s122 = sphi 0, %s108
      %s128 = sphi 0, %s130
      %s131 = sphi 0, %s128
      %s132 = sphi 0, %s131
      %s148 = sphi 0, %s132
      %s152 = sphi 0, %s152
      %s154 = sphi 0, %s152
      %s155 = sphi 0, %s154
      %s169 = sphi 0, %s155
      %s175 = sphi 0, %s177
      %s178 = sphi 0, %s175
      %s179 = sphi 0, %s178
      %s195 = sphi 0, %s179
    $region4: #{decoder_forward.1} parent=1 // loop_header_branch
      %27 = sbr.rel (%p25) target = $region8
    $region5: #{decoder_forward.1} parent=1 // loop_body
      %s29 = ssub.s32 %s24, 1
      %s30 = ssub.s32 %s24, 2
      %s31 = sadd.s32 %s24, 1
      %s32 = ssub.s32 %s24, %s31
      %p33 = scmp.eq.s32.totalorder %s32, 0
      %s35 = sadd.s32 %s34, 1
      %s36 = scalar_select %p33, %s34, %s35
      %p39 = pneg %p33
      %p40 = scmp.eq.s32.totalorder %s24, 1
      %p41 = por %p39, %p40
      %p42 = scmp.ne.s32.totalorder %s34, %s37
      %p43 = scmp.eq.s32.totalorder %s24, 0
      %p44 = por %p42, %p43
      %p45 = scmp.ne.s32.totalorder %s34, %s37
      %p46 = scmp.eq.s32.totalorder %s29, 1
      %p47 = por %p45, %p46
      %p48 = scmp.ne.s32.totalorder %s37, %s38
      %p49 = scmp.eq.s32.totalorder %s29, 0
      %p50 = por %p48, %p49
      %p51 = scmp.ne.s32.totalorder %s37, %s38
      %p52 = scmp.eq.s32.totalorder %s30, 1
      %p53 = por %p51, %p52
      %p55 = scmp.ne.s32.totalorder %s38, %s54
      %p56 = scmp.eq.s32.totalorder %s30, 0
      %p57 = por %p55, %p56
      %s58 = ssub.s32 %s24, %s31
      %p59 = scmp.eq.s32.totalorder %s58, 0
      %s61 = sadd.s32 %s60, 1
      %s62 = scalar_select %p59, %s60, %s61
      %p65 = pneg %p59
      %p66 = scmp.eq.s32.totalorder %s24, 1
      %p67 = por %p65, %p66
      %p68 = scmp.ne.s32.totalorder %s60, %s63
      %p69 = scmp.eq.s32.totalorder %s24, 0
      %p70 = por %p68, %p69
      %p71 = scmp.ne.s32.totalorder %s60, %s63
      %p72 = scmp.eq.s32.totalorder %s29, 1
      %p73 = por %p71, %p72
      %p74 = scmp.ne.s32.totalorder %s63, %s64
      %p75 = scmp.eq.s32.totalorder %s29, 0
      %p76 = por %p74, %p75
      %p77 = scmp.ne.s32.totalorder %s63, %s64
      %p78 = scmp.eq.s32.totalorder %s30, 1
      %p79 = por %p77, %p78
      %p81 = scmp.ne.s32.totalorder %s64, %s80
      %p82 = scmp.eq.s32.totalorder %s30, 0
      %p83 = por %p81, %p82
      %s85 = sadd.s32 %s84, 1
      %p88 = scmp.eq.s32.totalorder %s24, 1
      %p89 = scmp.ne.s32.totalorder %s84, %s86
      %p90 = scmp.eq.s32.totalorder %s24, 0
      %p91 = por %p89, %p90
      %p92 = scmp.ne.s32.totalorder %s84, %s86
      %p93 = scmp.eq.s32.totalorder %s29, 1
      %p94 = por %p92, %p93
      %p95 = scmp.ne.s32.totalorder %s86, %s87
      %p96 = scmp.eq.s32.totalorder %s29, 0
      %p97 = por %p95, %p96
      %p98 = scmp.ne.s32.totalorder %s86, %s87
      %p99 = scmp.eq.s32.totalorder %s30, 1
      %p100 = por %p98, %p99
      %p102 = scmp.ne.s32.totalorder %s87, %s101
      %p103 = scmp.eq.s32.totalorder %s30, 0
      %p104 = por %p102, %p103
      %s106 = sadd.s32 %s105, 1
      %p109 = scmp.eq.s32.totalorder %s24, 1
      %p110 = scmp.ne.s32.totalorder %s105, %s107
      %p111 = scmp.eq.s32.totalorder %s24, 0
      %p112 = por %p110, %p111
      %p113 = scmp.ne.s32.totalorder %s105, %s107
      %p114 = scmp.eq.s32.totalorder %s29, 1
      %p115 = por %p113, %p114
      %p116 = scmp.ne.s32.totalorder %s107, %s108
      %p117 = scmp.eq.s32.totalorder %s29, 0
      %p118 = por %p116, %p117
      %p119 = scmp.ne.s32.totalorder %s107, %s108
      %p120 = scmp.eq.s32.totalorder %s30, 1
      %p121 = por %p119, %p120
      %p123 = scmp.ne.s32.totalorder %s108, %s122
      %p124 = scmp.eq.s32.totalorder %s30, 0
      %p125 = por %p123, %p124
      %s126 = ssub.s32 %s24, %s31
      %p127 = scmp.eq.s32.totalorder %s126, 0
      %s129 = sadd.s32 %s128, 1
      %s130 = scalar_select %p127, %s128, %s129
      %p133 = pneg %p127
      %p134 = scmp.eq.s32.totalorder %s24, 1
      %p135 = por %p133, %p134
      %p136 = scmp.ne.s32.totalorder %s128, %s131
      %p137 = scmp.eq.s32.totalorder %s24, 0
      %p138 = por %p136, %p137
      %p139 = scmp.ne.s32.totalorder %s128, %s131
      %p140 = scmp.eq.s32.totalorder %s29, 1
      %p141 = por %p139, %p140
      %p142 = scmp.ne.s32.totalorder %s131, %s132
      %p143 = scmp.eq.s32.totalorder %s29, 0
      %p144 = por %p142, %p143
      %p145 = scmp.ne.s32.totalorder %s131, %s132
      %p146 = scmp.eq.s32.totalorder %s30, 1
      %p147 = por %p145, %p146
      %p149 = scmp.ne.s32.totalorder %s132, %s148
      %p150 = scmp.eq.s32.totalorder %s30, 0
      %p151 = por %p149, %p150
      %s153 = sadd.s32 %s152, 1
      %p156 = scmp.eq.s32.totalorder %s24, 1
      %p157 = scmp.ne.s32.totalorder %s152, %s154
      %p158 = scmp.eq.s32.totalorder %s24, 0
      %p159 = por %p157, %p158
      %p160 = scmp.ne.s32.totalorder %s152, %s154
      %p161 = scmp.eq.s32.totalorder %s29, 1
      %p162 = por %p160, %p161
      %p163 = scmp.ne.s32.totalorder %s154, %s155
      %p164 = scmp.eq.s32.totalorder %s29, 0
      %p165 = por %p163, %p164
      %p166 = scmp.ne.s32.totalorder %s154, %s155
      %p167 = scmp.eq.s32.totalorder %s30, 1
      %p168 = por %p166, %p167
      %p170 = scmp.ne.s32.totalorder %s155, %s169
      %p171 = scmp.eq.s32.totalorder %s30, 0
      %p172 = por %p170, %p171
      %s173 = ssub.s32 %s24, %s31
      %p174 = scmp.eq.s32.totalorder %s173, 0
      %s176 = sadd.s32 %s175, 1
      %s177 = scalar_select %p174, %s175, %s176
      %p180 = pneg %p174
      %p181 = scmp.eq.s32.totalorder %s24, 1
      %p182 = por %p180, %p181
      %p183 = scmp.ne.s32.totalorder %s175, %s178
      %p184 = scmp.eq.s32.totalorder %s24, 0
      %p185 = por %p183, %p184
      %p186 = scmp.ne.s32.totalorder %s175, %s178
      %p187 = scmp.eq.s32.totalorder %s29, 1
      %p188 = por %p186, %p187
      %p189 = scmp.ne.s32.totalorder %s178, %s179
      %p190 = scmp.eq.s32.totalorder %s29, 0
      %p191 = por %p189, %p190
      %p192 = scmp.ne.s32.totalorder %s178, %s179
      %p193 = scmp.eq.s32.totalorder %s30, 1
      %p194 = por %p192, %p193
      %p196 = scmp.ne.s32.totalorder %s179, %s195
      %p197 = scmp.eq.s32.totalorder %s30, 0
      %p198 = por %p196, %p197
      %p199 = scmp.le.s32.totalorder 1, %s24
      %p200 = scmp.lt.s32.totalorder %s24, 3
      %p201 = pnand %p199, %p200
      %p202 = pneg %p201
      // Predicated region
      $region9: #{decoder_forward.1} parent=5 // pred_check
        _
      $region10: #{decoder_forward.1} parent=5 // pred_check_branch
        %204 = sbr.rel (%p201) target = $region12
      $region11: #{decoder_forward.1} parent=5 // pred_region
        %s205 = ssub.s32 %s24, 1
        // Predicated region
        $region13: #{decoder_forward.1} parent=11 // pred_check
          %p206 = pneg %p97
        $region14: #{decoder_forward.1} parent=11 // pred_check_branch
          %208 = sbr.rel (%p206) target = $region16
        $region15: #{decoder_forward.1} parent=11 // pred_region
          _
        $region16: #{decoder_forward.1} parent=11 // pred_fallthru
          _
        // Predicated region
        $region17: #{decoder_forward.1} parent=11 // pred_check
          %p209 = pneg %p118
        $region18: #{decoder_forward.1} parent=11 // pred_check_branch
          %211 = sbr.rel (%p209) target = $region20
        $region19: #{decoder_forward.1} parent=11 // pred_region
          _
        $region20: #{decoder_forward.1} parent=11 // pred_fallthru
          _
        // Predicated region
        $region21: #{decoder_forward.1} parent=11 // pred_check
          %p212 = pneg %p165
        $region22: #{decoder_forward.1} parent=11 // pred_check_branch
          %214 = sbr.rel (%p212) target = $region24
        $region23: #{decoder_forward.1} parent=11 // pred_region
          _
        $region24: #{decoder_forward.1} parent=11 // pred_fallthru
          _
      $region12: #{decoder_forward.1} parent=5 // pred_fallthru
        _
      %p215 = scmp.lt.s32.totalorder %s24, 2
      // Predicated region
      $region25: #{decoder_forward.1} parent=5 // pred_check
        %p216 = pneg %p215
      $region26: #{decoder_forward.1} parent=5 // pred_check_branch
        %218 = sbr.rel (%p216) target = $region28
      $region27: #{decoder_forward.1} parent=5 // pred_region
        // Predicated region
        $region29: #{decoder_forward.1} parent=27 // pred_check
          %p219 = pneg %p44
        $region30: #{decoder_forward.1} parent=27 // pred_check_branch
          %221 = sbr.rel (%p219) target = $region32
        $region31: #{decoder_forward.1} parent=27 // pred_region
          %p222 = scmp.lt.s32.totalorder %s24, 1
          %s223 = scalar_select %p222, %s24, 1
          %s224 = scalar_lea.vmem %s1, %s223
        $region32: #{decoder_forward.1} parent=27 // pred_fallthru
          _
        // Predicated region
        $region33: #{decoder_forward.1} parent=27 // pred_check
          %p225 = pneg %p70
        $region34: #{decoder_forward.1} parent=27 // pred_check_branch
          %227 = sbr.rel (%p225) target = $region36
        $region35: #{decoder_forward.1} parent=27 // pred_region
          %p228 = scmp.lt.s32.totalorder %s24, 1
          %s229 = scalar_select %p228, %s24, 1
          %s230 = smul.addr %s229, 8
          %s231 = scalar_lea.vmem %s2, %s230
        $region36: #{decoder_forward.1} parent=27 // pred_fallthru
          _
        // Predicated region
        $region37: #{decoder_forward.1} parent=27 // pred_check
          %p232 = pneg %p138
        $region38: #{decoder_forward.1} parent=27 // pred_check_branch
          %234 = sbr.rel (%p232) target = $region40
        $region39: #{decoder_forward.1} parent=27 // pred_region
          %p235 = scmp.lt.s32.totalorder %s24, 1
          %s236 = scalar_select %p235, %s24, 1
          %s237 = smul.addr %s236, 8
          %s238 = scalar_lea.vmem %s5, %s237
        $region40: #{decoder_forward.1} parent=27 // pred_fallthru
          _
      $region28: #{decoder_forward.1} parent=5 // pred_fallthru
        _
      %p239 = scmp.le.s32.totalorder 1, %s24
      %p240 = scmp.lt.s32.totalorder %s24, 3
      %p241 = pnand %p239, %p240
      %p242 = pneg %p241
      // Predicated region
      $region41: #{decoder_forward.1} parent=5 // pred_check
        _
      $region42: #{decoder_forward.1} parent=5 // pred_check_branch
        %244 = sbr.rel (%p241) target = $region44
      $region43: #{decoder_forward.1} parent=5 // pred_region
        %s245 = ssub.s32 %s24, 1
        %p246 = scmp.lt.s32.totalorder %s29, 1
        %s247 = scalar_select %p246, %s29, 1
        %s248 = scalar_lea.vmem %s1, %s247
        %p249 = pneg %p50
        %p250 = pneg %p47
        %p251 = scmp.lt.s32.totalorder %s29, 1
        %s252 = scalar_select %p251, %s29, 1
        %s253 = smul.addr %s252, 8
        %s254 = scalar_lea.vmem %s2, %s253
        %p255 = pneg %p76
        %p256 = pneg %p73
        %p257 = pneg %p97
        %p258 = pneg %p94
        %p259 = pneg %p118
        %p260 = pneg %p115
        %p261 = scmp.lt.s32.totalorder %s29, 1
        %s262 = scalar_select %p261, %s29, 1
        %s263 = smul.addr %s262, 8
        %s264 = scalar_lea.vmem %s5, %s263
        %p265 = pneg %p144
        %p266 = pneg %p141
        %p267 = pneg %p165
        %p268 = pneg %p162
        %p269 = pneg %p191
        %p270 = pneg %p188
        %s271 = sand.u32 %s178, 1
        %s272 = scalar_lea.sflag [#allocation5], %s271
        %s273 = sand.u32 %s178, 1
        %s274 = smul.addr %s273, 8
        %s275 = scalar_lea.vmem [#allocation4], %s274
        %p276 = scmp.lt.s32.totalorder %s29, 1
        %s277 = scalar_select %p276, %s29, 1
        %s278 = scalar_lea.vmem %s1, %s277
        %p279 = scmp.lt.s32.totalorder %s29, 1
        %s280 = scalar_select %p279, %s29, 1
        %s281 = smul.addr %s280, 8
        %s282 = scalar_lea.vmem %s2, %s281
        %p283 = scmp.lt.s32.totalorder %s29, 1
        %s284 = scalar_select %p283, %s29, 1
        %s285 = smul.addr %s284, 8
        %s286 = scalar_lea.vmem %s5, %s285
        %v287 = vld [vmem:[%s278] sm:$0x1]
        %v288 = vld [vmem:[%s282] sm:$0xff]
        %v289 = vlaneseq
        %v290 = vand.u32 %v289, 127
        %291 = vset.pattern.permute.xlu0 0
        %292 = vperm.xlu0 %291, %v288
        %v293 = vpop.permute.xlu0 %292
        %vm294 = vcmp.eq.s32.totalorder %v290, %v293
        %v295 = vsel %vm294, 1, 0
        %v296 = vcvt.s32.f32 %v295
        %v297 = vld [vmem:[%s3] sm:$0xff]
        %v298 = vld [vmem:[%s3 + $0x8] sm:$0xff]
        %v299 = vld [vmem:[%s3 + $0x10] sm:$0xff]
        %v300 = vld [vmem:[%s3 + $0x18] sm:$0xff]
        %v301 = vld [vmem:[%s3 + $0x20] sm:$0xff]
        %v302 = vld [vmem:[%s3 + $0x28] sm:$0xff]
        %v303 = vld [vmem:[%s3 + $0x30] sm:$0xff]
        %v304 = vlaneseq
        %v305 = vshrl.u32 %v304, 7
        %v306 = vadd.s32 %v305, 1
        %s307 = sld [smem:[#allocation3 + %s29]]
        %v308 = vstv %s307
        %vm309 = vcmp.le.s32.totalorder %v306, %v308
        %v310 = vld [vmem:[%s4] sm:$0xff]
        %v311 = vsel %vm309, 1, 0
        %vm312 = vcmp.eq.s32.totalorder %v311, 1
        %v313 = vsel %vm312, %v310, 0.0
        %vm314 = vcmask 457728
        %v316 = vsel %vm314, %v296, 0
        %318 = vmatpush.msra.mxu0 0.0
        %319 = vmatpush.msra.mxu0 0.0
        %320 = vmatpush.msra.mxu0 0.0
        %321 = vmatpush.msra.mxu0 0.0
        %322 = vmatpush.msra.mxu0 0.0
        %323 = vmatpush.msra.mxu0 0.0
        %324 = vmatpush.msra.mxu0 0.0
        %325 = vmatpush.msra.mxu0 0.0
        %326 = vmatpush.msra.mxu0 0.0
        %327 = vmatpush.msra.mxu0 %v303
        %328 = vmatpush.msra.mxu0 %v302
        %329 = vmatpush.msra.mxu0 %v301
        %330 = vmatpush.msra.mxu0 %v300
        %331 = vmatpush.msra.mxu0 %v299
        %332 = vmatpush.msra.mxu0 %v298
        %333 = vmatpush.msra.mxu0 %v297
        %334 = vmatmul.f32.gmra.mxu0 %v316
        %v335 = vpop.f32.mrf.mxu0
        %v336 = vadd.f32 %v313, %v335
        %337 = vdwg.mxu0
        %vm338 = vcmp.gt.s32.totalorder %v290, %v305
        %vm339 = vcmp.eq.s32.totalorder %v287, 0
        %v340 = vsel %vm339, 1, 0
        %v341 = vperm.slane %v340, 0
        %vm342 = vcmp.eq.s32.totalorder %v341, 1
        %vm343 = vmor %vm338, %vm342
        %v344 = vld [vmem:[%s286] sm:$0xff]
        %v345 = vld [vmem:[%s6] sm:$0xff]
        %v346 = vld [vmem:[%s6 + $0x8] sm:$0xff]
        %v347 = vld [vmem:[%s6 + $0x10] sm:$0xff]
        %v348 = vld [vmem:[%s6 + $0x18] sm:$0xff]
        %v349 = vld [vmem:[%s6 + $0x20] sm:$0x1]
        %v350 = vld [vmem:[%s6 + $0x21] sm:$0x1]
        %v351 = vperm.slane %v349, 0
        %vm352 = vcmask 261120
        %v354 = vsel %vm352, %v336, 0
        %356 = vmatpush.msra.mxu0 0.0
        %357 = vmatpush.msra.mxu0 0.0
        %358 = vmatpush.msra.mxu0 0.0
        %359 = vmatpush.msra.mxu0 0.0
        %360 = vmatpush.msra.mxu0 0.0
        %361 = vmatpush.msra.mxu0 0.0
        %362 = vmatpush.msra.mxu0 0.0
        %363 = vmatpush.msra.mxu0 0.0
        %364 = vmatpush.msra.mxu0 0.0
        %365 = vmatpush.msra.mxu0 0.0
        %366 = vmatpush.msra.mxu0 0.0
        %367 = vmatpush.msra.mxu0 0.0
        %368 = vmatpush.msra.mxu0 %v348
        %369 = vmatpush.msra.mxu0 %v347
        %370 = vmatpush.msra.mxu0 %v346
        %371 = vmatpush.msra.mxu0 %v345
        %372 = vmatmul.f32.gmra.mxu0 %v354
        %v373 = vpop.f32.mrf.mxu0
        %v374 = vadd.f32 %v351, %v373
        %375 = vdwg.mxu0
        %377 = vrot.lane.b32.xlu0 %v374, 120
        %v378 = vpop.permute.xlu0 %377
        %379 = vrot.lane.b32.xlu0 %v374, 112
        %v380 = vpop.permute.xlu0 %379
        %381 = vrot.lane.b32.xlu0 %v374, 104
        %v382 = vpop.permute.xlu0 %381
        %383 = vrot.lane.b32.xlu0 %v374, 96
        %v384 = vpop.permute.xlu0 %383
        %vm385 = vcmask 64512
        %v386 = vsel %vm385, %v374, 0
        %v388 = vsel %vm385, %v384, 0
        %390 = vmatpush.xpose.msra.mxu0 0.0
        %391 = vmatpush.xpose.msra.mxu0 0.0
        %392 = vmatpush.xpose.msra.mxu0 0.0
        %393 = vmatpush.xpose.msra.mxu0 0.0
        %394 = vmatpush.xpose.msra.mxu0 0.0
        %395 = vmatpush.xpose.msra.mxu0 0.0
        %396 = vmatpush.xpose.msra.mxu0 0.0
        %397 = vmatpush.xpose.msra.mxu0 0.0
        %398 = vmatpush.xpose.msra.mxu0 0.0
        %399 = vmatpush.xpose.msra.mxu0 0.0
        %400 = vmatpush.xpose.msra.mxu0 0.0
        %401 = vmatpush.xpose.msra.mxu0 0.0
        %402 = vmatpush.xpose.msra.mxu0 0.0
        %403 = vmatpush.xpose.msra.mxu0 0.0
        %404 = vmatpush.xpose.msra.mxu0 0.0
        %405 = vmatpush.xpose.msra.mxu0 %v388
        %406 = vmatmul.f32.gmra.mxu0 %v386
        %v407 = vpop.f32.mrf.mxu0
        %v408 = vadd.f32 0.0, %v407
        %409 = vdwg.mxu0
        %410 = vrot.lane.b32.xlu0 %v378, 96
        %v411 = vpop.permute.xlu0 %410
        %v412 = vsel %vm385, %v378, 0
        %v414 = vsel %vm385, %v411, 0
        %416 = vmatpush.xpose.msra.mxu0 0.0
        %417 = vmatpush.xpose.msra.mxu0 0.0
        %418 = vmatpush.xpose.msra.mxu0 0.0
        %419 = vmatpush.xpose.msra.mxu0 0.0
        %420 = vmatpush.xpose.msra.mxu0 0.0
        %421 = vmatpush.xpose.msra.mxu0 0.0
        %422 = vmatpush.xpose.msra.mxu0 0.0
        %423 = vmatpush.xpose.msra.mxu0 0.0
        %424 = vmatpush.xpose.msra.mxu0 0.0
        %425 = vmatpush.xpose.msra.mxu0 0.0
        %426 = vmatpush.xpose.msra.mxu0 0.0
        %427 = vmatpush.xpose.msra.mxu0 0.0
        %428 = vmatpush.xpose.msra.mxu0 0.0
        %429 = vmatpush.xpose.msra.mxu0 0.0
        %430 = vmatpush.xpose.msra.mxu0 0.0
        %431 = vmatpush.xpose.msra.mxu0 %v414
        %432 = vmatmul.f32.gmra.mxu0 %v412
        %v433 = vpop.f32.mrf.mxu0
        %v434 = vadd.f32 0.0, %v433
        %435 = vdwg.mxu0
        %436 = vrot.lane.b32.xlu0 %v380, 96
        %v437 = vpop.permute.xlu0 %436
        %v438 = vsel %vm385, %v380, 0
        %v440 = vsel %vm385, %v437, 0
        %442 = vmatpush.xpose.msra.mxu0 0.0
        %443 = vmatpush.xpose.msra.mxu0 0.0
        %444 = vmatpush.xpose.msra.mxu0 0.0
        %445 = vmatpush.xpose.msra.mxu0 0.0
        %446 = vmatpush.xpose.msra.mxu0 0.0
        %447 = vmatpush.xpose.msra.mxu0 0.0
        %448 = vmatpush.xpose.msra.mxu0 0.0
        %449 = vmatpush.xpose.msra.mxu0 0.0
        %450 = vmatpush.xpose.msra.mxu0 0.0
        %451 = vmatpush.xpose.msra.mxu0 0.0
        %452 = vmatpush.xpose.msra.mxu0 0.0
        %453 = vmatpush.xpose.msra.mxu0 0.0
        %454 = vmatpush.xpose.msra.mxu0 0.0
        %455 = vmatpush.xpose.msra.mxu0 0.0
        %456 = vmatpush.xpose.msra.mxu0 0.0
        %457 = vmatpush.xpose.msra.mxu0 %v440
        %458 = vmatmul.f32.gmra.mxu0 %v438
        %v459 = vpop.f32.mrf.mxu0
        %v460 = vadd.f32 0.0, %v459
        %461 = vdwg.mxu0
        %462 = vrot.lane.b32.xlu0 %v382, 96
        %v463 = vpop.permute.xlu0 %462
        %v464 = vsel %vm385, %v382, 0
        %v466 = vsel %vm385, %v463, 0
        %468 = vmatpush.xpose.msra.mxu0 0.0
        %469 = vmatpush.xpose.msra.mxu0 0.0
        %470 = vmatpush.xpose.msra.mxu0 0.0
        %471 = vmatpush.xpose.msra.mxu0 0.0
        %472 = vmatpush.xpose.msra.mxu0 0.0
        %473 = vmatpush.xpose.msra.mxu0 0.0
        %474 = vmatpush.xpose.msra.mxu0 0.0
        %475 = vmatpush.xpose.msra.mxu0 0.0
        %476 = vmatpush.xpose.msra.mxu0 0.0
        %477 = vmatpush.xpose.msra.mxu0 0.0
        %478 = vmatpush.xpose.msra.mxu0 0.0
        %479 = vmatpush.xpose.msra.mxu0 0.0
        %480 = vmatpush.xpose.msra.mxu0 0.0
        %481 = vmatpush.xpose.msra.mxu0 0.0
        %482 = vmatpush.xpose.msra.mxu0 0.0
        %483 = vmatpush.xpose.msra.mxu0 %v466
        %484 = vmatmul.f32.gmra.mxu0 %v464
        %v485 = vpop.f32.mrf.mxu0
        %v486 = vadd.f32 0.0, %v485
        %487 = vdwg.mxu0
        %v488 = vsel %vm343, 1, 0
        %vm489 = vcmp.eq.s32.totalorder %v488, 1
        %v490 = vsel %vm489, -1e+30, %v408
        %v491 = vsel %vm489, -1e+30, %v434
        %v492 = vsel %vm489, -1e+30, %v460
        %v493 = vsel %vm489, -1e+30, %v486
        %v494 = vsel %vm385, %v490, -inf
        %495 = vmax.xlane.f32.xlu0 %v494
        %v496 = vpop.xlane.xlu0 %495
        %v497 = vsel %vm385, %v491, -inf
        %498 = vmax.xlane.f32.xlu0 %v497
        %v499 = vpop.xlane.xlu0 %498
        %v500 = vsel %vm385, %v492, -inf
        %501 = vmax.xlane.f32.xlu0 %v500
        %v502 = vpop.xlane.xlu0 %501
        %v503 = vsel %vm385, %v493, -inf
        %504 = vmax.xlane.f32.xlu0 %v503
        %v505 = vpop.xlane.xlu0 %504
        %v506 = vsub.f32 %v490, %v496
        %v507 = vsub.f32 %v491, %v499
        %v508 = vsub.f32 %v492, %v502
        %v509 = vsub.f32 %v493, %v505
        %v510 = vmul.f32 %v506, 1.442695
        %v511 = vpow.pop %v510
        %v512 = vmul.f32 %v507, 1.442695
        %v513 = vpow.pop %v512
        %v514 = vmul.f32 %v508, 1.442695
        %v515 = vpow.pop %v514
        %v516 = vmul.f32 %v509, 1.442695
        %v517 = vpow.pop %v516
        %v518 = vsel %vm385, %v511, 0.0
        %519 = vadd.xlane.f32.xlu0 %v518
        %v520 = vpop.xlane.xlu0 %519
        %v521 = vsel %vm385, %v513, 0.0
        %522 = vadd.xlane.f32.xlu0 %v521
        %v523 = vpop.xlane.xlu0 %522
        %v524 = vsel %vm385, %v515, 0.0
        %525 = vadd.xlane.f32.xlu0 %v524
        %v526 = vpop.xlane.xlu0 %525
        %v527 = vsel %vm385, %v517, 0.0
        %528 = vadd.xlane.f32.xlu0 %v527
        %v529 = vpop.xlane.xlu0 %528
        %v530 = vrcp.pop %v520
        %v531 = vrcp.pop %v523
        %v532 = vrcp.pop %v526
        %v533 = vrcp.pop %v529
        %v534 = vmul.f32 %v511, %v530
        %v535 = vmul.f32 %v513, %v531
        %v536 = vmul.f32 %v515, %v532
        %v537 = vmul.f32 %v517, %v533
        %538 = vrot.lane.b32.xlu0 %v374, 64
        %v539 = vpop.permute.xlu0 %538
        %v542 = vsel %vm385, %v534, 0
        %544 = vmatpush.msra.mxu0 0.0
        %545 = vmatpush.msra.mxu0 0.0
        %546 = vmatpush.msra.mxu0 0.0
        %547 = vmatpush.msra.mxu0 0.0
        %548 = vmatpush.msra.mxu0 0.0
        %549 = vmatpush.msra.mxu0 0.0
        %550 = vmatpush.msra.mxu0 0.0
        %551 = vmatpush.msra.mxu0 0.0
        %552 = vmatpush.msra.mxu0 0.0
        %553 = vmatpush.msra.mxu0 0.0
        %554 = vmatpush.msra.mxu0 0.0
        %555 = vmatpush.msra.mxu0 0.0
        %556 = vmatpush.msra.mxu0 0.0
        %557 = vmatpush.msra.mxu0 0.0
        %558 = vmatpush.msra.mxu0 0.0
        %559 = vmatpush.msra.mxu0 %v539
        %560 = vmatmul.f32.gmra.mxu0 %v542
        %v561 = vpop.f32.mrf.mxu0
        %v562 = vadd.f32 0.0, %v561
        %563 = vdwg.mxu0
        %564 = vrot.lane.b32.xlu0 %v378, 64
        %v565 = vpop.permute.xlu0 %564
        %v568 = vsel %vm385, %v535, 0
        %570 = vmatpush.msra.mxu0 0.0
        %571 = vmatpush.msra.mxu0 0.0
        %572 = vmatpush.msra.mxu0 0.0
        %573 = vmatpush.msra.mxu0 0.0
        %574 = vmatpush.msra.mxu0 0.0
        %575 = vmatpush.msra.mxu0 0.0
        %576 = vmatpush.msra.mxu0 0.0
        %577 = vmatpush.msra.mxu0 0.0
        %578 = vmatpush.msra.mxu0 0.0
        %579 = vmatpush.msra.mxu0 0.0
        %580 = vmatpush.msra.mxu0 0.0
        %581 = vmatpush.msra.mxu0 0.0
        %582 = vmatpush.msra.mxu0 0.0
        %583 = vmatpush.msra.mxu0 0.0
        %584 = vmatpush.msra.mxu0 0.0
        %585 = vmatpush.msra.mxu0 %v565
        %586 = vmatmul.f32.gmra.mxu0 %v568
        %v587 = vpop.f32.mrf.mxu0
        %v588 = vadd.f32 0.0, %v587
        %589 = vdwg.mxu0
        %590 = vrot.lane.b32.xlu0 %v380, 64
        %v591 = vpop.permute.xlu0 %590
        %v594 = vsel %vm385, %v536, 0
        %596 = vmatpush.msra.mxu0 0.0
        %597 = vmatpush.msra.mxu0 0.0
        %598 = vmatpush.msra.mxu0 0.0
        %599 = vmatpush.msra.mxu0 0.0
        %600 = vmatpush.msra.mxu0 0.0
        %601 = vmatpush.msra.mxu0 0.0
        %602 = vmatpush.msra.mxu0 0.0
        %603 = vmatpush.msra.mxu0 0.0
        %604 = vmatpush.msra.mxu0 0.0
        %605 = vmatpush.msra.mxu0 0.0
        %606 = vmatpush.msra.mxu0 0.0
        %607 = vmatpush.msra.mxu0 0.0
        %608 = vmatpush.msra.mxu0 0.0
        %609 = vmatpush.msra.mxu0 0.0
        %610 = vmatpush.msra.mxu0 0.0
        %611 = vmatpush.msra.mxu0 %v591
        %612 = vmatmul.f32.gmra.mxu0 %v594
        %v613 = vpop.f32.mrf.mxu0
        %v614 = vadd.f32 0.0, %v613
        %615 = vdwg.mxu0
        %616 = vrot.lane.b32.xlu0 %v382, 64
        %v617 = vpop.permute.xlu0 %616
        %v620 = vsel %vm385, %v537, 0
        %622 = vmatpush.msra.mxu0 0.0
        %623 = vmatpush.msra.mxu0 0.0
        %624 = vmatpush.msra.mxu0 0.0
        %625 = vmatpush.msra.mxu0 0.0
        %626 = vmatpush.msra.mxu0 0.0
        %627 = vmatpush.msra.mxu0 0.0
        %628 = vmatpush.msra.mxu0 0.0
        %629 = vmatpush.msra.mxu0 0.0
        %630 = vmatpush.msra.mxu0 0.0
        %631 = vmatpush.msra.mxu0 0.0
        %632 = vmatpush.msra.mxu0 0.0
        %633 = vmatpush.msra.mxu0 0.0
        %634 = vmatpush.msra.mxu0 0.0
        %635 = vmatpush.msra.mxu0 0.0
        %636 = vmatpush.msra.mxu0 0.0
        %637 = vmatpush.msra.mxu0 %v617
        %638 = vmatmul.f32.gmra.mxu0 %v620
        %v639 = vpop.f32.mrf.mxu0
        %v640 = vadd.f32 0.0, %v639
        %641 = vdwg.mxu0
        %643 = vrot.lane.b32.xlu0 %v588, 8
        %v644 = vpop.permute.xlu0 %643
        %647 = vrot.lane.b32.xlu0 %v614, 16
        %v648 = vpop.permute.xlu0 %647
        %651 = vrot.lane.b32.xlu0 %v640, 24
        %v652 = vpop.permute.xlu0 %651
        %v654 = vsel %vm385, %v562, %v644
        %vm655 = vcmask 130048
        %v656 = vsel %vm655, %v654, %v648
        %vm657 = vcmask 195584
        %v658 = vsel %vm657, %v656, %v652
        %663 = vrot.lane.b32.xlu0 %v345, 32
        %v664 = vpop.permute.xlu0 %663
        %665 = vrot.lane.b32.xlu0 %v346, 32
        %v666 = vpop.permute.xlu0 %665
        %667 = vrot.lane.b32.xlu0 %v347, 32
        %v668 = vpop.permute.xlu0 %667
        %669 = vrot.lane.b32.xlu0 %v348, 32
        %v670 = vpop.permute.xlu0 %669
        %676 = vrot.lane.b32.xlu0 %v351, 32
        %v677 = vpop.permute.xlu0 %676
        %v680 = vsel %vm352, %v658, 0
        %682 = vmatpush.msra.mxu0 0.0
        %683 = vmatpush.msra.mxu0 0.0
        %684 = vmatpush.msra.mxu0 0.0
        %685 = vmatpush.msra.mxu0 0.0
        %686 = vmatpush.msra.mxu0 0.0
        %687 = vmatpush.msra.mxu0 0.0
        %688 = vmatpush.msra.mxu0 0.0
        %689 = vmatpush.msra.mxu0 0.0
        %690 = vmatpush.msra.mxu0 0.0
        %691 = vmatpush.msra.mxu0 0.0
        %692 = vmatpush.msra.mxu0 0.0
        %693 = vmatpush.msra.mxu0 0.0
        %694 = vmatpush.msra.mxu0 %v670
        %695 = vmatpush.msra.mxu0 %v668
        %696 = vmatpush.msra.mxu0 %v666
        %697 = vmatpush.msra.mxu0 %v664
        %698 = vmatmul.f32.gmra.mxu0 %v680
        %v699 = vpop.f32.mrf.mxu0
        %v700 = vadd.f32 %v677, %v699
        %701 = vdwg.mxu0
        %v702 = vadd.f32 %v336, %v700
        %v703 = vsel %vm352, %v702, 0.0
        %704 = vadd.xlane.f32.xlu0 %v703
        %v705 = vpop.xlane.xlu0 %704
        %v706 = vrcp.pop 32.0
        %v707 = vmul.f32 32.0, %v706
        %v708 = vsub.f32 1.0, %v707
        %v709 = vmul.f32 %v706, %v708
        %v710 = vadd.f32 %v706, %v709
        %vm711 = vweird.f32 %v706
        %v712 = vsel %vm711, %v706, %v710
        %v713 = vmul.f32 %v705, %v712
        %v714 = vsub.f32 %v702, %v713
        %v715 = vmul.f32 %v714, %v714
        %v716 = vsel %vm352, %v715, 0.0
        %717 = vadd.xlane.f32.xlu0 %v716
        %v718 = vpop.xlane.xlu0 %717
        %v719 = vrcp.pop 31.0
        %v720 = vmul.f32 31.0, %v719
        %v721 = vsub.f32 1.0, %v720
        %v722 = vmul.f32 %v719, %v721
        %v723 = vadd.f32 %v719, %v722
        %vm724 = vweird.f32 %v719
        %v725 = vsel %vm724, %v719, %v723
        %v726 = vmul.f32 %v718, %v725
        %v727 = vrsqrt.pop %v726
        %v728 = vmul.f32 %v727, %v726
        %v729 = vmul.f32 %v728, %v727
        %v730 = vmul.f32 0.5, %v729
        %v731 = vsub.f32 1.5, %v730
        %v732 = vmul.f32 %v727, %v731
        %v733 = vmul.f32 %v726, %v732
        %vm734 = vcmp.eq.f32.partialorder %v726, inf
        %v735 = vsel %vm734, %v726, %v733
        %vm736 = vcmp.eq.f32.partialorder %v726, 0.0
        %v737 = vand.u32 %v726, 2147483648
        %v738 = vsel %vm736, %v737, %v735
        %v739 = vadd.f32 %v738, 1e-06
        %v740 = vrcp.pop %v739
        %v741 = vmul.f32 %v714, %v740
        %v742 = vperm.slane %v350, 0
        %v743 = vmul.f32 %v741, %v742
        %745 = vrot.lane.b32.xlu0 %v742, 96
        %v746 = vpop.permute.xlu0 %745
        %v748 = vadd.f32 %v743, %v746
        %v749 = vld [vmem:[%s6 + $0x22] sm:$0xff]
        %v750 = vld [vmem:[%s6 + $0x2a] sm:$0xff]
        %v751 = vld [vmem:[%s6 + $0x32] sm:$0xff]
        %v752 = vld [vmem:[%s6 + $0x3a] sm:$0xff]
        %v753 = vld [vmem:[%s6 + $0x42] sm:$0x1]
        %v754 = vld [vmem:[%s6 + $0x43] sm:$0x1]
        %v755 = vperm.slane %v753, 0
        %v757 = vsel %vm352, %v748, 0
        %759 = vmatpush.msra.mxu0 0.0
        %760 = vmatpush.msra.mxu0 0.0
        %761 = vmatpush.msra.mxu0 0.0
        %762 = vmatpush.msra.mxu0 0.0
        %763 = vmatpush.msra.mxu0 0.0
        %764 = vmatpush.msra.mxu0 0.0
        %765 = vmatpush.msra.mxu0 0.0
        %766 = vmatpush.msra.mxu0 0.0
        %767 = vmatpush.msra.mxu0 0.0
        %768 = vmatpush.msra.mxu0 0.0
        %769 = vmatpush.msra.mxu0 0.0
        %770 = vmatpush.msra.mxu0 0.0
        %771 = vmatpush.msra.mxu0 %v752
        %772 = vmatpush.msra.mxu0 %v751
        %773 = vmatpush.msra.mxu0 %v750
        %774 = vmatpush.msra.mxu0 %v749
        %775 = vmatmul.f32.gmra.mxu0 %v757
        %v776 = vpop.f32.mrf.mxu0
        %v777 = vadd.f32 %v755, %v776
        %778 = vdwg.mxu0
        %783 = vrot.lane.b32.xlu0 %v749, 96
        %v784 = vpop.permute.xlu0 %783
        %785 = vrot.lane.b32.xlu0 %v750, 96
        %v786 = vpop.permute.xlu0 %785
        %787 = vrot.lane.b32.xlu0 %v751, 96
        %v788 = vpop.permute.xlu0 %787
        %789 = vrot.lane.b32.xlu0 %v752, 96
        %v790 = vpop.permute.xlu0 %789
        %796 = vrot.lane.b32.xlu0 %v755, 96
        %v797 = vpop.permute.xlu0 %796
        %v800 = vsel %vm352, %v344, 0
        %802 = vmatpush.msra.mxu0 0.0
        %803 = vmatpush.msra.mxu0 0.0
        %804 = vmatpush.msra.mxu0 0.0
        %805 = vmatpush.msra.mxu0 0.0
        %806 = vmatpush.msra.mxu0 0.0
        %807 = vmatpush.msra.mxu0 0.0
        %808 = vmatpush.msra.mxu0 0.0
        %809 = vmatpush.msra.mxu0 0.0
        %810 = vmatpush.msra.mxu0 0.0
        %811 = vmatpush.msra.mxu0 0.0
        %812 = vmatpush.msra.mxu0 0.0
        %813 = vmatpush.msra.mxu0 0.0
        %814 = vmatpush.msra.mxu0 %v790
        %815 = vmatpush.msra.mxu0 %v788
        %816 = vmatpush.msra.mxu0 %v786
        %817 = vmatpush.msra.mxu0 %v784
        %818 = vmatmul.f32.gmra.mxu0 %v800
        %v819 = vpop.f32.mrf.mxu0
        %v820 = vadd.f32 %v797, %v819
        %821 = vdwg.mxu0
        %823 = vrot.lane.b32.xlu0 %v777, 120
        %v824 = vpop.permute.xlu0 %823
        %825 = vrot.lane.b32.xlu0 %v777, 112
        %v826 = vpop.permute.xlu0 %825
        %827 = vrot.lane.b32.xlu0 %v777, 104
        %v828 = vpop.permute.xlu0 %827
        %830 = vrot.lane.b32.xlu0 %v820, 120
        %v831 = vpop.permute.xlu0 %830
        %832 = vrot.lane.b32.xlu0 %v820, 112
        %v833 = vpop.permute.xlu0 %832
        %834 = vrot.lane.b32.xlu0 %v820, 104
        %v835 = vpop.permute.xlu0 %834
        %v836 = vsel %vm385, %v777, 0
        %v838 = vsel %vm385, %v820, 0
        %840 = vmatpush.xpose.msra.mxu0 0.0
        %841 = vmatpush.xpose.msra.mxu0 0.0
        %842 = vmatpush.xpose.msra.mxu0 0.0
        %843 = vmatpush.xpose.msra.mxu0 0.0
        %844 = vmatpush.xpose.msra.mxu0 0.0
        %845 = vmatpush.xpose.msra.mxu0 0.0
        %846 = vmatpush.xpose.msra.mxu0 0.0
        %847 = vmatpush.xpose.msra.mxu0 0.0
        %848 = vmatpush.xpose.msra.mxu0 0.0
        %849 = vmatpush.xpose.msra.mxu0 0.0
        %850 = vmatpush.xpose.msra.mxu0 0.0
        %851 = vmatpush.xpose.msra.mxu0 0.0
        %852 = vmatpush.xpose.msra.mxu0 0.0
        %853 = vmatpush.xpose.msra.mxu0 0.0
        %854 = vmatpush.xpose.msra.mxu0 0.0
        %855 = vmatpush.xpose.msra.mxu0 %v838
        %856 = vmatmul.f32.gmra.mxu0 %v836
        %v857 = vpop.f32.mrf.mxu0
        %v858 = vadd.f32 0.0, %v857
        %859 = vdwg.mxu0
        %v860 = vsel %vm385, %v824, 0
        %v862 = vsel %vm385, %v831, 0
        %864 = vmatpush.xpose.msra.mxu0 0.0
        %865 = vmatpush.xpose.msra.mxu0 0.0
        %866 = vmatpush.xpose.msra.mxu0 0.0
        %867 = vmatpush.xpose.msra.mxu0 0.0
        %868 = vmatpush.xpose.msra.mxu0 0.0
        %869 = vmatpush.xpose.msra.mxu0 0.0
        %870 = vmatpush.xpose.msra.mxu0 0.0
        %871 = vmatpush.xpose.msra.mxu0 0.0
        %872 = vmatpush.xpose.msra.mxu0 0.0
        %873 = vmatpush.xpose.msra.mxu0 0.0
        %874 = vmatpush.xpose.msra.mxu0 0.0
        %875 = vmatpush.xpose.msra.mxu0 0.0
        %876 = vmatpush.xpose.msra.mxu0 0.0
        %877 = vmatpush.xpose.msra.mxu0 0.0
        %878 = vmatpush.xpose.msra.mxu0 0.0
        %879 = vmatpush.xpose.msra.mxu0 %v862
        %880 = vmatmul.f32.gmra.mxu0 %v860
        %v881 = vpop.f32.mrf.mxu0
        %v882 = vadd.f32 0.0, %v881
        %883 = vdwg.mxu0
        %v884 = vsel %vm385, %v826, 0
        %v886 = vsel %vm385, %v833, 0
        %888 = vmatpush.xpose.msra.mxu0 0.0
        %889 = vmatpush.xpose.msra.mxu0 0.0
        %890 = vmatpush.xpose.msra.mxu0 0.0
        %891 = vmatpush.xpose.msra.mxu0 0.0
        %892 = vmatpush.xpose.msra.mxu0 0.0
        %893 = vmatpush.xpose.msra.mxu0 0.0
        %894 = vmatpush.xpose.msra.mxu0 0.0
        %895 = vmatpush.xpose.msra.mxu0 0.0
        %896 = vmatpush.xpose.msra.mxu0 0.0
        %897 = vmatpush.xpose.msra.mxu0 0.0
        %898 = vmatpush.xpose.msra.mxu0 0.0
        %899 = vmatpush.xpose.msra.mxu0 0.0
        %900 = vmatpush.xpose.msra.mxu0 0.0
        %901 = vmatpush.xpose.msra.mxu0 0.0
        %902 = vmatpush.xpose.msra.mxu0 0.0
        %903 = vmatpush.xpose.msra.mxu0 %v886
        %904 = vmatmul.f32.gmra.mxu0 %v884
        %v905 = vpop.f32.mrf.mxu0
        %v906 = vadd.f32 0.0, %v905
        %907 = vdwg.mxu0
        %v908 = vsel %vm385, %v828, 0
        %v910 = vsel %vm385, %v835, 0
        %912 = vmatpush.xpose.msra.mxu0 0.0
        %913 = vmatpush.xpose.msra.mxu0 0.0
        %914 = vmatpush.xpose.msra.mxu0 0.0
        %915 = vmatpush.xpose.msra.mxu0 0.0
        %916 = vmatpush.xpose.msra.mxu0 0.0
        %917 = vmatpush.xpose.msra.mxu0 0.0
        %918 = vmatpush.xpose.msra.mxu0 0.0
        %919 = vmatpush.xpose.msra.mxu0 0.0
        %920 = vmatpush.xpose.msra.mxu0 0.0
        %921 = vmatpush.xpose.msra.mxu0 0.0
        %922 = vmatpush.xpose.msra.mxu0 0.0
        %923 = vmatpush.xpose.msra.mxu0 0.0
        %924 = vmatpush.xpose.msra.mxu0 0.0
        %925 = vmatpush.xpose.msra.mxu0 0.0
        %926 = vmatpush.xpose.msra.mxu0 0.0
        %927 = vmatpush.xpose.msra.mxu0 %v910
        %928 = vmatmul.f32.gmra.mxu0 %v908
        %v929 = vpop.f32.mrf.mxu0
        %v930 = vadd.f32 0.0, %v929
        %931 = vdwg.mxu0
        %v932 = vsel %vm385, %v858, -inf
        %933 = vmax.xlane.f32.xlu0 %v932
        %v934 = vpop.xlane.xlu0 %933
        %v935 = vsel %vm385, %v882, -inf
        %936 = vmax.xlane.f32.xlu0 %v935
        %v937 = vpop.xlane.xlu0 %936
        %v938 = vsel %vm385, %v906, -inf
        %939 = vmax.xlane.f32.xlu0 %v938
        %v940 = vpop.xlane.xlu0 %939
        %v941 = vsel %vm385, %v930, -inf
        %942 = vmax.xlane.f32.xlu0 %v941
        %v943 = vpop.xlane.xlu0 %942
        %v944 = vsub.f32 %v858, %v934
        %v945 = vsub.f32 %v882, %v937
        %v946 = vsub.f32 %v906, %v940
        %v947 = vsub.f32 %v930, %v943
        %v948 = vmul.f32 %v944, 1.442695
        %v949 = vpow.pop %v948
        %v950 = vmul.f32 %v945, 1.442695
        %v951 = vpow.pop %v950
        %v952 = vmul.f32 %v946, 1.442695
        %v953 = vpow.pop %v952
        %v954 = vmul.f32 %v947, 1.442695
        %v955 = vpow.pop %v954
        %v956 = vsel %vm385, %v949, 0.0
        %957 = vadd.xlane.f32.xlu0 %v956
        %v958 = vpop.xlane.xlu0 %957
        %v959 = vsel %vm385, %v951, 0.0
        %960 = vadd.xlane.f32.xlu0 %v959
        %v961 = vpop.xlane.xlu0 %960
        %v962 = vsel %vm385, %v953, 0.0
        %963 = vadd.xlane.f32.xlu0 %v962
        %v964 = vpop.xlane.xlu0 %963
        %v965 = vsel %vm385, %v955, 0.0
        %966 = vadd.xlane.f32.xlu0 %v965
        %v967 = vpop.xlane.xlu0 %966
        %v968 = vrcp.pop %v958
        %v969 = vrcp.pop %v961
        %v970 = vrcp.pop %v964
        %v971 = vrcp.pop %v967
        %v972 = vmul.f32 %v949, %v968
        %v973 = vmul.f32 %v951, %v969
        %v974 = vmul.f32 %v953, %v970
        %v975 = vmul.f32 %v955, %v971
        %976 = vrot.lane.b32.xlu0 %v820, 96
        %v977 = vpop.permute.xlu0 %976
        %v980 = vsel %vm385, %v972, 0
        %982 = vmatpush.msra.mxu0 0.0
        %983 = vmatpush.msra.mxu0 0.0
        %984 = vmatpush.msra.mxu0 0.0
        %985 = vmatpush.msra.mxu0 0.0
        %986 = vmatpush.msra.mxu0 0.0
        %987 = vmatpush.msra.mxu0 0.0
        %988 = vmatpush.msra.mxu0 0.0
        %989 = vmatpush.msra.mxu0 0.0
        %990 = vmatpush.msra.mxu0 0.0
        %991 = vmatpush.msra.mxu0 0.0
        %992 = vmatpush.msra.mxu0 0.0
        %993 = vmatpush.msra.mxu0 0.0
        %994 = vmatpush.msra.mxu0 0.0
        %995 = vmatpush.msra.mxu0 0.0
        %996 = vmatpush.msra.mxu0 0.0
        %997 = vmatpush.msra.mxu0 %v977
        %998 = vmatmul.f32.gmra.mxu0 %v980
        %v999 = vpop.f32.mrf.mxu0
        %v1000 = vadd.f32 0.0, %v999
        %1001 = vdwg.mxu0
        %1002 = vrot.lane.b32.xlu0 %v831, 96
        %v1003 = vpop.permute.xlu0 %1002
        %v1006 = vsel %vm385, %v973, 0
        %1008 = vmatpush.msra.mxu0 0.0
        %1009 = vmatpush.msra.mxu0 0.0
        %1010 = vmatpush.msra.mxu0 0.0
        %1011 = vmatpush.msra.mxu0 0.0
        %1012 = vmatpush.msra.mxu0 0.0
        %1013 = vmatpush.msra.mxu0 0.0
        %1014 = vmatpush.msra.mxu0 0.0
        %1015 = vmatpush.msra.mxu0 0.0
        %1016 = vmatpush.msra.mxu0 0.0
        %1017 = vmatpush.msra.mxu0 0.0
        %1018 = vmatpush.msra.mxu0 0.0
        %1019 = vmatpush.msra.mxu0 0.0
        %1020 = vmatpush.msra.mxu0 0.0
        %1021 = vmatpush.msra.mxu0 0.0
        %1022 = vmatpush.msra.mxu0 0.0
        %1023 = vmatpush.msra.mxu0 %v1003
        %1024 = vmatmul.f32.gmra.mxu0 %v1006
        %v1025 = vpop.f32.mrf.mxu0
        %v1026 = vadd.f32 0.0, %v1025
        %1027 = vdwg.mxu0
        %1028 = vrot.lane.b32.xlu0 %v833, 96
        %v1029 = vpop.permute.xlu0 %1028
        %v1032 = vsel %vm385, %v974, 0
        %1034 = vmatpush.msra.mxu0 0.0
        %1035 = vmatpush.msra.mxu0 0.0
        %1036 = vmatpush.msra.mxu0 0.0
        %1037 = vmatpush.msra.mxu0 0.0
        %1038 = vmatpush.msra.mxu0 0.0
        %1039 = vmatpush.msra.mxu0 0.0
        %1040 = vmatpush.msra.mxu0 0.0
        %1041 = vmatpush.msra.mxu0 0.0
        %1042 = vmatpush.msra.mxu0 0.0
        %1043 = vmatpush.msra.mxu0 0.0
        %1044 = vmatpush.msra.mxu0 0.0
        %1045 = vmatpush.msra.mxu0 0.0
        %1046 = vmatpush.msra.mxu0 0.0
        %1047 = vmatpush.msra.mxu0 0.0
        %1048 = vmatpush.msra.mxu0 0.0
        %1049 = vmatpush.msra.mxu0 %v1029
        %1050 = vmatmul.f32.gmra.mxu0 %v1032
        %v1051 = vpop.f32.mrf.mxu0
        %v1052 = vadd.f32 0.0, %v1051
        %1053 = vdwg.mxu0
        %1054 = vrot.lane.b32.xlu0 %v835, 96
        %v1055 = vpop.permute.xlu0 %1054
        %v1058 = vsel %vm385, %v975, 0
        %1060 = vmatpush.msra.mxu0 0.0
        %1061 = vmatpush.msra.mxu0 0.0
        %1062 = vmatpush.msra.mxu0 0.0
        %1063 = vmatpush.msra.mxu0 0.0
        %1064 = vmatpush.msra.mxu0 0.0
        %1065 = vmatpush.msra.mxu0 0.0
        %1066 = vmatpush.msra.mxu0 0.0
        %1067 = vmatpush.msra.mxu0 0.0
        %1068 = vmatpush.msra.mxu0 0.0
        %1069 = vmatpush.msra.mxu0 0.0
        %1070 = vmatpush.msra.mxu0 0.0
        %1071 = vmatpush.msra.mxu0 0.0
        %1072 = vmatpush.msra.mxu0 0.0
        %1073 = vmatpush.msra.mxu0 0.0
        %1074 = vmatpush.msra.mxu0 0.0
        %1075 = vmatpush.msra.mxu0 %v1055
        %1076 = vmatmul.f32.gmra.mxu0 %v1058
        %v1077 = vpop.f32.mrf.mxu0
        %v1078 = vadd.f32 0.0, %v1077
        %1079 = vdwg.mxu0
        %1081 = vrot.lane.b32.xlu0 %v1026, 8
        %v1082 = vpop.permute.xlu0 %1081
        %1085 = vrot.lane.b32.xlu0 %v1052, 16
        %v1086 = vpop.permute.xlu0 %1085
        %1089 = vrot.lane.b32.xlu0 %v1078, 24
        %v1090 = vpop.permute.xlu0 %1089
        %v1092 = vsel %vm385, %v1000, %v1082
        %v1093 = vsel %vm655, %v1092, %v1086
        %v1094 = vsel %vm657, %v1093, %v1090
        %1095 = vrot.lane.b32.xlu0 %v749, 32
        %v1096 = vpop.permute.xlu0 %1095
        %1097 = vrot.lane.b32.xlu0 %v750, 32
        %v1098 = vpop.permute.xlu0 %1097
        %1099 = vrot.lane.b32.xlu0 %v751, 32
        %v1100 = vpop.permute.xlu0 %1099
        %1101 = vrot.lane.b32.xlu0 %v752, 32
        %v1102 = vpop.permute.xlu0 %1101
        %1107 = vrot.lane.b32.xlu0 %v755, 32
        %v1108 = vpop.permute.xlu0 %1107
        %v1111 = vsel %vm352, %v1094, 0
        %1113 = vmatpush.msra.mxu0 0.0
        %1114 = vmatpush.msra.mxu0 0.0
        %1115 = vmatpush.msra.mxu0 0.0
        %1116 = vmatpush.msra.mxu0 0.0
        %1117 = vmatpush.msra.mxu0 0.0
        %1118 = vmatpush.msra.mxu0 0.0
        %1119 = vmatpush.msra.mxu0 0.0
        %1120 = vmatpush.msra.mxu0 0.0
        %1121 = vmatpush.msra.mxu0 0.0
        %1122 = vmatpush.msra.mxu0 0.0
        %1123 = vmatpush.msra.mxu0 0.0
        %1124 = vmatpush.msra.mxu0 0.0
        %1125 = vmatpush.msra.mxu0 %v1102
        %1126 = vmatpush.msra.mxu0 %v1100
        %1127 = vmatpush.msra.mxu0 %v1098
        %1128 = vmatpush.msra.mxu0 %v1096
        %1129 = vmatmul.f32.gmra.mxu0 %v1111
        %v1130 = vpop.f32.mrf.mxu0
        %v1131 = vadd.f32 %v1108, %v1130
        %1132 = vdwg.mxu0
        %v1133 = vadd.f32 %v748, %v1131
        %v1134 = vsel %vm352, %v1133, 0.0
        %1135 = vadd.xlane.f32.xlu0 %v1134
        %v1136 = vpop.xlane.xlu0 %1135
        %v1137 = vmul.f32 %v1136, %v712
        %v1138 = vsub.f32 %v1133, %v1137
        %v1139 = vmul.f32 %v1138, %v1138
        %v1140 = vsel %vm352, %v1139, 0.0
        %1141 = vadd.xlane.f32.xlu0 %v1140
        %v1142 = vpop.xlane.xlu0 %1141
        %v1143 = vmul.f32 %v1142, %v725
        %v1144 = vrsqrt.pop %v1143
        %v1145 = vmul.f32 %v1144, %v1143
        %v1146 = vmul.f32 %v1145, %v1144
        %v1147 = vmul.f32 0.5, %v1146
        %v1148 = vsub.f32 1.5, %v1147
        %v1149 = vmul.f32 %v1144, %v1148
        %v1150 = vmul.f32 %v1143, %v1149
        %vm1151 = vcmp.eq.f32.partialorder %v1143, inf
        %v1152 = vsel %vm1151, %v1143, %v1150
        %vm1153 = vcmp.eq.f32.partialorder %v1143, 0.0
        %v1154 = vand.u32 %v1143, 2147483648
        %v1155 = vsel %vm1153, %v1154, %v1152
        %v1156 = vadd.f32 %v1155, 1e-06
        %v1157 = vrcp.pop %v1156
        %v1158 = vmul.f32 %v1138, %v1157
        %v1159 = vperm.slane %v754, 0
        %v1160 = vmul.f32 %v1158, %v1159
        %1162 = vrot.lane.b32.xlu0 %v1159, 96
        %v1163 = vpop.permute.xlu0 %1162
        %v1165 = vadd.f32 %v1160, %v1163
        %v1166 = vld [vmem:[%s6 + $0x44] sm:$0xff]
        %v1167 = vld [vmem:[%s6 + $0x4c] sm:$0xff]
        %v1168 = vld [vmem:[%s6 + $0x54] sm:$0xff]
        %v1169 = vld [vmem:[%s6 + $0x5c] sm:$0xff]
        %v1170 = vld [vmem:[%s6 + $0x84] sm:$0x1]
        %v1171 = vld [vmem:[%s6 + $0x64] sm:$0xff]
        %v1172 = vld [vmem:[%s6 + $0x6c] sm:$0xff]
        %v1173 = vld [vmem:[%s6 + $0x74] sm:$0xff]
        %v1174 = vld [vmem:[%s6 + $0x7c] sm:$0xff]
        %v1175 = vld [vmem:[%s6 + $0x85] sm:$0x1]
        %v1176 = vperm.slane %v1170, 0
        %1181 = vrot.lane.b32.xlu0 %v1166, 96
        %v1182 = vpop.permute.xlu0 %1181
        %1183 = vrot.lane.b32.xlu0 %v1167, 96
        %v1184 = vpop.permute.xlu0 %1183
        %1185 = vrot.lane.b32.xlu0 %v1168, 96
        %v1186 = vpop.permute.xlu0 %1185
        %1187 = vrot.lane.b32.xlu0 %v1169, 96
        %v1188 = vpop.permute.xlu0 %1187
        %v1194 = vsel %vm352, %v1165, 0
        %1196 = vmatpush.msra.mxu0 0.0
        %1197 = vmatpush.msra.mxu0 0.0
        %1198 = vmatpush.msra.mxu0 0.0
        %1199 = vmatpush.msra.mxu0 0.0
        %1200 = vmatpush.msra.mxu0 0.0
        %1201 = vmatpush.msra.mxu0 0.0
        %1202 = vmatpush.msra.mxu0 0.0
        %1203 = vmatpush.msra.mxu0 0.0
        %1204 = vmatpush.msra.mxu0 0.0
        %1205 = vmatpush.msra.mxu0 0.0
        %1206 = vmatpush.msra.mxu0 0.0
        %1207 = vmatpush.msra.mxu0 0.0
        %1208 = vmatpush.msra.mxu0 %v1188
        %1209 = vmatpush.msra.mxu0 %v1186
        %1210 = vmatpush.msra.mxu0 %v1184
        %1211 = vmatpush.msra.mxu0 %v1182
        %1212 = vmatmul.f32.gmra.mxu0 %v1194
        %v1213 = vpop.f32.mrf.mxu0
        %v1214 = vadd.f32 %v1176, %v1213
        %1215 = vdwg.mxu0
        %v1216 = vmax.f32 %v1214, 0.0
        %1218 = vrot.lane.b32.xlu0 %v1176, 64
        %v1219 = vpop.permute.xlu0 %1218
        %vm1221 = vcmask 523264
        %v1223 = vsel %vm1221, %v1216, 0
        %1225 = vmatpush.msra.mxu0 0.0
        %1226 = vmatpush.msra.mxu0 0.0
        %1227 = vmatpush.msra.mxu0 0.0
        %1228 = vmatpush.msra.mxu0 0.0
        %1229 = vmatpush.msra.mxu0 0.0
        %1230 = vmatpush.msra.mxu0 0.0
        %1231 = vmatpush.msra.mxu0 0.0
        %1232 = vmatpush.msra.mxu0 0.0
        %1233 = vmatpush.msra.mxu0 %v1174
        %1234 = vmatpush.msra.mxu0 %v1173
        %1235 = vmatpush.msra.mxu0 %v1172
        %1236 = vmatpush.msra.mxu0 %v1171
        %1237 = vmatpush.msra.mxu0 %v1169
        %1238 = vmatpush.msra.mxu0 %v1168
        %1239 = vmatpush.msra.mxu0 %v1167
        %1240 = vmatpush.msra.mxu0 %v1166
        %1241 = vmatmul.f32.gmra.mxu0 %v1223
        %v1242 = vpop.f32.mrf.mxu0
        %v1243 = vadd.f32 %v1219, %v1242
        %1244 = vdwg.mxu0
        %v1245 = vadd.f32 %v1165, %v1243
        %v1246 = vsel %vm352, %v1245, 0.0
        %1247 = vadd.xlane.f32.xlu0 %v1246
        %v1248 = vpop.xlane.xlu0 %1247
        %v1249 = vmul.f32 %v1248, %v712
        %v1250 = vsub.f32 %v1245, %v1249
        %v1251 = vmul.f32 %v1250, %v1250
        %v1252 = vsel %vm352, %v1251, 0.0
        %1253 = vadd.xlane.f32.xlu0 %v1252
        %v1254 = vpop.xlane.xlu0 %1253
        %v1255 = vmul.f32 %v1254, %v725
        %v1256 = vrsqrt.pop %v1255
        %v1257 = vmul.f32 %v1256, %v1255
        %v1258 = vmul.f32 %v1257, %v1256
        %v1259 = vmul.f32 0.5, %v1258
        %v1260 = vsub.f32 1.5, %v1259
        %v1261 = vmul.f32 %v1256, %v1260
        %v1262 = vmul.f32 %v1255, %v1261
        %vm1263 = vcmp.eq.f32.partialorder %v1255, inf
        %v1264 = vsel %vm1263, %v1255, %v1262
        %vm1265 = vcmp.eq.f32.partialorder %v1255, 0.0
        %v1266 = vand.u32 %v1255, 2147483648
        %v1267 = vsel %vm1265, %v1266, %v1264
        %v1268 = vadd.f32 %v1267, 1e-06
        %v1269 = vrcp.pop %v1268
        %v1270 = vmul.f32 %v1250, %v1269
        %1271 = vrot.lane.b32.xlu0 %v1176, 32
        %v1272 = vpop.permute.xlu0 %1271
        %v1274 = vmul.f32 %v1270, %v1272
        %v1275 = vperm.slane %v1175, 0
        %v1276 = vadd.f32 %v1274, %v1275
        %v1277 = vld [vmem:[%s6 + $0x86] sm:$0xff]
        %v1278 = vld [vmem:[%s6 + $0x8e] sm:$0xff]
        %v1279 = vld [vmem:[%s6 + $0x96] sm:$0xff]
        %v1280 = vld [vmem:[%s6 + $0x9e] sm:$0xff]
        %v1281 = vld [vmem:[%s6 + $0xa6] sm:$0x1]
        %v1282 = vld [vmem:[%s6 + $0xa7] sm:$0x1]
        %v1283 = vperm.slane %v1281, 0
        %v1285 = vsel %vm352, %v1276, 0
        %1287 = vmatpush.msra.mxu0 0.0
        %1288 = vmatpush.msra.mxu0 0.0
        %1289 = vmatpush.msra.mxu0 0.0
        %1290 = vmatpush.msra.mxu0 0.0
        %1291 = vmatpush.msra.mxu0 0.0
        %1292 = vmatpush.msra.mxu0 0.0
        %1293 = vmatpush.msra.mxu0 0.0
        %1294 = vmatpush.msra.mxu0 0.0
        %1295 = vmatpush.msra.mxu0 0.0
        %1296 = vmatpush.msra.mxu0 0.0
        %1297 = vmatpush.msra.mxu0 0.0
        %1298 = vmatpush.msra.mxu0 0.0
        %1299 = vmatpush.msra.mxu0 %v1280
        %1300 = vmatpush.msra.mxu0 %v1279
        %1301 = vmatpush.msra.mxu0 %v1278
        %1302 = vmatpush.msra.mxu0 %v1277
        %1303 = vmatmul.f32.gmra.mxu0 %v1285
        %v1304 = vpop.f32.mrf.mxu0
        %v1305 = vadd.f32 %v1283, %v1304
        %1306 = vdwg.mxu0
        %1308 = vrot.lane.b32.xlu0 %v1305, 120
        %v1309 = vpop.permute.xlu0 %1308
        %1310 = vrot.lane.b32.xlu0 %v1305, 112
        %v1311 = vpop.permute.xlu0 %1310
        %1312 = vrot.lane.b32.xlu0 %v1305, 104
        %v1313 = vpop.permute.xlu0 %1312
        %1314 = vrot.lane.b32.xlu0 %v1305, 96
        %v1315 = vpop.permute.xlu0 %1314
        %v1316 = vsel %vm385, %v1305, 0
        %v1318 = vsel %vm385, %v1315, 0
        %1320 = vmatpush.xpose.msra.mxu0 0.0
        %1321 = vmatpush.xpose.msra.mxu0 0.0
        %1322 = vmatpush.xpose.msra.mxu0 0.0
        %1323 = vmatpush.xpose.msra.mxu0 0.0
        %1324 = vmatpush.xpose.msra.mxu0 0.0
        %1325 = vmatpush.xpose.msra.mxu0 0.0
        %1326 = vmatpush.xpose.msra.mxu0 0.0
        %1327 = vmatpush.xpose.msra.mxu0 0.0
        %1328 = vmatpush.xpose.msra.mxu0 0.0
        %1329 = vmatpush.xpose.msra.mxu0 0.0
        %1330 = vmatpush.xpose.msra.mxu0 0.0
        %1331 = vmatpush.xpose.msra.mxu0 0.0
        %1332 = vmatpush.xpose.msra.mxu0 0.0
        %1333 = vmatpush.xpose.msra.mxu0 0.0
        %1334 = vmatpush.xpose.msra.mxu0 0.0
        %1335 = vmatpush.xpose.msra.mxu0 %v1318
        %1336 = vmatmul.f32.gmra.mxu0 %v1316
        %v1337 = vpop.f32.mrf.mxu0
        %v1338 = vadd.f32 0.0, %v1337
        %1339 = vdwg.mxu0
        %1340 = vrot.lane.b32.xlu0 %v1309, 96
        %v1341 = vpop.permute.xlu0 %1340
        %v1342 = vsel %vm385, %v1309, 0
        %v1344 = vsel %vm385, %v1341, 0
        %1346 = vmatpush.xpose.msra.mxu0 0.0
        %1347 = vmatpush.xpose.msra.mxu0 0.0
        %1348 = vmatpush.xpose.msra.mxu0 0.0
        %1349 = vmatpush.xpose.msra.mxu0 0.0
        %1350 = vmatpush.xpose.msra.mxu0 0.0
        %1351 = vmatpush.xpose.msra.mxu0 0.0
        %1352 = vmatpush.xpose.msra.mxu0 0.0
        %1353 = vmatpush.xpose.msra.mxu0 0.0
        %1354 = vmatpush.xpose.msra.mxu0 0.0
        %1355 = vmatpush.xpose.msra.mxu0 0.0
        %1356 = vmatpush.xpose.msra.mxu0 0.0
        %1357 = vmatpush.xpose.msra.mxu0 0.0
        %1358 = vmatpush.xpose.msra.mxu0 0.0
        %1359 = vmatpush.xpose.msra.mxu0 0.0
        %1360 = vmatpush.xpose.msra.mxu0 0.0
        %1361 = vmatpush.xpose.msra.mxu0 %v1344
        %1362 = vmatmul.f32.gmra.mxu0 %v1342
        %v1363 = vpop.f32.mrf.mxu0
        %v1364 = vadd.f32 0.0, %v1363
        %1365 = vdwg.mxu0
        %1366 = vrot.lane.b32.xlu0 %v1311, 96
        %v1367 = vpop.permute.xlu0 %1366
        %v1368 = vsel %vm385, %v1311, 0
        %v1370 = vsel %vm385, %v1367, 0
        %1372 = vmatpush.xpose.msra.mxu0 0.0
        %1373 = vmatpush.xpose.msra.mxu0 0.0
        %1374 = vmatpush.xpose.msra.mxu0 0.0
        %1375 = vmatpush.xpose.msra.mxu0 0.0
        %1376 = vmatpush.xpose.msra.mxu0 0.0
        %1377 = vmatpush.xpose.msra.mxu0 0.0
        %1378 = vmatpush.xpose.msra.mxu0 0.0
        %1379 = vmatpush.xpose.msra.mxu0 0.0
        %1380 = vmatpush.xpose.msra.mxu0 0.0
        %1381 = vmatpush.xpose.msra.mxu0 0.0
        %1382 = vmatpush.xpose.msra.mxu0 0.0
        %1383 = vmatpush.xpose.msra.mxu0 0.0
        %1384 = vmatpush.xpose.msra.mxu0 0.0
        %1385 = vmatpush.xpose.msra.mxu0 0.0
        %1386 = vmatpush.xpose.msra.mxu0 0.0
        %1387 = vmatpush.xpose.msra.mxu0 %v1370
        %1388 = vmatmul.f32.gmra.mxu0 %v1368
        %v1389 = vpop.f32.mrf.mxu0
        %v1390 = vadd.f32 0.0, %v1389
        %1391 = vdwg.mxu0
        %1392 = vrot.lane.b32.xlu0 %v1313, 96
        %v1393 = vpop.permute.xlu0 %1392
        %v1394 = vsel %vm385, %v1313, 0
        %v1396 = vsel %vm385, %v1393, 0
        %1398 = vmatpush.xpose.msra.mxu0 0.0
        %1399 = vmatpush.xpose.msra.mxu0 0.0
        %1400 = vmatpush.xpose.msra.mxu0 0.0
        %1401 = vmatpush.xpose.msra.mxu0 0.0
        %1402 = vmatpush.xpose.msra.mxu0 0.0
        %1403 = vmatpush.xpose.msra.mxu0 0.0
        %1404 = vmatpush.xpose.msra.mxu0 0.0
        %1405 = vmatpush.xpose.msra.mxu0 0.0
        %1406 = vmatpush.xpose.msra.mxu0 0.0
        %1407 = vmatpush.xpose.msra.mxu0 0.0
        %1408 = vmatpush.xpose.msra.mxu0 0.0
        %1409 = vmatpush.xpose.msra.mxu0 0.0
        %1410 = vmatpush.xpose.msra.mxu0 0.0
        %1411 = vmatpush.xpose.msra.mxu0 0.0
        %1412 = vmatpush.xpose.msra.mxu0 0.0
        %1413 = vmatpush.xpose.msra.mxu0 %v1396
        %1414 = vmatmul.f32.gmra.mxu0 %v1394
        %v1415 = vpop.f32.mrf.mxu0
        %v1416 = vadd.f32 0.0, %v1415
        %1417 = vdwg.mxu0
        %v1418 = vsel %vm489, -1e+30, %v1338
        %v1419 = vsel %vm489, -1e+30, %v1364
        %v1420 = vsel %vm489, -1e+30, %v1390
        %v1421 = vsel %vm489, -1e+30, %v1416
        %v1422 = vsel %vm385, %v1418, -inf
        %1423 = vmax.xlane.f32.xlu0 %v1422
        %v1424 = vpop.xlane.xlu0 %1423
        %v1425 = vsel %vm385, %v1419, -inf
        %1426 = vmax.xlane.f32.xlu0 %v1425
        %v1427 = vpop.xlane.xlu0 %1426
        %v1428 = vsel %vm385, %v1420, -inf
        %1429 = vmax.xlane.f32.xlu0 %v1428
        %v1430 = vpop.xlane.xlu0 %1429
        %v1431 = vsel %vm385, %v1421, -inf
        %1432 = vmax.xlane.f32.xlu0 %v1431
        %v1433 = vpop.xlane.xlu0 %1432
        %v1434 = vsub.f32 %v1418, %v1424
        %v1435 = vsub.f32 %v1419, %v1427
        %v1436 = vsub.f32 %v1420, %v1430
        %v1437 = vsub.f32 %v1421, %v1433
        %v1438 = vmul.f32 %v1434, 1.442695
        %v1439 = vpow.pop %v1438
        %v1440 = vmul.f32 %v1435, 1.442695
        %v1441 = vpow.pop %v1440
        %v1442 = vmul.f32 %v1436, 1.442695
        %v1443 = vpow.pop %v1442
        %v1444 = vmul.f32 %v1437, 1.442695
        %v1445 = vpow.pop %v1444
        %v1446 = vsel %vm385, %v1439, 0.0
        %1447 = vadd.xlane.f32.xlu0 %v1446
        %v1448 = vpop.xlane.xlu0 %1447
        %v1449 = vsel %vm385, %v1441, 0.0
        %1450 = vadd.xlane.f32.xlu0 %v1449
        %v1451 = vpop.xlane.xlu0 %1450
        %v1452 = vsel %vm385, %v1443, 0.0
        %1453 = vadd.xlane.f32.xlu0 %v1452
        %v1454 = vpop.xlane.xlu0 %1453
        %v1455 = vsel %vm385, %v1445, 0.0
        %1456 = vadd.xlane.f32.xlu0 %v1455
        %v1457 = vpop.xlane.xlu0 %1456
        %v1458 = vrcp.pop %v1448
        %v1459 = vrcp.pop %v1451
        %v1460 = vrcp.pop %v1454
        %v1461 = vrcp.pop %v1457
        %v1462 = vmul.f32 %v1439, %v1458
        %v1463 = vmul.f32 %v1441, %v1459
        %v1464 = vmul.f32 %v1443, %v1460
        %v1465 = vmul.f32 %v1445, %v1461
        %1466 = vrot.lane.b32.xlu0 %v1305, 64
        %v1467 = vpop.permute.xlu0 %1466
        %v1470 = vsel %vm385, %v1462, 0
        %1472 = vmatpush.msra.mxu0 0.0
        %1473 = vmatpush.msra.mxu0 0.0
        %1474 = vmatpush.msra.mxu0 0.0
        %1475 = vmatpush.msra.mxu0 0.0
        %1476 = vmatpush.msra.mxu0 0.0
        %1477 = vmatpush.msra.mxu0 0.0
        %1478 = vmatpush.msra.mxu0 0.0
        %1479 = vmatpush.msra.mxu0 0.0
        %1480 = vmatpush.msra.mxu0 0.0
        %1481 = vmatpush.msra.mxu0 0.0
        %1482 = vmatpush.msra.mxu0 0.0
        %1483 = vmatpush.msra.mxu0 0.0
        %1484 = vmatpush.msra.mxu0 0.0
        %1485 = vmatpush.msra.mxu0 0.0
        %1486 = vmatpush.msra.mxu0 0.0
        %1487 = vmatpush.msra.mxu0 %v1467
        %1488 = vmatmul.f32.gmra.mxu0 %v1470
        %v1489 = vpop.f32.mrf.mxu0
        %v1490 = vadd.f32 0.0, %v1489
        %1491 = vdwg.mxu0
        %1492 = vrot.lane.b32.xlu0 %v1309, 64
        %v1493 = vpop.permute.xlu0 %1492
        %v1496 = vsel %vm385, %v1463, 0
        %1498 = vmatpush.msra.mxu0 0.0
        %1499 = vmatpush.msra.mxu0 0.0
        %1500 = vmatpush.msra.mxu0 0.0
        %1501 = vmatpush.msra.mxu0 0.0
        %1502 = vmatpush.msra.mxu0 0.0
        %1503 = vmatpush.msra.mxu0 0.0
        %1504 = vmatpush.msra.mxu0 0.0
        %1505 = vmatpush.msra.mxu0 0.0
        %1506 = vmatpush.msra.mxu0 0.0
        %1507 = vmatpush.msra.mxu0 0.0
        %1508 = vmatpush.msra.mxu0 0.0
        %1509 = vmatpush.msra.mxu0 0.0
        %1510 = vmatpush.msra.mxu0 0.0
        %1511 = vmatpush.msra.mxu0 0.0
        %1512 = vmatpush.msra.mxu0 0.0
        %1513 = vmatpush.msra.mxu0 %v1493
        %1514 = vmatmul.f32.gmra.mxu0 %v1496
        %v1515 = vpop.f32.mrf.mxu0
        %v1516 = vadd.f32 0.0, %v1515
        %1517 = vdwg.mxu0
        %1518 = vrot.lane.b32.xlu0 %v1311, 64
        %v1519 = vpop.permute.xlu0 %1518
        %v1522 = vsel %vm385, %v1464, 0
        %1524 = vmatpush.msra.mxu0 0.0
        %1525 = vmatpush.msra.mxu0 0.0
        %1526 = vmatpush.msra.mxu0 0.0
        %1527 = vmatpush.msra.mxu0 0.0
        %1528 = vmatpush.msra.mxu0 0.0
        %1529 = vmatpush.msra.mxu0 0.0
        %1530 = vmatpush.msra.mxu0 0.0
        %1531 = vmatpush.msra.mxu0 0.0
        %1532 = vmatpush.msra.mxu0 0.0
        %1533 = vmatpush.msra.mxu0 0.0
        %1534 = vmatpush.msra.mxu0 0.0
        %1535 = vmatpush.msra.mxu0 0.0
        %1536 = vmatpush.msra.mxu0 0.0
        %1537 = vmatpush.msra.mxu0 0.0
        %1538 = vmatpush.msra.mxu0 0.0
        %1539 = vmatpush.msra.mxu0 %v1519
        %1540 = vmatmul.f32.gmra.mxu0 %v1522
        %v1541 = vpop.f32.mrf.mxu0
        %v1542 = vadd.f32 0.0, %v1541
        %1543 = vdwg.mxu0
        %1544 = vrot.lane.b32.xlu0 %v1313, 64
        %v1545 = vpop.permute.xlu0 %1544
        %v1548 = vsel %vm385, %v1465, 0
        %1550 = vmatpush.msra.mxu0 0.0
        %1551 = vmatpush.msra.mxu0 0.0
        %1552 = vmatpush.msra.mxu0 0.0
        %1553 = vmatpush.msra.mxu0 0.0
        %1554 = vmatpush.msra.mxu0 0.0
        %1555 = vmatpush.msra.mxu0 0.0
        %1556 = vmatpush.msra.mxu0 0.0
        %1557 = vmatpush.msra.mxu0 0.0
        %1558 = vmatpush.msra.mxu0 0.0
        %1559 = vmatpush.msra.mxu0 0.0
        %1560 = vmatpush.msra.mxu0 0.0
        %1561 = vmatpush.msra.mxu0 0.0
        %1562 = vmatpush.msra.mxu0 0.0
        %1563 = vmatpush.msra.mxu0 0.0
        %1564 = vmatpush.msra.mxu0 0.0
        %1565 = vmatpush.msra.mxu0 %v1545
        %1566 = vmatmul.f32.gmra.mxu0 %v1548
        %v1567 = vpop.f32.mrf.mxu0
        %v1568 = vadd.f32 0.0, %v1567
        %1569 = vdwg.mxu0
        %1571 = vrot.lane.b32.xlu0 %v1516, 8
        %v1572 = vpop.permute.xlu0 %1571
        %1575 = vrot.lane.b32.xlu0 %v1542, 16
        %v1576 = vpop.permute.xlu0 %1575
        %1579 = vrot.lane.b32.xlu0 %v1568, 24
        %v1580 = vpop.permute.xlu0 %1579
        %v1582 = vsel %vm385, %v1490, %v1572
        %v1583 = vsel %vm655, %v1582, %v1576
        %v1584 = vsel %vm657, %v1583, %v1580
        %1589 = vrot.lane.b32.xlu0 %v1277, 32
        %v1590 = vpop.permute.xlu0 %1589
        %1591 = vrot.lane.b32.xlu0 %v1278, 32
        %v1592 = vpop.permute.xlu0 %1591
        %1593 = vrot.lane.b32.xlu0 %v1279, 32
        %v1594 = vpop.permute.xlu0 %1593
        %1595 = vrot.lane.b32.xlu0 %v1280, 32
        %v1596 = vpop.permute.xlu0 %1595
        %1602 = vrot.lane.b32.xlu0 %v1283, 32
        %v1603 = vpop.permute.xlu0 %1602
        %v1606 = vsel %vm352, %v1584, 0
        %1608 = vmatpush.msra.mxu0 0.0
        %1609 = vmatpush.msra.mxu0 0.0
        %1610 = vmatpush.msra.mxu0 0.0
        %1611 = vmatpush.msra.mxu0 0.0
        %1612 = vmatpush.msra.mxu0 0.0
        %1613 = vmatpush.msra.mxu0 0.0
        %1614 = vmatpush.msra.mxu0 0.0
        %1615 = vmatpush.msra.mxu0 0.0
        %1616 = vmatpush.msra.mxu0 0.0
        %1617 = vmatpush.msra.mxu0 0.0
        %1618 = vmatpush.msra.mxu0 0.0
        %1619 = vmatpush.msra.mxu0 0.0
        %1620 = vmatpush.msra.mxu0 %v1596
        %1621 = vmatpush.msra.mxu0 %v1594
        %1622 = vmatpush.msra.mxu0 %v1592
        %1623 = vmatpush.msra.mxu0 %v1590
        %1624 = vmatmul.f32.gmra.mxu0 %v1606
        %v1625 = vpop.f32.mrf.mxu0
        %v1626 = vadd.f32 %v1603, %v1625
        %1627 = vdwg.mxu0
        %v1628 = vadd.f32 %v1276, %v1626
        %v1629 = vsel %vm352, %v1628, 0.0
        %1630 = vadd.xlane.f32.xlu0 %v1629
        %v1631 = vpop.xlane.xlu0 %1630
        %v1632 = vmul.f32 %v1631, %v712
        %v1633 = vsub.f32 %v1628, %v1632
        %v1634 = vmul.f32 %v1633, %v1633
        %v1635 = vsel %vm352, %v1634, 0.0
        %1636 = vadd.xlane.f32.xlu0 %v1635
        %v1637 = vpop.xlane.xlu0 %1636
        %v1638 = vmul.f32 %v1637, %v725
        %v1639 = vrsqrt.pop %v1638
        %v1640 = vmul.f32 %v1639, %v1638
        %v1641 = vmul.f32 %v1640, %v1639
        %v1642 = vmul.f32 0.5, %v1641
        %v1643 = vsub.f32 1.5, %v1642
        %v1644 = vmul.f32 %v1639, %v1643
        %v1645 = vmul.f32 %v1638, %v1644
        %vm1646 = vcmp.eq.f32.partialorder %v1638, inf
        %v1647 = vsel %vm1646, %v1638, %v1645
        %vm1648 = vcmp.eq.f32.partialorder %v1638, 0.0
        %v1649 = vand.u32 %v1638, 2147483648
        %v1650 = vsel %vm1648, %v1649, %v1647
        %v1651 = vadd.f32 %v1650, 1e-06
        %v1652 = vrcp.pop %v1651
        %v1653 = vmul.f32 %v1633, %v1652
        %v1654 = vperm.slane %v1282, 0
        %v1655 = vmul.f32 %v1653, %v1654
        %1657 = vrot.lane.b32.xlu0 %v1654, 96
        %v1658 = vpop.permute.xlu0 %1657
        %v1660 = vadd.f32 %v1655, %v1658
        %v1661 = vld [vmem:[%s6 + $0xa8] sm:$0xff]
        %v1662 = vld [vmem:[%s6 + $0xb0] sm:$0xff]
        %v1663 = vld [vmem:[%s6 + $0xb8] sm:$0xff]
        %v1664 = vld [vmem:[%s6 + $0xc0] sm:$0xff]
        %v1665 = vld [vmem:[%s6 + $0xc8] sm:$0x1]
        %v1666 = vld [vmem:[%s6 + $0xc9] sm:$0x1]
        %v1667 = vperm.slane %v1665, 0
        %v1669 = vsel %vm352, %v1660, 0
        %1671 = vmatpush.msra.mxu0 0.0
        %1672 = vmatpush.msra.mxu0 0.0
        %1673 = vmatpush.msra.mxu0 0.0
        %1674 = vmatpush.msra.mxu0 0.0
        %1675 = vmatpush.msra.mxu0 0.0
        %1676 = vmatpush.msra.mxu0 0.0
        %1677 = vmatpush.msra.mxu0 0.0
        %1678 = vmatpush.msra.mxu0 0.0
        %1679 = vmatpush.msra.mxu0 0.0
        %1680 = vmatpush.msra.mxu0 0.0
        %1681 = vmatpush.msra.mxu0 0.0
        %1682 = vmatpush.msra.mxu0 0.0
        %1683 = vmatpush.msra.mxu0 %v1664
        %1684 = vmatpush.msra.mxu0 %v1663
        %1685 = vmatpush.msra.mxu0 %v1662
        %1686 = vmatpush.msra.mxu0 %v1661
        %1687 = vmatmul.f32.gmra.mxu0 %v1669
        %v1688 = vpop.f32.mrf.mxu0
        %v1689 = vadd.f32 %v1667, %v1688
        %1690 = vdwg.mxu0
        %1695 = vrot.lane.b32.xlu0 %v1661, 96
        %v1696 = vpop.permute.xlu0 %1695
        %1697 = vrot.lane.b32.xlu0 %v1662, 96
        %v1698 = vpop.permute.xlu0 %1697
        %1699 = vrot.lane.b32.xlu0 %v1663, 96
        %v1700 = vpop.permute.xlu0 %1699
        %1701 = vrot.lane.b32.xlu0 %v1664, 96
        %v1702 = vpop.permute.xlu0 %1701
        %1708 = vrot.lane.b32.xlu0 %v1667, 96
        %v1709 = vpop.permute.xlu0 %1708
        %1711 = vmatpush.msra.mxu0 0.0
        %1712 = vmatpush.msra.mxu0 0.0
        %1713 = vmatpush.msra.mxu0 0.0
        %1714 = vmatpush.msra.mxu0 0.0
        %1715 = vmatpush.msra.mxu0 0.0
        %1716 = vmatpush.msra.mxu0 0.0
        %1717 = vmatpush.msra.mxu0 0.0
        %1718 = vmatpush.msra.mxu0 0.0
        %1719 = vmatpush.msra.mxu0 0.0
        %1720 = vmatpush.msra.mxu0 0.0
        %1721 = vmatpush.msra.mxu0 0.0
        %1722 = vmatpush.msra.mxu0 0.0
        %1723 = vmatpush.msra.mxu0 %v1702
        %1724 = vmatpush.msra.mxu0 %v1700
        %1725 = vmatpush.msra.mxu0 %v1698
        %1726 = vmatpush.msra.mxu0 %v1696
        %1727 = vmatmul.f32.gmra.mxu0 %v800
        %v1728 = vpop.f32.mrf.mxu0
        %v1729 = vadd.f32 %v1709, %v1728
        %1730 = vdwg.mxu0
        %1732 = vrot.lane.b32.xlu0 %v1689, 120
        %v1733 = vpop.permute.xlu0 %1732
        %1734 = vrot.lane.b32.xlu0 %v1689, 112
        %v1735 = vpop.permute.xlu0 %1734
        %1736 = vrot.lane.b32.xlu0 %v1689, 104
        %v1737 = vpop.permute.xlu0 %1736
        %1739 = vrot.lane.b32.xlu0 %v1729, 120
        %v1740 = vpop.permute.xlu0 %1739
        %1741 = vrot.lane.b32.xlu0 %v1729, 112
        %v1742 = vpop.permute.xlu0 %1741
        %1743 = vrot.lane.b32.xlu0 %v1729, 104
        %v1744 = vpop.permute.xlu0 %1743
        %v1745 = vsel %vm385, %v1689, 0
        %v1747 = vsel %vm385, %v1729, 0
        %1749 = vmatpush.xpose.msra.mxu0 0.0
        %1750 = vmatpush.xpose.msra.mxu0 0.0
        %1751 = vmatpush.xpose.msra.mxu0 0.0
        %1752 = vmatpush.xpose.msra.mxu0 0.0
        %1753 = vmatpush.xpose.msra.mxu0 0.0
        %1754 = vmatpush.xpose.msra.mxu0 0.0
        %1755 = vmatpush.xpose.msra.mxu0 0.0
        %1756 = vmatpush.xpose.msra.mxu0 0.0
        %1757 = vmatpush.xpose.msra.mxu0 0.0
        %1758 = vmatpush.xpose.msra.mxu0 0.0
        %1759 = vmatpush.xpose.msra.mxu0 0.0
        %1760 = vmatpush.xpose.msra.mxu0 0.0
        %1761 = vmatpush.xpose.msra.mxu0 0.0
        %1762 = vmatpush.xpose.msra.mxu0 0.0
        %1763 = vmatpush.xpose.msra.mxu0 0.0
        %1764 = vmatpush.xpose.msra.mxu0 %v1747
        %1765 = vmatmul.f32.gmra.mxu0 %v1745
        %v1766 = vpop.f32.mrf.mxu0
        %v1767 = vadd.f32 0.0, %v1766
        %1768 = vdwg.mxu0
        %v1769 = vsel %vm385, %v1733, 0
        %v1771 = vsel %vm385, %v1740, 0
        %1773 = vmatpush.xpose.msra.mxu0 0.0
        %1774 = vmatpush.xpose.msra.mxu0 0.0
        %1775 = vmatpush.xpose.msra.mxu0 0.0
        %1776 = vmatpush.xpose.msra.mxu0 0.0
        %1777 = vmatpush.xpose.msra.mxu0 0.0
        %1778 = vmatpush.xpose.msra.mxu0 0.0
        %1779 = vmatpush.xpose.msra.mxu0 0.0
        %1780 = vmatpush.xpose.msra.mxu0 0.0
        %1781 = vmatpush.xpose.msra.mxu0 0.0
        %1782 = vmatpush.xpose.msra.mxu0 0.0
        %1783 = vmatpush.xpose.msra.mxu0 0.0
        %1784 = vmatpush.xpose.msra.mxu0 0.0
        %1785 = vmatpush.xpose.msra.mxu0 0.0
        %1786 = vmatpush.xpose.msra.mxu0 0.0
        %1787 = vmatpush.xpose.msra.mxu0 0.0
        %1788 = vmatpush.xpose.msra.mxu0 %v1771
        %1789 = vmatmul.f32.gmra.mxu0 %v1769
        %v1790 = vpop.f32.mrf.mxu0
        %v1791 = vadd.f32 0.0, %v1790
        %1792 = vdwg.mxu0
        %v1793 = vsel %vm385, %v1735, 0
        %v1795 = vsel %vm385, %v1742, 0
        %1797 = vmatpush.xpose.msra.mxu0 0.0
        %1798 = vmatpush.xpose.msra.mxu0 0.0
        %1799 = vmatpush.xpose.msra.mxu0 0.0
        %1800 = vmatpush.xpose.msra.mxu0 0.0
        %1801 = vmatpush.xpose.msra.mxu0 0.0
        %1802 = vmatpush.xpose.msra.mxu0 0.0
        %1803 = vmatpush.xpose.msra.mxu0 0.0
        %1804 = vmatpush.xpose.msra.mxu0 0.0
        %1805 = vmatpush.xpose.msra.mxu0 0.0
        %1806 = vmatpush.xpose.msra.mxu0 0.0
        %1807 = vmatpush.xpose.msra.mxu0 0.0
        %1808 = vmatpush.xpose.msra.mxu0 0.0
        %1809 = vmatpush.xpose.msra.mxu0 0.0
        %1810 = vmatpush.xpose.msra.mxu0 0.0
        %1811 = vmatpush.xpose.msra.mxu0 0.0
        %1812 = vmatpush.xpose.msra.mxu0 %v1795
        %1813 = vmatmul.f32.gmra.mxu0 %v1793
        %v1814 = vpop.f32.mrf.mxu0
        %v1815 = vadd.f32 0.0, %v1814
        %1816 = vdwg.mxu0
        %v1817 = vsel %vm385, %v1737, 0
        %v1819 = vsel %vm385, %v1744, 0
        %1821 = vmatpush.xpose.msra.mxu0 0.0
        %1822 = vmatpush.xpose.msra.mxu0 0.0
        %1823 = vmatpush.xpose.msra.mxu0 0.0
        %1824 = vmatpush.xpose.msra.mxu0 0.0
        %1825 = vmatpush.xpose.msra.mxu0 0.0
        %1826 = vmatpush.xpose.msra.mxu0 0.0
        %1827 = vmatpush.xpose.msra.mxu0 0.0
        %1828 = vmatpush.xpose.msra.mxu0 0.0
        %1829 = vmatpush.xpose.msra.mxu0 0.0
        %1830 = vmatpush.xpose.msra.mxu0 0.0
        %1831 = vmatpush.xpose.msra.mxu0 0.0
        %1832 = vmatpush.xpose.msra.mxu0 0.0
        %1833 = vmatpush.xpose.msra.mxu0 0.0
        %1834 = vmatpush.xpose.msra.mxu0 0.0
        %1835 = vmatpush.xpose.msra.mxu0 0.0
        %1836 = vmatpush.xpose.msra.mxu0 %v1819
        %1837 = vmatmul.f32.gmra.mxu0 %v1817
        %v1838 = vpop.f32.mrf.mxu0
        %v1839 = vadd.f32 0.0, %v1838
        %1840 = vdwg.mxu0
        %v1841 = vsel %vm385, %v1767, -inf
        %1842 = vmax.xlane.f32.xlu0 %v1841
        %v1843 = vpop.xlane.xlu0 %1842
        %v1844 = vsel %vm385, %v1791, -inf
        %1845 = vmax.xlane.f32.xlu0 %v1844
        %v1846 = vpop.xlane.xlu0 %1845
        %v1847 = vsel %vm385, %v1815, -inf
        %1848 = vmax.xlane.f32.xlu0 %v1847
        %v1849 = vpop.xlane.xlu0 %1848
        %v1850 = vsel %vm385, %v1839, -inf
        %1851 = vmax.xlane.f32.xlu0 %v1850
        %v1852 = vpop.xlane.xlu0 %1851
        %v1853 = vsub.f32 %v1767, %v1843
        %v1854 = vsub.f32 %v1791, %v1846
        %v1855 = vsub.f32 %v1815, %v1849
        %v1856 = vsub.f32 %v1839, %v1852
        %v1857 = vmul.f32 %v1853, 1.442695
        %v1858 = vpow.pop %v1857
        %v1859 = vmul.f32 %v1854, 1.442695
        %v1860 = vpow.pop %v1859
        %v1861 = vmul.f32 %v1855, 1.442695
        %v1862 = vpow.pop %v1861
        %v1863 = vmul.f32 %v1856, 1.442695
        %v1864 = vpow.pop %v1863
        %v1865 = vsel %vm385, %v1858, 0.0
        %1866 = vadd.xlane.f32.xlu0 %v1865
        %v1867 = vpop.xlane.xlu0 %1866
        %v1868 = vsel %vm385, %v1860, 0.0
        %1869 = vadd.xlane.f32.xlu0 %v1868
        %v1870 = vpop.xlane.xlu0 %1869
        %v1871 = vsel %vm385, %v1862, 0.0
        %1872 = vadd.xlane.f32.xlu0 %v1871
        %v1873 = vpop.xlane.xlu0 %1872
        %v1874 = vsel %vm385, %v1864, 0.0
        %1875 = vadd.xlane.f32.xlu0 %v1874
        %v1876 = vpop.xlane.xlu0 %1875
        %v1877 = vrcp.pop %v1867
        %v1878 = vrcp.pop %v1870
        %v1879 = vrcp.pop %v1873
        %v1880 = vrcp.pop %v1876
        %v1881 = vmul.f32 %v1858, %v1877
        %v1882 = vmul.f32 %v1860, %v1878
        %v1883 = vmul.f32 %v1862, %v1879
        %v1884 = vmul.f32 %v1864, %v1880
        %1885 = vrot.lane.b32.xlu0 %v1729, 96
        %v1886 = vpop.permute.xlu0 %1885
        %v1889 = vsel %vm385, %v1881, 0
        %1891 = vmatpush.msra.mxu0 0.0
        %1892 = vmatpush.msra.mxu0 0.0
        %1893 = vmatpush.msra.mxu0 0.0
        %1894 = vmatpush.msra.mxu0 0.0
        %1895 = vmatpush.msra.mxu0 0.0
        %1896 = vmatpush.msra.mxu0 0.0
        %1897 = vmatpush.msra.mxu0 0.0
        %1898 = vmatpush.msra.mxu0 0.0
        %1899 = vmatpush.msra.mxu0 0.0
        %1900 = vmatpush.msra.mxu0 0.0
        %1901 = vmatpush.msra.mxu0 0.0
        %1902 = vmatpush.msra.mxu0 0.0
        %1903 = vmatpush.msra.mxu0 0.0
        %1904 = vmatpush.msra.mxu0 0.0
        %1905 = vmatpush.msra.mxu0 0.0
        %1906 = vmatpush.msra.mxu0 %v1886
        %1907 = vmatmul.f32.gmra.mxu0 %v1889
        %v1908 = vpop.f32.mrf.mxu0
        %v1909 = vadd.f32 0.0, %v1908
        %1910 = vdwg.mxu0
        %1911 = vrot.lane.b32.xlu0 %v1740, 96
        %v1912 = vpop.permute.xlu0 %1911
        %v1915 = vsel %vm385, %v1882, 0
        %1917 = vmatpush.msra.mxu0 0.0
        %1918 = vmatpush.msra.mxu0 0.0
        %1919 = vmatpush.msra.mxu0 0.0
        %1920 = vmatpush.msra.mxu0 0.0
        %1921 = vmatpush.msra.mxu0 0.0
        %1922 = vmatpush.msra.mxu0 0.0
        %1923 = vmatpush.msra.mxu0 0.0
        %1924 = vmatpush.msra.mxu0 0.0
        %1925 = vmatpush.msra.mxu0 0.0
        %1926 = vmatpush.msra.mxu0 0.0
        %1927 = vmatpush.msra.mxu0 0.0
        %1928 = vmatpush.msra.mxu0 0.0
        %1929 = vmatpush.msra.mxu0 0.0
        %1930 = vmatpush.msra.mxu0 0.0
        %1931 = vmatpush.msra.mxu0 0.0
        %1932 = vmatpush.msra.mxu0 %v1912
        %1933 = vmatmul.f32.gmra.mxu0 %v1915
        %v1934 = vpop.f32.mrf.mxu0
        %v1935 = vadd.f32 0.0, %v1934
        %1936 = vdwg.mxu0
        %1937 = vrot.lane.b32.xlu0 %v1742, 96
        %v1938 = vpop.permute.xlu0 %1937
        %v1941 = vsel %vm385, %v1883, 0
        %1943 = vmatpush.msra.mxu0 0.0
        %1944 = vmatpush.msra.mxu0 0.0
        %1945 = vmatpush.msra.mxu0 0.0
        %1946 = vmatpush.msra.mxu0 0.0
        %1947 = vmatpush.msra.mxu0 0.0
        %1948 = vmatpush.msra.mxu0 0.0
        %1949 = vmatpush.msra.mxu0 0.0
        %1950 = vmatpush.msra.mxu0 0.0
        %1951 = vmatpush.msra.mxu0 0.0
        %1952 = vmatpush.msra.mxu0 0.0
        %1953 = vmatpush.msra.mxu0 0.0
        %1954 = vmatpush.msra.mxu0 0.0
        %1955 = vmatpush.msra.mxu0 0.0
        %1956 = vmatpush.msra.mxu0 0.0
        %1957 = vmatpush.msra.mxu0 0.0
        %1958 = vmatpush.msra.mxu0 %v1938
        %1959 = vmatmul.f32.gmra.mxu0 %v1941
        %v1960 = vpop.f32.mrf.mxu0
        %v1961 = vadd.f32 0.0, %v1960
        %1962 = vdwg.mxu0
        %1963 = vrot.lane.b32.xlu0 %v1744, 96
        %v1964 = vpop.permute.xlu0 %1963
        %v1967 = vsel %vm385, %v1884, 0
        %1969 = vmatpush.msra.mxu0 0.0
        %1970 = vmatpush.msra.mxu0 0.0
        %1971 = vmatpush.msra.mxu0 0.0
        %1972 = vmatpush.msra.mxu0 0.0
        %1973 = vmatpush.msra.mxu0 0.0
        %1974 = vmatpush.msra.mxu0 0.0
        %1975 = vmatpush.msra.mxu0 0.0
        %1976 = vmatpush.msra.mxu0 0.0
        %1977 = vmatpush.msra.mxu0 0.0
        %1978 = vmatpush.msra.mxu0 0.0
        %1979 = vmatpush.msra.mxu0 0.0
        %1980 = vmatpush.msra.mxu0 0.0
        %1981 = vmatpush.msra.mxu0 0.0
        %1982 = vmatpush.msra.mxu0 0.0
        %1983 = vmatpush.msra.mxu0 0.0
        %1984 = vmatpush.msra.mxu0 %v1964
        %1985 = vmatmul.f32.gmra.mxu0 %v1967
        %v1986 = vpop.f32.mrf.mxu0
        %v1987 = vadd.f32 0.0, %v1986
        %1988 = vdwg.mxu0
        %1990 = vrot.lane.b32.xlu0 %v1935, 8
        %v1991 = vpop.permute.xlu0 %1990
        %1994 = vrot.lane.b32.xlu0 %v1961, 16
        %v1995 = vpop.permute.xlu0 %1994
        %1998 = vrot.lane.b32.xlu0 %v1987, 24
        %v1999 = vpop.permute.xlu0 %1998
        %v2001 = vsel %vm385, %v1909, %v1991
        %v2002 = vsel %vm655, %v2001, %v1995
        %v2003 = vsel %vm657, %v2002, %v1999
        %2004 = vrot.lane.b32.xlu0 %v1661, 32
        %v2005 = vpop.permute.xlu0 %2004
        %2006 = vrot.lane.b32.xlu0 %v1662, 32
        %v2007 = vpop.permute.xlu0 %2006
        %2008 = vrot.lane.b32.xlu0 %v1663, 32
        %v2009 = vpop.permute.xlu0 %2008
        %2010 = vrot.lane.b32.xlu0 %v1664, 32
        %v2011 = vpop.permute.xlu0 %2010
        %2016 = vrot.lane.b32.xlu0 %v1667, 32
        %v2017 = vpop.permute.xlu0 %2016
        %v2020 = vsel %vm352, %v2003, 0
        %2022 = vmatpush.msra.mxu0 0.0
        %2023 = vmatpush.msra.mxu0 0.0
        %2024 = vmatpush.msra.mxu0 0.0
        %2025 = vmatpush.msra.mxu0 0.0
        %2026 = vmatpush.msra.mxu0 0.0
        %2027 = vmatpush.msra.mxu0 0.0
        %2028 = vmatpush.msra.mxu0 0.0
        %2029 = vmatpush.msra.mxu0 0.0
        %2030 = vmatpush.msra.mxu0 0.0
        %2031 = vmatpush.msra.mxu0 0.0
        %2032 = vmatpush.msra.mxu0 0.0
        %2033 = vmatpush.msra.mxu0 0.0
        %2034 = vmatpush.msra.mxu0 %v2011
        %2035 = vmatpush.msra.mxu0 %v2009
        %2036 = vmatpush.msra.mxu0 %v2007
        %2037 = vmatpush.msra.mxu0 %v2005
        %2038 = vmatmul.f32.gmra.mxu0 %v2020
        %v2039 = vpop.f32.mrf.mxu0
        %v2040 = vadd.f32 %v2017, %v2039
        %2041 = vdwg.mxu0
        %v2042 = vadd.f32 %v1660, %v2040
        %v2043 = vsel %vm352, %v2042, 0.0
        %2044 = vadd.xlane.f32.xlu0 %v2043
        %v2045 = vpop.xlane.xlu0 %2044
        %v2046 = vmul.f32 %v2045, %v712
        %v2047 = vsub.f32 %v2042, %v2046
        %v2048 = vmul.f32 %v2047, %v2047
        %v2049 = vsel %vm352, %v2048, 0.0
        %2050 = vadd.xlane.f32.xlu0 %v2049
        %v2051 = vpop.xlane.xlu0 %2050
        %v2052 = vmul.f32 %v2051, %v725
        %v2053 = vrsqrt.pop %v2052
        %v2054 = vmul.f32 %v2053, %v2052
        %v2055 = vmul.f32 %v2054, %v2053
        %v2056 = vmul.f32 0.5, %v2055
        %v2057 = vsub.f32 1.5, %v2056
        %v2058 = vmul.f32 %v2053, %v2057
        %v2059 = vmul.f32 %v2052, %v2058
        %vm2060 = vcmp.eq.f32.partialorder %v2052, inf
        %v2061 = vsel %vm2060, %v2052, %v2059
        %vm2062 = vcmp.eq.f32.partialorder %v2052, 0.0
        %v2063 = vand.u32 %v2052, 2147483648
        %v2064 = vsel %vm2062, %v2063, %v2061
        %v2065 = vadd.f32 %v2064, 1e-06
        %v2066 = vrcp.pop %v2065
        %v2067 = vmul.f32 %v2047, %v2066
        %v2068 = vperm.slane %v1666, 0
        %v2069 = vmul.f32 %v2067, %v2068
        %2071 = vrot.lane.b32.xlu0 %v2068, 96
        %v2072 = vpop.permute.xlu0 %2071
        %v2074 = vadd.f32 %v2069, %v2072
        %v2075 = vld [vmem:[%s6 + $0xca] sm:$0xff]
        %v2076 = vld [vmem:[%s6 + $0xd2] sm:$0xff]
        %v2077 = vld [vmem:[%s6 + $0xda] sm:$0xff]
        %v2078 = vld [vmem:[%s6 + $0xe2] sm:$0xff]
        %v2079 = vld [vmem:[%s6 + $0x10a] sm:$0x1]
        %v2080 = vld [vmem:[%s6 + $0xea] sm:$0xff]
        %v2081 = vld [vmem:[%s6 + $0xf2] sm:$0xff]
        %v2082 = vld [vmem:[%s6 + $0xfa] sm:$0xff]
        %v2083 = vld [vmem:[%s6 + $0x102] sm:$0xff]
        %v2084 = vld [vmem:[%s6 + $0x10b] sm:$0x1]
        %v2085 = vperm.slane %v2079, 0
        %2090 = vrot.lane.b32.xlu0 %v2075, 96
        %v2091 = vpop.permute.xlu0 %2090
        %2092 = vrot.lane.b32.xlu0 %v2076, 96
        %v2093 = vpop.permute.xlu0 %2092
        %2094 = vrot.lane.b32.xlu0 %v2077, 96
        %v2095 = vpop.permute.xlu0 %2094
        %2096 = vrot.lane.b32.xlu0 %v2078, 96
        %v2097 = vpop.permute.xlu0 %2096
        %v2103 = vsel %vm352, %v2074, 0
        %2105 = vmatpush.msra.mxu0 0.0
        %2106 = vmatpush.msra.mxu0 0.0
        %2107 = vmatpush.msra.mxu0 0.0
        %2108 = vmatpush.msra.mxu0 0.0
        %2109 = vmatpush.msra.mxu0 0.0
        %2110 = vmatpush.msra.mxu0 0.0
        %2111 = vmatpush.msra.mxu0 0.0
        %2112 = vmatpush.msra.mxu0 0.0
        %2113 = vmatpush.msra.mxu0 0.0
        %2114 = vmatpush.msra.mxu0 0.0
        %2115 = vmatpush.msra.mxu0 0.0
        %2116 = vmatpush.msra.mxu0 0.0
        %2117 = vmatpush.msra.mxu0 %v2097
        %2118 = vmatpush.msra.mxu0 %v2095
        %2119 = vmatpush.msra.mxu0 %v2093
        %2120 = vmatpush.msra.mxu0 %v2091
        %2121 = vmatmul.f32.gmra.mxu0 %v2103
        %v2122 = vpop.f32.mrf.mxu0
        %v2123 = vadd.f32 %v2085, %v2122
        %2124 = vdwg.mxu0
        %v2125 = vmax.f32 %v2123, 0.0
        %2127 = vrot.lane.b32.xlu0 %v2085, 64
        %v2128 = vpop.permute.xlu0 %2127
        %v2131 = vsel %vm1221, %v2125, 0
        %2133 = vmatpush.msra.mxu0 0.0
        %2134 = vmatpush.msra.mxu0 0.0
        %2135 = vmatpush.msra.mxu0 0.0
        %2136 = vmatpush.msra.mxu0 0.0
        %2137 = vmatpush.msra.mxu0 0.0
        %2138 = vmatpush.msra.mxu0 0.0
        %2139 = vmatpush.msra.mxu0 0.0
        %2140 = vmatpush.msra.mxu0 0.0
        %2141 = vmatpush.msra.mxu0 %v2083
        %2142 = vmatpush.msra.mxu0 %v2082
        %2143 = vmatpush.msra.mxu0 %v2081
        %2144 = vmatpush.msra.mxu0 %v2080
        %2145 = vmatpush.msra.mxu0 %v2078
        %2146 = vmatpush.msra.mxu0 %v2077
        %2147 = vmatpush.msra.mxu0 %v2076
        %2148 = vmatpush.msra.mxu0 %v2075
        %2149 = vmatmul.f32.gmra.mxu0 %v2131
        %v2150 = vpop.f32.mrf.mxu0
        %v2151 = vadd.f32 %v2128, %v2150
        %2152 = vdwg.mxu0
        %v2153 = vadd.f32 %v2074, %v2151
        %v2154 = vsel %vm352, %v2153, 0.0
        %2155 = vadd.xlane.f32.xlu0 %v2154
        %v2156 = vpop.xlane.xlu0 %2155
        %v2157 = vmul.f32 %v2156, %v712
        %v2158 = vsub.f32 %v2153, %v2157
        %v2159 = vmul.f32 %v2158, %v2158
        %v2160 = vsel %vm352, %v2159, 0.0
        %2161 = vadd.xlane.f32.xlu0 %v2160
        %v2162 = vpop.xlane.xlu0 %2161
        %v2163 = vmul.f32 %v2162, %v725
        %v2164 = vrsqrt.pop %v2163
        %v2165 = vmul.f32 %v2164, %v2163
        %v2166 = vmul.f32 %v2165, %v2164
        %v2167 = vmul.f32 0.5, %v2166
        %v2168 = vsub.f32 1.5, %v2167
        %v2169 = vmul.f32 %v2164, %v2168
        %v2170 = vmul.f32 %v2163, %v2169
        %vm2171 = vcmp.eq.f32.partialorder %v2163, inf
        %v2172 = vsel %vm2171, %v2163, %v2170
        %vm2173 = vcmp.eq.f32.partialorder %v2163, 0.0
        %v2174 = vand.u32 %v2163, 2147483648
        %v2175 = vsel %vm2173, %v2174, %v2172
        %v2176 = vadd.f32 %v2175, 1e-06
        %v2177 = vrcp.pop %v2176
        %v2178 = vmul.f32 %v2158, %v2177
        %2179 = vrot.lane.b32.xlu0 %v2085, 32
        %v2180 = vpop.permute.xlu0 %2179
        %v2182 = vmul.f32 %v2178, %v2180
        %v2183 = vperm.slane %v2084, 0
        %v2184 = vadd.f32 %v2182, %v2183
        %2185 = vst.msk [vmem:[%s275] sm:$0xff] %vm352, %v2184
        %s2186 = sand.u32 %s178, 1
        %s2187 = scalar_lea.sflag [#allocation5], %s2186
        %s2188 = sand.u32 %s178, 1
        %s2189 = smul.addr %s2188, 8
        %s2190 = scalar_lea.vmem [#allocation4], %s2189
        // Predicated region
        $region45: #{decoder_forward.1} parent=43 // pred_check
          %p2191 = pneg %p188
        $region46: #{decoder_forward.1} parent=43 // pred_check_branch
          %2193 = sbr.rel (%p2191) target = $region48
        $region47: #{decoder_forward.1} parent=43 // pred_region
          %2195 = vsyncadd %s2187, 0
          %s2196 = smul.addr %s29, 8
          %s2197 = scalar_lea.hbm %s7, %s2196
          %s2199 = sshll.u32 %s2190, 4
          %s2200 = int_to_ptr.vmem [resolvable:$true] %s2199
          %s2201 = sshll.u32 %s2197, 4
          %s2202 = int_to_ptr.hbm [resolvable:$true] %s2201
          %2204 = dma.vmem_to_hbm [thread:$0]  %s2200, 128, %s2202, %s2187
        $region48: #{decoder_forward.1} parent=43 // pred_fallthru
          _
      $region44: #{decoder_forward.1} parent=5 // pred_fallthru
        _
      %p2205 = scmp.le.s32.totalorder 2, %s24
      // Predicated region
      $region49: #{decoder_forward.1} parent=5 // pred_check
        %p2206 = pneg %p2205
      $region50: #{decoder_forward.1} parent=5 // pred_check_branch
        %2208 = sbr.rel (%p2206) target = $region52
      $region51: #{decoder_forward.1} parent=5 // pred_region
        %s2209 = ssub.s32 %s24, 2
        // Predicated region
        $region53: #{decoder_forward.1} parent=51 // pred_check
          %p2210 = pneg %p194
        $region54: #{decoder_forward.1} parent=51 // pred_check_branch
          %2212 = sbr.rel (%p2210) target = $region56
        $region55: #{decoder_forward.1} parent=51 // pred_region
          %s2213 = sand.u32 %s179, 1
          %s2214 = scalar_lea.sflag [#allocation5], %s2213
          %s2215 = sand.u32 %s179, 1
          %s2216 = smul.addr %s2215, 8
          %s2217 = scalar_lea.vmem [#allocation4], %s2216
          %2219 = dma.done %s2214, 128
        $region56: #{decoder_forward.1} parent=51 // pred_fallthru
          _
      $region52: #{decoder_forward.1} parent=5 // pred_fallthru
        _
    $region6: #{decoder_forward.1} parent=1 // loop_footer
      %s28 = sadd.s32 1, %s24
    $region7: #{decoder_forward.1} parent=1 // loop_footer_branch
      %23 = sbr.rel target = $region3
    $region8: #{decoder_forward.1} parent=1 // loop_exit
      _
    %2220 = vsyncpa [#allocation5], 1
    %s2221 = scalar_lea.sflag [#allocation5], 1
    %2222 = vsyncpa %s2221, 1

</llo_original>
